<compile_context>
chip_gen: v7x
topology: tpu7x:2x2x1
jax: 0.10.0
libtpu: 0.0.40
codegen_flags: <defaults>
</compile_context>

<pallas_src>
import functools

import jax
import jax.numpy as jnp
import numpy as np
from jax.experimental import pallas as pl
from jax.experimental.pallas import tpu as pltpu


# ----------------------------- kernel -----------------------------

def _conv3x3(xpad, w_ref, H, W):
    """3x3 'same' conv over the interior HxW of a 1-padded (H+2, W+2, C) input.

    `xpad` should already be in the MXU compute dtype (bf16): the width im2col
    (3 lane-dim concats) and the K-slab reads then run at half the bytes.
    One (H*W, 3*C) x (3*C, Cout) MXU dot per kh, f32 accumulation.
    """
    C = xpad.shape[-1]
    Cout_p = w_ref.shape[-1]
    xc = jnp.concatenate(
        [xpad[:, 0:W, :], xpad[:, 1:W + 1, :], xpad[:, 2:W + 2, :]], axis=-1)
    xc = xc.astype(w_ref.dtype)                    # no-op when already bf16
    acc = jnp.zeros((H * W, Cout_p), jnp.float32)
    for kh in range(3):                            # slices only along leading H axis
        patch = xc[kh:kh + H].reshape(H * W, 3 * C)
        acc = acc + jnp.dot(patch, w_ref[kh], preferred_element_type=jnp.float32)
    return acc


def bottleneck_kernel(*refs, last_relu, has_projection):
    if has_projection:
        x_ref, w1_ref, w2_ref, ws_ref, bn_ref, o_ref, mid_ref = refs
    else:
        x_ref, w1_ref, w2_ref, bn_ref, o_ref, mid_ref = refs
        ws_ref = None
    H, W, Cp_out = o_ref.shape

    x = x_ref[...]                                 # (H+2, W+2, Cp_in), bf16

    # ---- conv1 -> bn1 -> relu (interior HxW only) ----
    acc1 = _conv3x3(x, w1_ref, H, W)
    y1 = jnp.maximum(acc1 * bn_ref[0:1, :] + bn_ref[1:2, :], 0.0)

    # Stage y1 into a zero-ringed VMEM scratch: the ring is conv2's zero padding.
    # Re-zeroed every grid step (a one-time @pl.when(pid==0) init would be unsafe
    # with a 'parallel' / megacore-partitioned batch axis); the ring+interior is
    # tiny relative to the matmul work, so this is not on the critical path.
    mid_ref[...] = jnp.zeros_like(mid_ref)
    mid_ref[1:H + 1, 1:W + 1, :] = y1.reshape(H, W, Cp_out)

    # ---- conv2 -> bn2 ----  (cast to bf16 BEFORE the im2col concat: half the bytes)
    acc2 = _conv3x3(mid_ref[...].astype(w2_ref.dtype), w2_ref, H, W)
    out = acc2 * bn_ref[2:3, :] + bn_ref[3:4, :]

    # ---- shortcut ----
    xi = x[1:H + 1, 1:W + 1, :].reshape(H * W, x.shape[-1])
    if has_projection:                             # 1x1 conv + BN (Cin != Cout)
        sc = jnp.dot(xi, ws_ref[...], preferred_element_type=jnp.float32)
        sc = sc * bn_ref[4:5, :] + bn_ref[5:6, :]
    else:                                          # identity (Cin == Cout): no matmul
        sc = xi.astype(jnp.float32)

    out = out + sc
    if last_relu:
        out = jnp.maximum(out, 0.0)
    o_ref[...] = out.reshape(H, W, Cp_out)         # lane-dense (128-multiple) store


# ----------------------------- wrapper -----------------------------

def bottleneck_forward(x_nchw, kp, *, last_relu=True):
    """x_nchw: (N, Cin, H, W) f32. Returns (N, Cout, H, W) f32."""
    N, Cin, H, W = x_nchw.shape
    Cout, Cp_in, Cp_out = kp["cout"], kp["cp_in"], kp["cp_out"]
    has_projection = kp["has_projection"]
    cdt = kp["compute_dtype"]

    # NCHW -> NHWC (channels on the 128-lane axis); spatial pad by 1 for the 3x3
    # 'same' convs; channel pad up to a multiple of 128 for lane-dense layout.
    x_nhwc = jnp.transpose(x_nchw, (0, 2, 3, 1)).astype(jnp.float32)
    x_pad = jnp.pad(x_nhwc, ((0, 0), (1, 1), (1, 1), (0, Cp_in - Cin))).astype(cdt)

    kernel = functools.partial(bottleneck_kernel, last_relu=last_relu,
                               has_projection=has_projection)

    args = [x_pad, kp["w1"], kp["w2"]]
    in_specs = [
        pl.BlockSpec((None, H + 2, W + 2, Cp_in), lambda n: (n, 0, 0, 0)),
        pl.BlockSpec((3, 3 * Cp_in, Cp_out), lambda n: (0, 0, 0)),     # conv1 w
        pl.BlockSpec((3, 3 * Cp_out, Cp_out), lambda n: (0, 0, 0)),    # conv2 w
    ]
    if has_projection:
        args.append(kp["ws"])
        in_specs.append(pl.BlockSpec((Cp_in, Cp_out), lambda n: (0, 0)))
    args.append(kp["bn"])
    in_specs.append(pl.BlockSpec((6, Cp_out), lambda n: (0, 0)))       # packed BN

    out_nhwc = pl.pallas_call(
        kernel,
        out_shape=jax.ShapeDtypeStruct((N, H, W, Cp_out), jnp.float32),
        grid=(N,),
        in_specs=in_specs,
        out_specs=pl.BlockSpec((None, H, W, Cp_out), lambda n: (n, 0, 0, 0)),
        scratch_shapes=[pltpu.VMEM((H + 2, W + 2, Cp_out), jnp.float32)],
        compiler_params=pltpu.CompilerParams(
            dimension_semantics=("parallel",),
            vmem_limit_bytes=32 * 1024 * 1024,
        ),
    )(*args)

    return jnp.transpose(out_nhwc[:, :, :, :Cout], (0, 3, 1, 2))


# ----------------------------- parameter setup -----------------------------

def _round_up(n, m):
    return ((n + m - 1) // m) * m


def make_params(key, Cin, Cout):
    """Raw PyTorch-layout parameters (f32)."""
    ks = jax.random.split(key, 15)
    raw = {
        "conv1_w": jax.random.normal(ks[0], (Cout, Cin, 3, 3), jnp.float32) * 0.2,
        "conv2_w": jax.random.normal(ks[1], (Cout, Cout, 3, 3), jnp.float32) * 0.2,
        "bn1_g": jax.random.uniform(ks[2], (Cout,), jnp.float32, 0.5, 1.5),
        "bn1_b": jax.random.normal(ks[3], (Cout,), jnp.float32) * 0.1,
        "bn1_m": jax.random.normal(ks[4], (Cout,), jnp.float32) * 0.1,
        "bn1_v": jax.random.uniform(ks[5], (Cout,), jnp.float32, 0.5, 1.5),
        "bn2_g": jax.random.uniform(ks[6], (Cout,), jnp.float32, 0.5, 1.5),
        "bn2_b": jax.random.normal(ks[7], (Cout,), jnp.float32) * 0.1,
        "bn2_m": jax.random.normal(ks[8], (Cout,), jnp.float32) * 0.1,
        "bn2_v": jax.random.uniform(ks[9], (Cout,), jnp.float32, 0.5, 1.5),
    }
    if Cin != Cout:
        raw.update({
            "shortcut_w": jax.random.normal(ks[10], (Cout, Cin, 1, 1), jnp.float32) * 0.2,
            "bns_g": jax.random.uniform(ks[11], (Cout,), jnp.float32, 0.5, 1.5),
            "bns_b": jax.random.normal(ks[12], (Cout,), jnp.float32) * 0.1,
            "bns_m": jax.random.normal(ks[13], (Cout,), jnp.float32) * 0.1,
            "bns_v": jax.random.uniform(ks[14], (Cout,), jnp.float32, 0.5, 1.5),
        })
    else:
        raw["shortcut_w"] = None
    return raw


def pack_params(raw, Cin, Cout, eps=1e-5, compute_dtype=jnp.bfloat16):
    """Fold BN into per-channel scale/bias and repack weights into the kernel's
    lane-dense (channels padded to 128), kw-folded (K = 3*C) layout."""
    Cp_in, Cp_out = _round_up(Cin, 128), _round_up(Cout, 128)
    has_projection = raw["shortcut_w"] is not None

    def pack3x3(w, ci, co, cpi, cpo):
        w = jnp.transpose(w, (2, 3, 1, 0))                         # (kh, kw, ci, co)
        w = jnp.pad(w, ((0, 0), (0, 0), (0, cpi - ci), (0, cpo - co)))
        return w.reshape(3, 3 * cpi, cpo).astype(compute_dtype)

    def fold(g, b, m, v):
        s = g / jnp.sqrt(v + eps)
        return s, b - m * s

    def padc(v):
        return jnp.pad(v, (0, Cp_out - Cout))

    s1, b1 = fold(raw["bn1_g"], raw["bn1_b"], raw["bn1_m"], raw["bn1_v"])
    s2, b2 = fold(raw["bn2_g"], raw["bn2_b"], raw["bn2_m"], raw["bn2_v"])
    if has_projection:
        ss, bs = fold(raw["bns_g"], raw["bns_b"], raw["bns_m"], raw["bns_v"])
    else:
        ss = jnp.ones((Cout,), jnp.float32)
        bs = jnp.zeros((Cout,), jnp.float32)

    kp = {
        "w1": pack3x3(raw["conv1_w"], Cin, Cout, Cp_in, Cp_out),
        "w2": pack3x3(raw["conv2_w"], Cout, Cout, Cp_out, Cp_out),
        "bn": jnp.stack([padc(s1), padc(b1), padc(s2), padc(b2),
                         padc(ss), padc(bs)]).astype(jnp.float32),
        "cout": Cout, "cp_in": Cp_in, "cp_out": Cp_out,
        "has_projection": has_projection, "compute_dtype": compute_dtype,
    }
    if has_projection:
        ws = raw["shortcut_w"][:, :, 0, 0].T                        # (Cin, Cout)
        kp["ws"] = jnp.pad(ws, ((0, Cp_in - Cin), (0, Cp_out - Cout))).astype(compute_dtype)
    return kp


# ----------------------------- pure-JAX reference -----------------------------

def ref_bottleneck(x, raw, *, last_relu=True, eps=1e-5, compute_dtype=jnp.float32):
    """Reference. compute_dtype=bfloat16 precision-matches the kernel's bf16 MXU
    inputs (accumulation / BN / residual stay f32 in both)."""
    dn = ("NCHW", "OIHW", "NCHW")

    def conv(t, w, pad):
        return jax.lax.conv_general_dilated(
            t.astype(compute_dtype), w.astype(compute_dtype), (1, 1),
            [(pad, pad), (pad, pad)], dimension_numbers=dn,
            preferred_element_type=jnp.float32)

    def bn(t, g, b, m, v):
        sh = (1, -1, 1, 1)
        return (t - m.reshape(sh)) * (g.reshape(sh) / jnp.sqrt(v.reshape(sh) + eps)) + b.reshape(sh)

    out = jax.nn.relu(bn(conv(x, raw["conv1_w"], 1),
                         raw["bn1_g"], raw["bn1_b"], raw["bn1_m"], raw["bn1_v"]))
    out = bn(conv(out, raw["conv2_w"], 1),
             raw["bn2_g"], raw["bn2_b"], raw["bn2_m"], raw["bn2_v"])
    if raw["shortcut_w"] is not None:
        sc = bn(conv(x, raw["shortcut_w"], 0),
                raw["bns_g"], raw["bns_b"], raw["bns_m"], raw["bns_v"])
    else:
        sc = x.astype(compute_dtype).astype(jnp.float32)
    out = out + sc
    if last_relu:
        out = jax.nn.relu(out)
    return out


# ----------------------------- test -----------------------------

if __name__ == "__main__":
    key = jax.random.PRNGKey(0)
    k1, k2, k3, k4 = jax.random.split(key, 4)

    def run_case(N, Cin, Cout, H, W, last_relu, kx, kw):
        x = jax.random.normal(kx, (N, Cin, H, W), jnp.float32)
        raw = make_params(kw, Cin, Cout)
        kp = pack_params(raw, Cin, Cout)
        out = jax.block_until_ready(bottleneck_forward(x, kp, last_relu=last_relu))
        assert out.shape == (N, Cout, H, W), out.shape
        # tight check vs a precision-matched (bf16 conv inputs) reference
        ref_m = ref_bottleneck(x, raw, last_relu=last_relu, compute_dtype=jnp.bfloat16)
        np.testing.assert_allclose(np.asarray(out), np.asarray(ref_m), rtol=1e-2, atol=1e-2)
        # loose structural check vs the full-f32 reference (kernel uses bf16 MXU inputs)
        ref_f = ref_bottleneck(x, raw, last_relu=last_relu, compute_dtype=jnp.float32)
        np.testing.assert_allclose(np.asarray(out), np.asarray(ref_f), rtol=1e-1, atol=3e-1)

    run_case(2, 4, 8, 16, 16, True, k1, k2)    # Cin != Cout -> 1x1 conv + BN shortcut
    run_case(2, 8, 8, 16, 16, False, k3, k4)   # Cin == Cout -> identity shortcut, no last ReLU
    print("KERNEL_OK")
</pallas_src>

<mosaic_0001>
module attributes {stable_mosaic.version = 11 : i64} {
  func.func @bottleneck_kernel(%arg0: i32, %arg1: memref<1x18x18x128xbf16, #tpu.memory_space<vmem>>, %arg2: memref<3x384x128xbf16, #tpu.memory_space<vmem>>, %arg3: memref<3x384x128xbf16, #tpu.memory_space<vmem>>, %arg4: memref<128x128xbf16, #tpu.memory_space<vmem>>, %arg5: memref<6x128xf32, #tpu.memory_space<vmem>>, %arg6: memref<1x16x16x128xf32, #tpu.memory_space<vmem>>, %arg7: memref<18x18x128xf32, #tpu.memory_space<vmem>>) attributes {dimension_semantics = [#tpu.dimension_semantics<parallel>], iteration_bounds = array<i64: 2>, scalar_prefetch = 0 : i64, scratch_operands = 1 : i64, tpu.core_type = #tpu.core_type<tc>, window_params = [{transform_indices = @transform_0, window_bounds = array<i64: 1, 18, 18, 128>}, {pipeline_mode = #tpu.pipeline_mode<synchronous>, transform_indices = @transform_1, window_bounds = array<i64: 3, 384, 128>}, {pipeline_mode = #tpu.pipeline_mode<synchronous>, transform_indices = @transform_2, window_bounds = array<i64: 3, 384, 128>}, {pipeline_mode = #tpu.pipeline_mode<synchronous>, transform_indices = @transform_3, window_bounds = array<i64: 128, 128>}, {pipeline_mode = #tpu.pipeline_mode<synchronous>, transform_indices = @transform_4, window_bounds = array<i64: 6, 128>}, {transform_indices = @transform_5, window_bounds = array<i64: 1, 16, 16, 128>}]} {
    %c0 = arith.constant 0 : index
    %c0_0 = arith.constant 0 : index
    %c0_1 = arith.constant 0 : index
    %c0_2 = arith.constant 0 : index
    %0 = vector.load %arg1[%c0, %c0_0, %c0_1, %c0_2] : memref<1x18x18x128xbf16, #tpu.memory_space<vmem>>, vector<1x18x18x128xbf16>
    %1 = vector.shape_cast %0 : vector<1x18x18x128xbf16> to vector<18x18x128xbf16>
    %2 = vector.extract_strided_slice %1 {offsets = [0, 0, 0], sizes = [18, 16, 128], strides = [1, 1, 1]} : vector<18x18x128xbf16> to vector<18x16x128xbf16>
    %3 = vector.extract_strided_slice %1 {offsets = [0, 1, 0], sizes = [18, 16, 128], strides = [1, 1, 1]} : vector<18x18x128xbf16> to vector<18x16x128xbf16>
    %4 = vector.extract_strided_slice %1 {offsets = [0, 2, 0], sizes = [18, 16, 128], strides = [1, 1, 1]} : vector<18x18x128xbf16> to vector<18x16x128xbf16>
    %5 = tpu.concatenate %2, %3, %4 in 2 : vector<18x16x128xbf16>, vector<18x16x128xbf16>, vector<18x16x128xbf16> -> vector<18x16x384xbf16>
    %cst = arith.constant 0.000000e+00 : f32
    %6 = vector.broadcast %cst : f32 to vector<256x128xf32>
    %7 = vector.extract_strided_slice %5 {offsets = [0, 0, 0], sizes = [16, 16, 384], strides = [1, 1, 1]} : vector<18x16x384xbf16> to vector<16x16x384xbf16>
    %8 = vector.shape_cast %7 : vector<16x16x384xbf16> to vector<256x384xbf16>
    %c0_3 = arith.constant 0 : index
    %c0_4 = arith.constant 0 : index
    %c0_5 = arith.constant 0 : index
    %9 = vector.load %arg2[%c0_3, %c0_4, %c0_5] : memref<3x384x128xbf16, #tpu.memory_space<vmem>>, vector<1x384x128xbf16>
    %10 = vector.shape_cast %9 : vector<1x384x128xbf16> to vector<384x128xbf16>
    %cst_6 = arith.constant dense<0.000000e+00> : vector<256x128xf32>
    %11 = tpu.matmul %8, %10, %cst_6 {dimension_numbers = #tpu.dot_dimension_numbers<[1], [0], [0], [1], [0, 0, 1, 1], [], []>} : vector<256x384xbf16>, vector<384x128xbf16>, vector<256x128xf32> -> vector<256x128xf32>
    %12 = arith.addf %6, %11 : vector<256x128xf32>
    %13 = vector.extract_strided_slice %5 {offsets = [1, 0, 0], sizes = [16, 16, 384], strides = [1, 1, 1]} : vector<18x16x384xbf16> to vector<16x16x384xbf16>
    %14 = vector.shape_cast %13 : vector<16x16x384xbf16> to vector<256x384xbf16>
    %c1 = arith.constant 1 : index
    %c0_7 = arith.constant 0 : index
    %c0_8 = arith.constant 0 : index
    %15 = vector.load %arg2[%c1, %c0_7, %c0_8] : memref<3x384x128xbf16, #tpu.memory_space<vmem>>, vector<1x384x128xbf16>
    %16 = vector.shape_cast %15 : vector<1x384x128xbf16> to vector<384x128xbf16>
    %cst_9 = arith.constant dense<0.000000e+00> : vector<256x128xf32>
    %17 = tpu.matmul %14, %16, %cst_9 {dimension_numbers = #tpu.dot_dimension_numbers<[1], [0], [0], [1], [0, 0, 1, 1], [], []>} : vector<256x384xbf16>, vector<384x128xbf16>, vector<256x128xf32> -> vector<256x128xf32>
    %18 = arith.addf %12, %17 : vector<256x128xf32>
    %19 = vector.extract_strided_slice %5 {offsets = [2, 0, 0], sizes = [16, 16, 384], strides = [1, 1, 1]} : vector<18x16x384xbf16> to vector<16x16x384xbf16>
    %20 = vector.shape_cast %19 : vector<16x16x384xbf16> to vector<256x384xbf16>
    %c2 = arith.constant 2 : index
    %c0_10 = arith.constant 0 : index
    %c0_11 = arith.constant 0 : index
    %21 = vector.load %arg2[%c2, %c0_10, %c0_11] : memref<3x384x128xbf16, #tpu.memory_space<vmem>>, vector<1x384x128xbf16>
    %22 = vector.shape_cast %21 : vector<1x384x128xbf16> to vector<384x128xbf16>
    %cst_12 = arith.constant dense<0.000000e+00> : vector<256x128xf32>
    %23 = tpu.matmul %20, %22, %cst_12 {dimension_numbers = #tpu.dot_dimension_numbers<[1], [0], [0], [1], [0, 0, 1, 1], [], []>} : vector<256x384xbf16>, vector<384x128xbf16>, vector<256x128xf32> -> vector<256x128xf32>
    %24 = arith.addf %18, %23 : vector<256x128xf32>
    %c0_13 = arith.constant 0 : index
    %c0_14 = arith.constant 0 : index
    %25 = vector.load %arg5[%c0_13, %c0_14] : memref<6x128xf32, #tpu.memory_space<vmem>>, vector<1x128xf32>
    %26 = vector.broadcast %25 : vector<1x128xf32> to vector<256x128xf32>
    %27 = arith.mulf %24, %26 : vector<256x128xf32>
    %c1_15 = arith.constant 1 : index
    %c0_16 = arith.constant 0 : index
    %28 = vector.load %arg5[%c1_15, %c0_16] : memref<6x128xf32, #tpu.memory_space<vmem>>, vector<1x128xf32>
    %29 = vector.broadcast %28 : vector<1x128xf32> to vector<256x128xf32>
    %30 = arith.addf %27, %29 : vector<256x128xf32>
    %cst_17 = arith.constant 0.000000e+00 : f32
    %31 = vector.broadcast %cst_17 : f32 to vector<256x128xf32>
    %32 = arith.maximumf %30, %31 : vector<256x128xf32>
    %cst_18 = arith.constant 0.000000e+00 : f32
    %33 = vector.broadcast %cst_18 : f32 to vector<18x18x128xf32>
    %c0_19 = arith.constant 0 : index
    %c0_20 = arith.constant 0 : index
    %c0_21 = arith.constant 0 : index
    %34 = vector.load %arg7[%c0_19, %c0_20, %c0_21] : memref<18x18x128xf32, #tpu.memory_space<vmem>>, vector<18x18x128xf32>
    tpu.vector_store %arg7[%c0_19, %c0_20, %c0_21], %33 {strides = array<i32>} : memref<18x18x128xf32, #tpu.memory_space<vmem>>, vector<18x18x128xf32>,
    %35 = vector.shape_cast %32 : vector<256x128xf32> to vector<16x16x128xf32>
    %c1_22 = arith.constant 1 : index
    %c1_23 = arith.constant 1 : index
    %c0_24 = arith.constant 0 : index
    %36 = vector.load %arg7[%c1_22, %c1_23, %c0_24] : memref<18x18x128xf32, #tpu.memory_space<vmem>>, vector<16x16x128xf32>
    tpu.vector_store %arg7[%c1_22, %c1_23, %c0_24], %35 {strides = array<i32>} : memref<18x18x128xf32, #tpu.memory_space<vmem>>, vector<16x16x128xf32>,
    %c0_25 = arith.constant 0 : index
    %c0_26 = arith.constant 0 : index
    %c0_27 = arith.constant 0 : index
    %37 = vector.load %arg7[%c0_25, %c0_26, %c0_27] : memref<18x18x128xf32, #tpu.memory_space<vmem>>, vector<18x18x128xf32>
    %38 = arith.truncf %37 : vector<18x18x128xf32> to vector<18x18x128xbf16>
    %39 = vector.extract_strided_slice %38 {offsets = [0, 0, 0], sizes = [18, 16, 128], strides = [1, 1, 1]} : vector<18x18x128xbf16> to vector<18x16x128xbf16>
    %40 = vector.extract_strided_slice %38 {offsets = [0, 1, 0], sizes = [18, 16, 128], strides = [1, 1, 1]} : vector<18x18x128xbf16> to vector<18x16x128xbf16>
    %41 = vector.extract_strided_slice %38 {offsets = [0, 2, 0], sizes = [18, 16, 128], strides = [1, 1, 1]} : vector<18x18x128xbf16> to vector<18x16x128xbf16>
    %42 = tpu.concatenate %39, %40, %41 in 2 : vector<18x16x128xbf16>, vector<18x16x128xbf16>, vector<18x16x128xbf16> -> vector<18x16x384xbf16>
    %cst_28 = arith.constant 0.000000e+00 : f32
    %43 = vector.broadcast %cst_28 : f32 to vector<256x128xf32>
    %44 = vector.extract_strided_slice %42 {offsets = [0, 0, 0], sizes = [16, 16, 384], strides = [1, 1, 1]} : vector<18x16x384xbf16> to vector<16x16x384xbf16>
    %45 = vector.shape_cast %44 : vector<16x16x384xbf16> to vector<256x384xbf16>
    %c0_29 = arith.constant 0 : index
    %c0_30 = arith.constant 0 : index
    %c0_31 = arith.constant 0 : index
    %46 = vector.load %arg3[%c0_29, %c0_30, %c0_31] : memref<3x384x128xbf16, #tpu.memory_space<vmem>>, vector<1x384x128xbf16>
    %47 = vector.shape_cast %46 : vector<1x384x128xbf16> to vector<384x128xbf16>
    %cst_32 = arith.constant dense<0.000000e+00> : vector<256x128xf32>
    %48 = tpu.matmul %45, %47, %cst_32 {dimension_numbers = #tpu.dot_dimension_numbers<[1], [0], [0], [1], [0, 0, 1, 1], [], []>} : vector<256x384xbf16>, vector<384x128xbf16>, vector<256x128xf32> -> vector<256x128xf32>
    %49 = arith.addf %43, %48 : vector<256x128xf32>
    %50 = vector.extract_strided_slice %42 {offsets = [1, 0, 0], sizes = [16, 16, 384], strides = [1, 1, 1]} : vector<18x16x384xbf16> to vector<16x16x384xbf16>
    %51 = vector.shape_cast %50 : vector<16x16x384xbf16> to vector<256x384xbf16>
    %c1_33 = arith.constant 1 : index
    %c0_34 = arith.constant 0 : index
    %c0_35 = arith.constant 0 : index
    %52 = vector.load %arg3[%c1_33, %c0_34, %c0_35] : memref<3x384x128xbf16, #tpu.memory_space<vmem>>, vector<1x384x128xbf16>
    %53 = vector.shape_cast %52 : vector<1x384x128xbf16> to vector<384x128xbf16>
    %cst_36 = arith.constant dense<0.000000e+00> : vector<256x128xf32>
    %54 = tpu.matmul %51, %53, %cst_36 {dimension_numbers = #tpu.dot_dimension_numbers<[1], [0], [0], [1], [0, 0, 1, 1], [], []>} : vector<256x384xbf16>, vector<384x128xbf16>, vector<256x128xf32> -> vector<256x128xf32>
    %55 = arith.addf %49, %54 : vector<256x128xf32>
    %56 = vector.extract_strided_slice %42 {offsets = [2, 0, 0], sizes = [16, 16, 384], strides = [1, 1, 1]} : vector<18x16x384xbf16> to vector<16x16x384xbf16>
    %57 = vector.shape_cast %56 : vector<16x16x384xbf16> to vector<256x384xbf16>
    %c2_37 = arith.constant 2 : index
    %c0_38 = arith.constant 0 : index
    %c0_39 = arith.constant 0 : index
    %58 = vector.load %arg3[%c2_37, %c0_38, %c0_39] : memref<3x384x128xbf16, #tpu.memory_space<vmem>>, vector<1x384x128xbf16>
    %59 = vector.shape_cast %58 : vector<1x384x128xbf16> to vector<384x128xbf16>
    %cst_40 = arith.constant dense<0.000000e+00> : vector<256x128xf32>
    %60 = tpu.matmul %57, %59, %cst_40 {dimension_numbers = #tpu.dot_dimension_numbers<[1], [0], [0], [1], [0, 0, 1, 1], [], []>} : vector<256x384xbf16>, vector<384x128xbf16>, vector<256x128xf32> -> vector<256x128xf32>
    %61 = arith.addf %55, %60 : vector<256x128xf32>
    %c2_41 = arith.constant 2 : index
    %c0_42 = arith.constant 0 : index
    %62 = vector.load %arg5[%c2_41, %c0_42] : memref<6x128xf32, #tpu.memory_space<vmem>>, vector<1x128xf32>
    %63 = vector.broadcast %62 : vector<1x128xf32> to vector<256x128xf32>
    %64 = arith.mulf %61, %63 : vector<256x128xf32>
    %c3 = arith.constant 3 : index
    %c0_43 = arith.constant 0 : index
    %65 = vector.load %arg5[%c3, %c0_43] : memref<6x128xf32, #tpu.memory_space<vmem>>, vector<1x128xf32>
    %66 = vector.broadcast %65 : vector<1x128xf32> to vector<256x128xf32>
    %67 = arith.addf %64, %66 : vector<256x128xf32>
    %68 = vector.extract_strided_slice %1 {offsets = [1, 1, 0], sizes = [16, 16, 128], strides = [1, 1, 1]} : vector<18x18x128xbf16> to vector<16x16x128xbf16>
    %69 = vector.shape_cast %68 : vector<16x16x128xbf16> to vector<256x128xbf16>
    %c0_44 = arith.constant 0 : index
    %c0_45 = arith.constant 0 : index
    %70 = vector.load %arg4[%c0_44, %c0_45] : memref<128x128xbf16, #tpu.memory_space<vmem>>, vector<128x128xbf16>
    %cst_46 = arith.constant dense<0.000000e+00> : vector<256x128xf32>
    %71 = tpu.matmul %69, %70, %cst_46 {dimension_numbers = #tpu.dot_dimension_numbers<[1], [0], [0], [1], [0, 0, 1, 1], [], []>} : vector<256x128xbf16>, vector<128x128xbf16>, vector<256x128xf32> -> vector<256x128xf32>
    %c4 = arith.constant 4 : index
    %c0_47 = arith.constant 0 : index
    %72 = vector.load %arg5[%c4, %c0_47] : memref<6x128xf32, #tpu.memory_space<vmem>>, vector<1x128xf32>
    %73 = vector.broadcast %72 : vector<1x128xf32> to vector<256x128xf32>
    %74 = arith.mulf %71, %73 : vector<256x128xf32>
    %c5 = arith.constant 5 : index
    %c0_48 = arith.constant 0 : index
    %75 = vector.load %arg5[%c5, %c0_48] : memref<6x128xf32, #tpu.memory_space<vmem>>, vector<1x128xf32>
    %76 = vector.broadcast %75 : vector<1x128xf32> to vector<256x128xf32>
    %77 = arith.addf %74, %76 : vector<256x128xf32>
    %78 = arith.addf %67, %77 : vector<256x128xf32>
    %cst_49 = arith.constant 0.000000e+00 : f32
    %79 = vector.broadcast %cst_49 : f32 to vector<256x128xf32>
    %80 = arith.maximumf %78, %79 : vector<256x128xf32>
    %81 = vector.shape_cast %80 : vector<256x128xf32> to vector<16x16x128xf32>
    %c0_50 = arith.constant 0 : index
    %c0_51 = arith.constant 0 : index
    %c0_52 = arith.constant 0 : index
    %c0_53 = arith.constant 0 : index
    %82 = vector.load %arg6[%c0_50, %c0_51, %c0_52, %c0_53] : memref<1x16x16x128xf32, #tpu.memory_space<vmem>>, vector<1x16x16x128xf32>
    %83 = vector.shape_cast %82 : vector<1x16x16x128xf32> to vector<16x16x128xf32>
    %84 = vector.shape_cast %81 : vector<16x16x128xf32> to vector<1x16x16x128xf32>
    tpu.vector_store %arg6[%c0_50, %c0_51, %c0_52, %c0_53], %84 {strides = array<i32>} : memref<1x16x16x128xf32, #tpu.memory_space<vmem>>, vector<1x16x16x128xf32>,
    return
  }
  func.func @transform_0(%arg0: i32) -> (i32, i32, i32, i32) {
    %c0_i32 = arith.constant 0 : i32
    %c0_i32_0 = arith.constant 0 : i32
    %c0_i32_1 = arith.constant 0 : i32
    %c0_i32_2 = arith.constant 0 : i32
    return %arg0, %c0_i32, %c0_i32_0, %c0_i32_1 : i32, i32, i32, i32
  }
  func.func @transform_1(%arg0: i32) -> (i32, i32, i32) {
    %c0_i32 = arith.constant 0 : i32
    %c0_i32_0 = arith.constant 0 : i32
    %c0_i32_1 = arith.constant 0 : i32
    %c0_i32_2 = arith.constant 0 : i32
    return %c0_i32, %c0_i32_0, %c0_i32_1 : i32, i32, i32
  }
  func.func @transform_2(%arg0: i32) -> (i32, i32, i32) {
    %c0_i32 = arith.constant 0 : i32
    %c0_i32_0 = arith.constant 0 : i32
    %c0_i32_1 = arith.constant 0 : i32
    %c0_i32_2 = arith.constant 0 : i32
    return %c0_i32, %c0_i32_0, %c0_i32_1 : i32, i32, i32
  }
  func.func @transform_3(%arg0: i32) -> (i32, i32) {
    %c0_i32 = arith.constant 0 : i32
    %c0_i32_0 = arith.constant 0 : i32
    %c0_i32_1 = arith.constant 0 : i32
    return %c0_i32, %c0_i32_0 : i32, i32
  }
  func.func @transform_4(%arg0: i32) -> (i32, i32) {
    %c0_i32 = arith.constant 0 : i32
    %c0_i32_0 = arith.constant 0 : i32
    %c0_i32_1 = arith.constant 0 : i32
    return %c0_i32, %c0_i32_0 : i32, i32
  }
  func.func @transform_5(%arg0: i32) -> (i32, i32, i32, i32) {
    %c0_i32 = arith.constant 0 : i32
    %c0_i32_0 = arith.constant 0 : i32
    %c0_i32_1 = arith.constant 0 : i32
    %c0_i32_2 = arith.constant 0 : i32
    return %arg0, %c0_i32, %c0_i32_0, %c0_i32_1 : i32, i32, i32, i32
  }
}

</mosaic_0001>

<llo_original>
// kernel: tpu_custom_call.1
$region0: #{tpu_custom_call.1}
  #allocation0 [shape = 'u32[]', space=smem, size = 0x4, offset = 0x4, fixed_abs, tag = 'smem constant byte address 0x4 - core index']
  #allocation1 [shape = 'u32[144,128]{1,0:T(1,128)}', space=vmem, size = 0x12000, scoped, tag = 'internal scratch']
  #allocation2 [shape = 'f32[18,18,128]{2,1,0:T(8,128)}', space=vmem, size = 0x36000, scoped, tag = 'scratch operand']
  %s0 = inlined_call_operand.vmem [shape: bf16[2,18,18,128], index: 0, kind: input, shape index: {}]
  %s1 = inlined_call_operand.vmem [shape: bf16[3,384,128], index: 1, kind: input, shape index: {}]
  %s2 = inlined_call_operand.hbm [shape: bf16[3,384,128], index: 2, kind: input, shape index: {}]
  %s3 = inlined_call_operand.vmem [shape: bf16[128,128], index: 3, kind: input, shape index: {}]
  %s4 = inlined_call_operand.vmem [shape: f32[6,128], index: 4, kind: input, shape index: {}]
  %s5 = inlined_call_operand.hbm [shape: f32[2,16,16,128], index: 5, kind: output, shape index: {}]
  %s6 = sld [smem:[#allocation0]]
  $region57: #{tpu_custom_call.1} parent=0
    _
  %s8 = ssub.s32 1, %s6
  %s9 = scalar_select 0, %s8, %s6
  $region1: #{tpu_custom_call.1} parent=0
    #allocation3 [shape = 'u8[294912]{0}', space=vmem, size = 0x48000, scoped, tag = 'input window, operand 2, single buffered']
    #allocation4 [shape = 's32[2]{0}', space=sflag, size = 0x8, scoped, tag = 'scoped memory for tpu_custom_call.1']
    #allocation5 [shape = 's32[2]{0}', space=sflag, size = 0x8, scoped, tag = 'scoped memory for tpu_custom_call.1']
    #allocation6 [shape = 'u8[262144]{0}', space=vmem, size = 0x40000, scoped, tag = 'output window, operand 0']
    %10 = vsyncpa [#allocation4], 0
    %11 = vsyncpa [#allocation5], 0
    %s12 = scalar_lea.sflag [#allocation5], 1
    %13 = vsyncpa %s12, 0
    loop: start=0, step=1, limit=4
    $region2: #{tpu_custom_call.1} parent=1 // loop_pre_header
      _
    $region3: #{tpu_custom_call.1} parent=1 // loop_header
      %s15 = sphi 0, %s19
      %p16 = scmp.ge.s32.totalorder %s15, 4
      %s25 = sphi 0, %s27
      %s28 = sphi 0, %s25
      %s29 = sphi 0, %s28
      %s45 = sphi 0, %s29
      %s49 = sphi 0, %s49
      %s51 = sphi 0, %s49
      %s52 = sphi 0, %s51
      %s66 = sphi 0, %s52
      %s70 = sphi 0, %s70
      %s72 = sphi 0, %s70
      %s73 = sphi 0, %s72
      %s87 = sphi 0, %s73
      %s91 = sphi 0, %s91
      %s93 = sphi 0, %s91
      %s94 = sphi 0, %s93
      %s108 = sphi 0, %s94
      %s112 = sphi 0, %s112
      %s114 = sphi 0, %s112
      %s115 = sphi 0, %s114
      %s129 = sphi 0, %s115
      %s135 = sphi 0, %s137
      %s138 = sphi 0, %s135
      %s139 = sphi 0, %s138
      %s155 = sphi 0, %s139
    $region4: #{tpu_custom_call.1} parent=1 // loop_header_branch
      %18 = sbr.rel (%p16) target = $region8
    $region5: #{tpu_custom_call.1} parent=1 // loop_body
      %s20 = ssub.s32 %s15, 1
      %s21 = ssub.s32 %s15, 2
      %s22 = sadd.s32 %s15, 1
      %s23 = ssub.s32 %s15, %s22
      %p24 = scmp.eq.s32.totalorder %s23, 0
      %s26 = sadd.s32 %s25, 1
      %s27 = scalar_select %p24, %s25, %s26
      %p30 = pneg %p24
      %p31 = scmp.eq.s32.totalorder %s15, 1
      %p32 = por %p30, %p31
      %p33 = scmp.ne.s32.totalorder %s25, %s28
      %p34 = scmp.eq.s32.totalorder %s15, 0
      %p35 = por %p33, %p34
      %p36 = scmp.ne.s32.totalorder %s25, %s28
      %p37 = scmp.eq.s32.totalorder %s20, 1
      %p38 = por %p36, %p37
      %p39 = scmp.ne.s32.totalorder %s28, %s29
      %p40 = scmp.eq.s32.totalorder %s20, 0
      %p41 = por %p39, %p40
      %p42 = scmp.ne.s32.totalorder %s28, %s29
      %p43 = scmp.eq.s32.totalorder %s21, 1
      %p44 = por %p42, %p43
      %p46 = scmp.ne.s32.totalorder %s29, %s45
      %p47 = scmp.eq.s32.totalorder %s21, 0
      %p48 = por %p46, %p47
      %s50 = sadd.s32 %s49, 1
      %p53 = scmp.eq.s32.totalorder %s15, 1
      %p54 = scmp.ne.s32.totalorder %s49, %s51
      %p55 = scmp.eq.s32.totalorder %s15, 0
      %p56 = por %p54, %p55
      %p57 = scmp.ne.s32.totalorder %s49, %s51
      %p58 = scmp.eq.s32.totalorder %s20, 1
      %p59 = por %p57, %p58
      %p60 = scmp.ne.s32.totalorder %s51, %s52
      %p61 = scmp.eq.s32.totalorder %s20, 0
      %p62 = por %p60, %p61
      %p63 = scmp.ne.s32.totalorder %s51, %s52
      %p64 = scmp.eq.s32.totalorder %s21, 1
      %p65 = por %p63, %p64
      %p67 = scmp.ne.s32.totalorder %s52, %s66
      %p68 = scmp.eq.s32.totalorder %s21, 0
      %p69 = por %p67, %p68
      %s71 = sadd.s32 %s70, 1
      %p74 = scmp.eq.s32.totalorder %s15, 1
      %p75 = scmp.ne.s32.totalorder %s70, %s72
      %p76 = scmp.eq.s32.totalorder %s15, 0
      %p77 = por %p75, %p76
      %p78 = scmp.ne.s32.totalorder %s70, %s72
      %p79 = scmp.eq.s32.totalorder %s20, 1
      %p80 = por %p78, %p79
      %p81 = scmp.ne.s32.totalorder %s72, %s73
      %p82 = scmp.eq.s32.totalorder %s20, 0
      %p83 = por %p81, %p82
      %p84 = scmp.ne.s32.totalorder %s72, %s73
      %p85 = scmp.eq.s32.totalorder %s21, 1
      %p86 = por %p84, %p85
      %p88 = scmp.ne.s32.totalorder %s73, %s87
      %p89 = scmp.eq.s32.totalorder %s21, 0
      %p90 = por %p88, %p89
      %s92 = sadd.s32 %s91, 1
      %p95 = scmp.eq.s32.totalorder %s15, 1
      %p96 = scmp.ne.s32.totalorder %s91, %s93
      %p97 = scmp.eq.s32.totalorder %s15, 0
      %p98 = por %p96, %p97
      %p99 = scmp.ne.s32.totalorder %s91, %s93
      %p100 = scmp.eq.s32.totalorder %s20, 1
      %p101 = por %p99, %p100
      %p102 = scmp.ne.s32.totalorder %s93, %s94
      %p103 = scmp.eq.s32.totalorder %s20, 0
      %p104 = por %p102, %p103
      %p105 = scmp.ne.s32.totalorder %s93, %s94
      %p106 = scmp.eq.s32.totalorder %s21, 1
      %p107 = por %p105, %p106
      %p109 = scmp.ne.s32.totalorder %s94, %s108
      %p110 = scmp.eq.s32.totalorder %s21, 0
      %p111 = por %p109, %p110
      %s113 = sadd.s32 %s112, 1
      %p116 = scmp.eq.s32.totalorder %s15, 1
      %p117 = scmp.ne.s32.totalorder %s112, %s114
      %p118 = scmp.eq.s32.totalorder %s15, 0
      %p119 = por %p117, %p118
      %p120 = scmp.ne.s32.totalorder %s112, %s114
      %p121 = scmp.eq.s32.totalorder %s20, 1
      %p122 = por %p120, %p121
      %p123 = scmp.ne.s32.totalorder %s114, %s115
      %p124 = scmp.eq.s32.totalorder %s20, 0
      %p125 = por %p123, %p124
      %p126 = scmp.ne.s32.totalorder %s114, %s115
      %p127 = scmp.eq.s32.totalorder %s21, 1
      %p128 = por %p126, %p127
      %p130 = scmp.ne.s32.totalorder %s115, %s129
      %p131 = scmp.eq.s32.totalorder %s21, 0
      %p132 = por %p130, %p131
      %s133 = ssub.s32 %s15, %s22
      %p134 = scmp.eq.s32.totalorder %s133, 0
      %s136 = sadd.s32 %s135, 1
      %s137 = scalar_select %p134, %s135, %s136
      %p140 = pneg %p134
      %p141 = scmp.eq.s32.totalorder %s15, 1
      %p142 = por %p140, %p141
      %p143 = scmp.ne.s32.totalorder %s135, %s138
      %p144 = scmp.eq.s32.totalorder %s15, 0
      %p145 = por %p143, %p144
      %p146 = scmp.ne.s32.totalorder %s135, %s138
      %p147 = scmp.eq.s32.totalorder %s20, 1
      %p148 = por %p146, %p147
      %p149 = scmp.ne.s32.totalorder %s138, %s139
      %p150 = scmp.eq.s32.totalorder %s20, 0
      %p151 = por %p149, %p150
      %p152 = scmp.ne.s32.totalorder %s138, %s139
      %p153 = scmp.eq.s32.totalorder %s21, 1
      %p154 = por %p152, %p153
      %p156 = scmp.ne.s32.totalorder %s139, %s155
      %p157 = scmp.eq.s32.totalorder %s21, 0
      %p158 = por %p156, %p157
      %p159 = scmp.le.s32.totalorder 1, %s15
      %p160 = scmp.lt.s32.totalorder %s15, 3
      %p161 = pnand %p159, %p160
      %p162 = pneg %p161
      // Predicated region
      $region9: #{tpu_custom_call.1} parent=5 // pred_check
        _
      $region10: #{tpu_custom_call.1} parent=5 // pred_check_branch
        %164 = sbr.rel (%p161) target = $region12
      $region11: #{tpu_custom_call.1} parent=5 // pred_region
        %s165 = ssub.s32 %s15, 1
        // Predicated region
        $region13: #{tpu_custom_call.1} parent=11 // pred_check
          %p166 = pneg %p62
        $region14: #{tpu_custom_call.1} parent=11 // pred_check_branch
          %168 = sbr.rel (%p166) target = $region16
        $region15: #{tpu_custom_call.1} parent=11 // pred_region
          _
        $region16: #{tpu_custom_call.1} parent=11 // pred_fallthru
          _
        // Predicated region
        $region17: #{tpu_custom_call.1} parent=11 // pred_check
          %p169 = pneg %p83
        $region18: #{tpu_custom_call.1} parent=11 // pred_check_branch
          %171 = sbr.rel (%p169) target = $region20
        $region19: #{tpu_custom_call.1} parent=11 // pred_region
          %s173 = ssub.s32 9216, 9216
          %174 = vsyncadd [#allocation4], %s173
          %s175 = sshll.u32 [#allocation3], 4
          %s176 = int_to_ptr.vmem [resolvable:$true] %s175
          %181 = dma.hbm_to_vmem [thread:$0]  %s2, 9216, %s176, [#allocation4], 64, 64, 4
        $region20: #{tpu_custom_call.1} parent=11 // pred_fallthru
          _
        // Predicated region
        $region21: #{tpu_custom_call.1} parent=11 // pred_check
          %p182 = pneg %p104
        $region22: #{tpu_custom_call.1} parent=11 // pred_check_branch
          %184 = sbr.rel (%p182) target = $region24
        $region23: #{tpu_custom_call.1} parent=11 // pred_region
          _
        $region24: #{tpu_custom_call.1} parent=11 // pred_fallthru
          _
        // Predicated region
        $region25: #{tpu_custom_call.1} parent=11 // pred_check
          %p185 = pneg %p125
        $region26: #{tpu_custom_call.1} parent=11 // pred_check_branch
          %187 = sbr.rel (%p185) target = $region28
        $region27: #{tpu_custom_call.1} parent=11 // pred_region
          _
        $region28: #{tpu_custom_call.1} parent=11 // pred_fallthru
          _
      $region12: #{tpu_custom_call.1} parent=5 // pred_fallthru
        _
      %p188 = scmp.lt.s32.totalorder %s15, 2
      // Predicated region
      $region29: #{tpu_custom_call.1} parent=5 // pred_check
        %p189 = pneg %p188
      $region30: #{tpu_custom_call.1} parent=5 // pred_check_branch
        %191 = sbr.rel (%p189) target = $region32
      $region31: #{tpu_custom_call.1} parent=5 // pred_region
        // Predicated region
        $region33: #{tpu_custom_call.1} parent=31 // pred_check
          %p192 = pneg %p35
        $region34: #{tpu_custom_call.1} parent=31 // pred_check_branch
          %194 = sbr.rel (%p192) target = $region36
        $region35: #{tpu_custom_call.1} parent=31 // pred_region
          %p195 = scmp.lt.s32.totalorder %s15, 1
          %s196 = scalar_select %p195, %s15, 1
          %s197 = smul.addr %s196, 54
          %s198 = smul.addr %s197, 4
          %s199 = scalar_lea.vmem %s0, %s198
        $region36: #{tpu_custom_call.1} parent=31 // pred_fallthru
          _
      $region32: #{tpu_custom_call.1} parent=5 // pred_fallthru
        _
      %p200 = scmp.le.s32.totalorder 1, %s15
      %p201 = scmp.lt.s32.totalorder %s15, 3
      %p202 = pnand %p200, %p201
      %p203 = pneg %p202
      // Predicated region
      $region37: #{tpu_custom_call.1} parent=5 // pred_check
        _
      $region38: #{tpu_custom_call.1} parent=5 // pred_check_branch
        %205 = sbr.rel (%p202) target = $region40
      $region39: #{tpu_custom_call.1} parent=5 // pred_region
        %s206 = ssub.s32 %s15, 1
        // Predicated region
        $region41: #{tpu_custom_call.1} parent=39 // pred_check
          %p207 = pneg %p83
        $region42: #{tpu_custom_call.1} parent=39 // pred_check_branch
          %209 = sbr.rel (%p207) target = $region44
        $region43: #{tpu_custom_call.1} parent=39 // pred_region
          %210 = dma.done [#allocation4], 9216
        $region44: #{tpu_custom_call.1} parent=39 // pred_fallthru
          _
        %p211 = scmp.lt.s32.totalorder %s20, 1
        %s212 = scalar_select %p211, %s20, 1
        %s213 = smul.addr %s212, 54
        %s214 = smul.addr %s213, 4
        %s215 = scalar_lea.vmem %s0, %s214
        %p216 = pneg %p41
        %p217 = pneg %p38
        %p218 = pneg %p62
        %p219 = pneg %p59
        %p220 = pneg %p83
        %p221 = pneg %p80
        %p222 = pneg %p104
        %p223 = pneg %p101
        %p224 = pneg %p125
        %p225 = pneg %p122
        %p226 = pneg %p151
        %p227 = pneg %p148
        %s228 = sand.u32 %s138, 1
        %s229 = scalar_lea.sflag [#allocation5], %s228
        %s230 = sand.u32 %s138, 1
        %s231 = smul.addr %s230, 256
        %s232 = scalar_lea.vmem [#allocation6], %s231
        %p233 = scmp.lt.s32.totalorder %s20, 1
        %s234 = scalar_select %p233, %s20, 1
        %s235 = smul.addr %s234, 54
        %s236 = smul.addr %s235, 4
        %s237 = scalar_lea.vmem %s0, %s236
        %v239 = vld [vmem:[%s237] sm:$0xf]
        %v240 = vld [vmem:[%s237 + $0x4] sm:$0xf]
        %v241 = vld [vmem:[%s237 + $0x8] sm:$0x1]
        %v242 = vld [vmem:[%s237 + $0xc] sm:$0xf]
        %v243 = vld [vmem:[%s237 + $0x10] sm:$0xf]
        %v244 = vld [vmem:[%s237 + $0x14] sm:$0x1]
        %v245 = vld [vmem:[%s237 + $0x18] sm:$0xf]
        %v246 = vld [vmem:[%s237 + $0x1c] sm:$0xf]
        %v247 = vld [vmem:[%s237 + $0x20] sm:$0x1]
        %v248 = vld [vmem:[%s237 + $0x24] sm:$0xf]
        %v249 = vld [vmem:[%s237 + $0x28] sm:$0xf]
        %v250 = vld [vmem:[%s237 + $0x2c] sm:$0x1]
        %v251 = vld [vmem:[%s237 + $0x30] sm:$0xf]
        %v252 = vld [vmem:[%s237 + $0x34] sm:$0xf]
        %v253 = vld [vmem:[%s237 + $0x38] sm:$0x1]
        %v254 = vld [vmem:[%s237 + $0x3c] sm:$0xf]
        %v255 = vld [vmem:[%s237 + $0x40] sm:$0xf]
        %v256 = vld [vmem:[%s237 + $0x44] sm:$0x1]
        %v257 = vld [vmem:[%s237 + $0x48] sm:$0xf]
        %v258 = vld [vmem:[%s237 + $0x4c] sm:$0xf]
        %v259 = vld [vmem:[%s237 + $0x50] sm:$0x1]
        %v260 = vld [vmem:[%s237 + $0x54] sm:$0xf]
        %v261 = vld [vmem:[%s237 + $0x58] sm:$0xf]
        %v262 = vld [vmem:[%s237 + $0x5c] sm:$0x1]
        %v263 = vld [vmem:[%s237 + $0x60] sm:$0xf]
        %v264 = vld [vmem:[%s237 + $0x64] sm:$0xf]
        %v265 = vld [vmem:[%s237 + $0x68] sm:$0x1]
        %v266 = vld [vmem:[%s237 + $0x6c] sm:$0xf]
        %v267 = vld [vmem:[%s237 + $0x70] sm:$0xf]
        %v268 = vld [vmem:[%s237 + $0x74] sm:$0x1]
        %v269 = vld [vmem:[%s237 + $0x78] sm:$0xf]
        %v270 = vld [vmem:[%s237 + $0x7c] sm:$0xf]
        %v271 = vld [vmem:[%s237 + $0x80] sm:$0x1]
        %v272 = vld [vmem:[%s237 + $0x84] sm:$0xf]
        %v273 = vld [vmem:[%s237 + $0x88] sm:$0xf]
        %v274 = vld [vmem:[%s237 + $0x8c] sm:$0x1]
        %v275 = vld [vmem:[%s237 + $0x90] sm:$0xf]
        %v276 = vld [vmem:[%s237 + $0x94] sm:$0xf]
        %v277 = vld [vmem:[%s237 + $0x98] sm:$0x1]
        %v278 = vld [vmem:[%s237 + $0x9c] sm:$0xf]
        %v279 = vld [vmem:[%s237 + $0xa0] sm:$0xf]
        %v280 = vld [vmem:[%s237 + $0xa4] sm:$0x1]
        %v281 = vld [vmem:[%s237 + $0xa8] sm:$0xf]
        %v282 = vld [vmem:[%s237 + $0xac] sm:$0xf]
        %v283 = vld [vmem:[%s237 + $0xb0] sm:$0x1]
        %v284 = vld [vmem:[%s237 + $0xb4] sm:$0xf]
        %v285 = vld [vmem:[%s237 + $0xb8] sm:$0xf]
        %v286 = vld [vmem:[%s237 + $0xbc] sm:$0x1]
        %v287 = vld [vmem:[%s237 + $0xc0] sm:$0xf]
        %v288 = vld [vmem:[%s237 + $0xc4] sm:$0xf]
        %v289 = vld [vmem:[%s237 + $0xc8] sm:$0x1]
        %v290 = vld [vmem:[%s237 + $0xcc] sm:$0xf]
        %v291 = vld [vmem:[%s237 + $0xd0] sm:$0xf]
        %v292 = vld [vmem:[%s237 + $0xd4] sm:$0x1]
        %v329 = vunpack.c.l.b16 %v239
        %v330 = vunpack.c.l.b16 %v240
        %v331 = vunpack.c.l.b16 %v242
        %v332 = vunpack.c.l.b16 %v243
        %v333 = vunpack.c.l.b16 %v245
        %v334 = vunpack.c.l.b16 %v246
        %v335 = vunpack.c.l.b16 %v248
        %v336 = vunpack.c.l.b16 %v249
        %v337 = vunpack.c.l.b16 %v251
        %v338 = vunpack.c.l.b16 %v252
        %v339 = vunpack.c.l.b16 %v254
        %v340 = vunpack.c.l.b16 %v255
        %v341 = vunpack.c.l.b16 %v257
        %v342 = vunpack.c.l.b16 %v258
        %v343 = vunpack.c.l.b16 %v260
        %v344 = vunpack.c.l.b16 %v261
        %v345 = vunpack.c.l.b16 %v263
        %v346 = vunpack.c.l.b16 %v264
        %v347 = vunpack.c.l.b16 %v266
        %v348 = vunpack.c.l.b16 %v267
        %v349 = vunpack.c.l.b16 %v269
        %v350 = vunpack.c.l.b16 %v270
        %v351 = vunpack.c.l.b16 %v272
        %v352 = vunpack.c.l.b16 %v273
        %v353 = vunpack.c.l.b16 %v275
        %v354 = vunpack.c.l.b16 %v276
        %v355 = vunpack.c.l.b16 %v278
        %v356 = vunpack.c.l.b16 %v279
        %v357 = vunpack.c.l.b16 %v281
        %v358 = vunpack.c.l.b16 %v282
        %v359 = vunpack.c.l.b16 %v284
        %v360 = vunpack.c.l.b16 %v285
        %v361 = vunpack.c.l.b16 %v287
        %v362 = vunpack.c.l.b16 %v288
        %v363 = vunpack.c.l.b16 %v290
        %v364 = vunpack.c.l.b16 %v291
        %v365 = vpack.c.b16 %v330, %v329
        %v366 = vpack.c.b16 %v332, %v331
        %v367 = vpack.c.b16 %v334, %v333
        %v368 = vpack.c.b16 %v336, %v335
        %v369 = vpack.c.b16 %v338, %v337
        %v370 = vpack.c.b16 %v340, %v339
        %v371 = vpack.c.b16 %v342, %v341
        %v372 = vpack.c.b16 %v344, %v343
        %v373 = vpack.c.b16 %v346, %v345
        %v374 = vpack.c.b16 %v348, %v347
        %v375 = vpack.c.b16 %v350, %v349
        %v376 = vpack.c.b16 %v352, %v351
        %v377 = vpack.c.b16 %v354, %v353
        %v378 = vpack.c.b16 %v356, %v355
        %v379 = vpack.c.b16 %v358, %v357
        %v380 = vpack.c.b16 %v360, %v359
        %v381 = vpack.c.b16 %v362, %v361
        %v382 = vpack.c.b16 %v364, %v363
        %v419 = vunpack.c.l.b16 %v241
        %v420 = vunpack.c.l.b16 %v244
        %v421 = vunpack.c.l.b16 %v247
        %v422 = vunpack.c.l.b16 %v250
        %v423 = vunpack.c.l.b16 %v253
        %v424 = vunpack.c.l.b16 %v256
        %v425 = vunpack.c.l.b16 %v259
        %v426 = vunpack.c.l.b16 %v262
        %v427 = vunpack.c.l.b16 %v265
        %v428 = vunpack.c.l.b16 %v268
        %v429 = vunpack.c.l.b16 %v271
        %v430 = vunpack.c.l.b16 %v274
        %v431 = vunpack.c.l.b16 %v277
        %v432 = vunpack.c.l.b16 %v280
        %v433 = vunpack.c.l.b16 %v283
        %v434 = vunpack.c.l.b16 %v286
        %v435 = vunpack.c.l.b16 %v289
        %v436 = vunpack.c.l.b16 %v292
        %v437 = vpack.c.b16 %v419, %v419
        %v438 = vpack.c.b16 %v420, %v420
        %v439 = vpack.c.b16 %v421, %v421
        %v440 = vpack.c.b16 %v422, %v422
        %v441 = vpack.c.b16 %v423, %v423
        %v442 = vpack.c.b16 %v424, %v424
        %v443 = vpack.c.b16 %v425, %v425
        %v444 = vpack.c.b16 %v426, %v426
        %v445 = vpack.c.b16 %v427, %v427
        %v446 = vpack.c.b16 %v428, %v428
        %v447 = vpack.c.b16 %v429, %v429
        %v448 = vpack.c.b16 %v430, %v430
        %v449 = vpack.c.b16 %v431, %v431
        %v450 = vpack.c.b16 %v432, %v432
        %v451 = vpack.c.b16 %v433, %v433
        %v452 = vpack.c.b16 %v434, %v434
        %v453 = vpack.c.b16 %v435, %v435
        %v454 = vpack.c.b16 %v436, %v436
        %vm455 = vsmask.f32 7424
        %v457 = vshrl.u32 %v365, 16
        %v459 = vshll.u32 %v365, 16
        %v461 = vrot.slane %v459, 1
        %v462 = vor.u32 %v457, %v461
        %v464 = vshll.u32 %v437, 16
        %v466 = vrot.slane %v464, 1
        %v467 = vsel %vm455, %v462, %v466
        %v469 = vshrl.u32 %v366, 16
        %v471 = vshll.u32 %v366, 16
        %v473 = vrot.slane %v471, 1
        %v474 = vor.u32 %v469, %v473
        %v476 = vshll.u32 %v438, 16
        %v478 = vrot.slane %v476, 1
        %v479 = vsel %vm455, %v474, %v478
        %v481 = vshrl.u32 %v367, 16
        %v483 = vshll.u32 %v367, 16
        %v485 = vrot.slane %v483, 1
        %v486 = vor.u32 %v481, %v485
        %v488 = vshll.u32 %v439, 16
        %v490 = vrot.slane %v488, 1
        %v491 = vsel %vm455, %v486, %v490
        %v493 = vshrl.u32 %v368, 16
        %v495 = vshll.u32 %v368, 16
        %v497 = vrot.slane %v495, 1
        %v498 = vor.u32 %v493, %v497
        %v500 = vshll.u32 %v440, 16
        %v502 = vrot.slane %v500, 1
        %v503 = vsel %vm455, %v498, %v502
        %v505 = vshrl.u32 %v369, 16
        %v507 = vshll.u32 %v369, 16
        %v509 = vrot.slane %v507, 1
        %v510 = vor.u32 %v505, %v509
        %v512 = vshll.u32 %v441, 16
        %v514 = vrot.slane %v512, 1
        %v515 = vsel %vm455, %v510, %v514
        %v517 = vshrl.u32 %v370, 16
        %v519 = vshll.u32 %v370, 16
        %v521 = vrot.slane %v519, 1
        %v522 = vor.u32 %v517, %v521
        %v524 = vshll.u32 %v442, 16
        %v526 = vrot.slane %v524, 1
        %v527 = vsel %vm455, %v522, %v526
        %v529 = vshrl.u32 %v371, 16
        %v531 = vshll.u32 %v371, 16
        %v533 = vrot.slane %v531, 1
        %v534 = vor.u32 %v529, %v533
        %v536 = vshll.u32 %v443, 16
        %v538 = vrot.slane %v536, 1
        %v539 = vsel %vm455, %v534, %v538
        %v541 = vshrl.u32 %v372, 16
        %v543 = vshll.u32 %v372, 16
        %v545 = vrot.slane %v543, 1
        %v546 = vor.u32 %v541, %v545
        %v548 = vshll.u32 %v444, 16
        %v550 = vrot.slane %v548, 1
        %v551 = vsel %vm455, %v546, %v550
        %v553 = vshrl.u32 %v373, 16
        %v555 = vshll.u32 %v373, 16
        %v557 = vrot.slane %v555, 1
        %v558 = vor.u32 %v553, %v557
        %v560 = vshll.u32 %v445, 16
        %v562 = vrot.slane %v560, 1
        %v563 = vsel %vm455, %v558, %v562
        %v565 = vshrl.u32 %v374, 16
        %v567 = vshll.u32 %v374, 16
        %v569 = vrot.slane %v567, 1
        %v570 = vor.u32 %v565, %v569
        %v572 = vshll.u32 %v446, 16
        %v574 = vrot.slane %v572, 1
        %v575 = vsel %vm455, %v570, %v574
        %v577 = vshrl.u32 %v375, 16
        %v579 = vshll.u32 %v375, 16
        %v581 = vrot.slane %v579, 1
        %v582 = vor.u32 %v577, %v581
        %v584 = vshll.u32 %v447, 16
        %v586 = vrot.slane %v584, 1
        %v587 = vsel %vm455, %v582, %v586
        %v589 = vshrl.u32 %v376, 16
        %v591 = vshll.u32 %v376, 16
        %v593 = vrot.slane %v591, 1
        %v594 = vor.u32 %v589, %v593
        %v596 = vshll.u32 %v448, 16
        %v598 = vrot.slane %v596, 1
        %v599 = vsel %vm455, %v594, %v598
        %v601 = vshrl.u32 %v377, 16
        %v603 = vshll.u32 %v377, 16
        %v605 = vrot.slane %v603, 1
        %v606 = vor.u32 %v601, %v605
        %v608 = vshll.u32 %v449, 16
        %v610 = vrot.slane %v608, 1
        %v611 = vsel %vm455, %v606, %v610
        %v613 = vshrl.u32 %v378, 16
        %v615 = vshll.u32 %v378, 16
        %v617 = vrot.slane %v615, 1
        %v618 = vor.u32 %v613, %v617
        %v620 = vshll.u32 %v450, 16
        %v622 = vrot.slane %v620, 1
        %v623 = vsel %vm455, %v618, %v622
        %v625 = vshrl.u32 %v379, 16
        %v627 = vshll.u32 %v379, 16
        %v629 = vrot.slane %v627, 1
        %v630 = vor.u32 %v625, %v629
        %v632 = vshll.u32 %v451, 16
        %v634 = vrot.slane %v632, 1
        %v635 = vsel %vm455, %v630, %v634
        %v637 = vshrl.u32 %v380, 16
        %v639 = vshll.u32 %v380, 16
        %v641 = vrot.slane %v639, 1
        %v642 = vor.u32 %v637, %v641
        %v644 = vshll.u32 %v452, 16
        %v646 = vrot.slane %v644, 1
        %v647 = vsel %vm455, %v642, %v646
        %v649 = vshrl.u32 %v381, 16
        %v651 = vshll.u32 %v381, 16
        %v653 = vrot.slane %v651, 1
        %v654 = vor.u32 %v649, %v653
        %v656 = vshll.u32 %v453, 16
        %v658 = vrot.slane %v656, 1
        %v659 = vsel %vm455, %v654, %v658
        %v661 = vshrl.u32 %v382, 16
        %v663 = vshll.u32 %v382, 16
        %v665 = vrot.slane %v663, 1
        %v666 = vor.u32 %v661, %v665
        %v668 = vshll.u32 %v454, 16
        %v670 = vrot.slane %v668, 1
        %v671 = vsel %vm455, %v666, %v670
        %vm690 = vcmask 1046528
        %v691 = vrot.slane %v365, 1
        %v692 = vrot.slane %v437, 1
        %v693 = vsel %vm690, %v691, %v692
        %v694 = vrot.slane %v366, 1
        %v695 = vrot.slane %v438, 1
        %v696 = vsel %vm690, %v694, %v695
        %v697 = vrot.slane %v367, 1
        %v698 = vrot.slane %v439, 1
        %v699 = vsel %vm690, %v697, %v698
        %v700 = vrot.slane %v368, 1
        %v701 = vrot.slane %v440, 1
        %v702 = vsel %vm690, %v700, %v701
        %v703 = vrot.slane %v369, 1
        %v704 = vrot.slane %v441, 1
        %v705 = vsel %vm690, %v703, %v704
        %v706 = vrot.slane %v370, 1
        %v707 = vrot.slane %v442, 1
        %v708 = vsel %vm690, %v706, %v707
        %v709 = vrot.slane %v371, 1
        %v710 = vrot.slane %v443, 1
        %v711 = vsel %vm690, %v709, %v710
        %v712 = vrot.slane %v372, 1
        %v713 = vrot.slane %v444, 1
        %v714 = vsel %vm690, %v712, %v713
        %v715 = vrot.slane %v373, 1
        %v716 = vrot.slane %v445, 1
        %v717 = vsel %vm690, %v715, %v716
        %v718 = vrot.slane %v374, 1
        %v719 = vrot.slane %v446, 1
        %v720 = vsel %vm690, %v718, %v719
        %v721 = vrot.slane %v375, 1
        %v722 = vrot.slane %v447, 1
        %v723 = vsel %vm690, %v721, %v722
        %v724 = vrot.slane %v376, 1
        %v725 = vrot.slane %v448, 1
        %v726 = vsel %vm690, %v724, %v725
        %v727 = vrot.slane %v377, 1
        %v728 = vrot.slane %v449, 1
        %v729 = vsel %vm690, %v727, %v728
        %v730 = vrot.slane %v378, 1
        %v731 = vrot.slane %v450, 1
        %v732 = vsel %vm690, %v730, %v731
        %v733 = vrot.slane %v379, 1
        %v734 = vrot.slane %v451, 1
        %v735 = vsel %vm690, %v733, %v734
        %v736 = vrot.slane %v380, 1
        %v737 = vrot.slane %v452, 1
        %v738 = vsel %vm690, %v736, %v737
        %v739 = vrot.slane %v381, 1
        %v740 = vrot.slane %v453, 1
        %v741 = vsel %vm690, %v739, %v740
        %v742 = vrot.slane %v382, 1
        %v743 = vrot.slane %v454, 1
        %v744 = vsel %vm690, %v742, %v743
        %v763 = vld [vmem:[%s1] sm:$0xf]
        %v764 = vld [vmem:[%s1 + $0x4] sm:$0xf]
        %v765 = vld [vmem:[%s1 + $0x8] sm:$0xf]
        %v766 = vld [vmem:[%s1 + $0xc] sm:$0xf]
        %v767 = vld [vmem:[%s1 + $0x10] sm:$0xf]
        %v768 = vld [vmem:[%s1 + $0x14] sm:$0xf]
        %v769 = vld [vmem:[%s1 + $0x18] sm:$0xf]
        %v770 = vld [vmem:[%s1 + $0x1c] sm:$0xf]
        %v771 = vld [vmem:[%s1 + $0x20] sm:$0xf]
        %v772 = vld [vmem:[%s1 + $0x24] sm:$0xf]
        %v773 = vld [vmem:[%s1 + $0x28] sm:$0xf]
        %v774 = vld [vmem:[%s1 + $0x2c] sm:$0xf]
        %v775 = vld [vmem:[%s1 + $0x30] sm:$0xf]
        %v776 = vld [vmem:[%s1 + $0x34] sm:$0xf]
        %v777 = vld [vmem:[%s1 + $0x38] sm:$0xf]
        %v778 = vld [vmem:[%s1 + $0x3c] sm:$0xf]
        %v779 = vld [vmem:[%s1 + $0x40] sm:$0xf]
        %v780 = vld [vmem:[%s1 + $0x44] sm:$0xf]
        %v781 = vld [vmem:[%s1 + $0x48] sm:$0xf]
        %v782 = vld [vmem:[%s1 + $0x4c] sm:$0xf]
        %v783 = vld [vmem:[%s1 + $0x50] sm:$0xf]
        %v784 = vld [vmem:[%s1 + $0x54] sm:$0xf]
        %v785 = vld [vmem:[%s1 + $0x58] sm:$0xf]
        %v786 = vld [vmem:[%s1 + $0x5c] sm:$0xf]
        %v787 = vld [vmem:[%s1 + $0x60] sm:$0xf]
        %v788 = vld [vmem:[%s1 + $0x64] sm:$0xf]
        %v789 = vld [vmem:[%s1 + $0x68] sm:$0xf]
        %v790 = vld [vmem:[%s1 + $0x6c] sm:$0xf]
        %v791 = vld [vmem:[%s1 + $0x70] sm:$0xf]
        %v792 = vld [vmem:[%s1 + $0x74] sm:$0xf]
        %v793 = vld [vmem:[%s1 + $0x78] sm:$0xf]
        %v794 = vld [vmem:[%s1 + $0x7c] sm:$0xf]
        %v795 = vld [vmem:[%s1 + $0x80] sm:$0xf]
        %v796 = vld [vmem:[%s1 + $0x84] sm:$0xf]
        %v797 = vld [vmem:[%s1 + $0x88] sm:$0xf]
        %v798 = vld [vmem:[%s1 + $0x8c] sm:$0xf]
        %v799 = vld [vmem:[%s1 + $0x90] sm:$0xf]
        %v800 = vld [vmem:[%s1 + $0x94] sm:$0xf]
        %v801 = vld [vmem:[%s1 + $0x98] sm:$0xf]
        %v802 = vld [vmem:[%s1 + $0x9c] sm:$0xf]
        %v803 = vld [vmem:[%s1 + $0xa0] sm:$0xf]
        %v804 = vld [vmem:[%s1 + $0xa4] sm:$0xf]
        %v805 = vld [vmem:[%s1 + $0xa8] sm:$0xf]
        %v806 = vld [vmem:[%s1 + $0xac] sm:$0xf]
        %v807 = vld [vmem:[%s1 + $0xb0] sm:$0xf]
        %v808 = vld [vmem:[%s1 + $0xb4] sm:$0xf]
        %v809 = vld [vmem:[%s1 + $0xb8] sm:$0xf]
        %v810 = vld [vmem:[%s1 + $0xbc] sm:$0xf]
        %s811 = scalar_lea.vmem %s1, 192
        %v812 = vld [vmem:[%s811] sm:$0xf]
        %v813 = vld [vmem:[%s811 + $0x4] sm:$0xf]
        %v814 = vld [vmem:[%s811 + $0x8] sm:$0xf]
        %v815 = vld [vmem:[%s811 + $0xc] sm:$0xf]
        %v816 = vld [vmem:[%s811 + $0x10] sm:$0xf]
        %v817 = vld [vmem:[%s811 + $0x14] sm:$0xf]
        %v818 = vld [vmem:[%s811 + $0x18] sm:$0xf]
        %v819 = vld [vmem:[%s811 + $0x1c] sm:$0xf]
        %v820 = vld [vmem:[%s811 + $0x20] sm:$0xf]
        %v821 = vld [vmem:[%s811 + $0x24] sm:$0xf]
        %v822 = vld [vmem:[%s811 + $0x28] sm:$0xf]
        %v823 = vld [vmem:[%s811 + $0x2c] sm:$0xf]
        %v824 = vld [vmem:[%s811 + $0x30] sm:$0xf]
        %v825 = vld [vmem:[%s811 + $0x34] sm:$0xf]
        %v826 = vld [vmem:[%s811 + $0x38] sm:$0xf]
        %v827 = vld [vmem:[%s811 + $0x3c] sm:$0xf]
        %v828 = vld [vmem:[%s811 + $0x40] sm:$0xf]
        %v829 = vld [vmem:[%s811 + $0x44] sm:$0xf]
        %v830 = vld [vmem:[%s811 + $0x48] sm:$0xf]
        %v831 = vld [vmem:[%s811 + $0x4c] sm:$0xf]
        %v832 = vld [vmem:[%s811 + $0x50] sm:$0xf]
        %v833 = vld [vmem:[%s811 + $0x54] sm:$0xf]
        %v834 = vld [vmem:[%s811 + $0x58] sm:$0xf]
        %v835 = vld [vmem:[%s811 + $0x5c] sm:$0xf]
        %v836 = vld [vmem:[%s811 + $0x60] sm:$0xf]
        %v837 = vld [vmem:[%s811 + $0x64] sm:$0xf]
        %v838 = vld [vmem:[%s811 + $0x68] sm:$0xf]
        %v839 = vld [vmem:[%s811 + $0x6c] sm:$0xf]
        %v840 = vld [vmem:[%s811 + $0x70] sm:$0xf]
        %v841 = vld [vmem:[%s811 + $0x74] sm:$0xf]
        %v842 = vld [vmem:[%s811 + $0x78] sm:$0xf]
        %v843 = vld [vmem:[%s811 + $0x7c] sm:$0xf]
        %v844 = vld [vmem:[%s811 + $0x80] sm:$0xf]
        %v845 = vld [vmem:[%s811 + $0x84] sm:$0xf]
        %v846 = vld [vmem:[%s811 + $0x88] sm:$0xf]
        %v847 = vld [vmem:[%s811 + $0x8c] sm:$0xf]
        %v848 = vld [vmem:[%s811 + $0x90] sm:$0xf]
        %v849 = vld [vmem:[%s811 + $0x94] sm:$0xf]
        %v850 = vld [vmem:[%s811 + $0x98] sm:$0xf]
        %v851 = vld [vmem:[%s811 + $0x9c] sm:$0xf]
        %v852 = vld [vmem:[%s811 + $0xa0] sm:$0xf]
        %v853 = vld [vmem:[%s811 + $0xa4] sm:$0xf]
        %v854 = vld [vmem:[%s811 + $0xa8] sm:$0xf]
        %v855 = vld [vmem:[%s811 + $0xac] sm:$0xf]
        %v856 = vld [vmem:[%s811 + $0xb0] sm:$0xf]
        %v857 = vld [vmem:[%s811 + $0xb4] sm:$0xf]
        %v858 = vld [vmem:[%s811 + $0xb8] sm:$0xf]
        %v859 = vld [vmem:[%s811 + $0xbc] sm:$0xf]
        %v908 = vunpack.c.l.b16 %v812
        %v909 = vunpack.c.l.b16 %v813
        %v910 = vunpack.c.l.b16 %v814
        %v911 = vunpack.c.l.b16 %v815
        %v912 = vunpack.c.l.b16 %v816
        %v913 = vunpack.c.l.b16 %v817
        %v914 = vunpack.c.l.b16 %v818
        %v915 = vunpack.c.l.b16 %v819
        %v916 = vunpack.c.l.b16 %v820
        %v917 = vunpack.c.l.b16 %v821
        %v918 = vunpack.c.l.b16 %v822
        %v919 = vunpack.c.l.b16 %v823
        %v920 = vunpack.c.l.b16 %v824
        %v921 = vunpack.c.l.b16 %v825
        %v922 = vunpack.c.l.b16 %v826
        %v923 = vunpack.c.l.b16 %v827
        %v924 = vunpack.c.l.b16 %v828
        %v925 = vunpack.c.l.b16 %v829
        %v926 = vunpack.c.l.b16 %v830
        %v927 = vunpack.c.l.b16 %v831
        %v928 = vunpack.c.l.b16 %v832
        %v929 = vunpack.c.l.b16 %v833
        %v930 = vunpack.c.l.b16 %v834
        %v931 = vunpack.c.l.b16 %v835
        %v932 = vunpack.c.l.b16 %v836
        %v933 = vunpack.c.l.b16 %v837
        %v934 = vunpack.c.l.b16 %v838
        %v935 = vunpack.c.l.b16 %v839
        %v936 = vunpack.c.l.b16 %v840
        %v937 = vunpack.c.l.b16 %v841
        %v938 = vunpack.c.l.b16 %v842
        %v939 = vunpack.c.l.b16 %v843
        %v940 = vunpack.c.l.b16 %v844
        %v941 = vunpack.c.l.b16 %v845
        %v942 = vunpack.c.l.b16 %v846
        %v943 = vunpack.c.l.b16 %v847
        %v944 = vunpack.c.l.b16 %v848
        %v945 = vunpack.c.l.b16 %v849
        %v946 = vunpack.c.l.b16 %v850
        %v947 = vunpack.c.l.b16 %v851
        %v948 = vunpack.c.l.b16 %v852
        %v949 = vunpack.c.l.b16 %v853
        %v950 = vunpack.c.l.b16 %v854
        %v951 = vunpack.c.l.b16 %v855
        %v952 = vunpack.c.l.b16 %v856
        %v953 = vunpack.c.l.b16 %v857
        %v954 = vunpack.c.l.b16 %v858
        %v955 = vunpack.c.l.b16 %v859
        %v956 = vpack.c.b16 %v909, %v908
        %v957 = vpack.c.b16 %v911, %v910
        %v958 = vpack.c.b16 %v913, %v912
        %v959 = vpack.c.b16 %v915, %v914
        %v960 = vpack.c.b16 %v917, %v916
        %v961 = vpack.c.b16 %v919, %v918
        %v962 = vpack.c.b16 %v921, %v920
        %v963 = vpack.c.b16 %v923, %v922
        %v964 = vpack.c.b16 %v925, %v924
        %v965 = vpack.c.b16 %v927, %v926
        %v966 = vpack.c.b16 %v929, %v928
        %v967 = vpack.c.b16 %v931, %v930
        %v968 = vpack.c.b16 %v933, %v932
        %v969 = vpack.c.b16 %v935, %v934
        %v970 = vpack.c.b16 %v937, %v936
        %v971 = vpack.c.b16 %v939, %v938
        %v972 = vpack.c.b16 %v941, %v940
        %v973 = vpack.c.b16 %v943, %v942
        %v974 = vpack.c.b16 %v945, %v944
        %v975 = vpack.c.b16 %v947, %v946
        %v976 = vpack.c.b16 %v949, %v948
        %v977 = vpack.c.b16 %v951, %v950
        %v978 = vpack.c.b16 %v953, %v952
        %v979 = vpack.c.b16 %v955, %v954
        %1004 = vmatprep.subr.bf16.mxu0 0
        %1005 = vmatpush1.bf16.msra.mxu0 %v956
        %1006 = vmatprep.subr.bf16.mxu0 0
        %1007 = vmatpush1.bf16.msra.mxu0 %v957
        %1008 = vmatprep.subr.bf16.mxu0 0
        %1009 = vmatpush1.bf16.msra.mxu0 %v958
        %1010 = vmatprep.subr.bf16.mxu0 0
        %1011 = vmatpush1.bf16.msra.mxu0 %v959
        %1012 = vmatprep.subr.bf16.mxu0 0
        %1013 = vmatpush1.bf16.msra.mxu0 %v960
        %1014 = vmatprep.subr.bf16.mxu0 0
        %1015 = vmatpush1.bf16.msra.mxu0 %v961
        %1016 = vmatprep.subr.bf16.mxu0 0
        %1017 = vmatpush1.bf16.msra.mxu0 %v962
        %1018 = vmatprep.subr.bf16.mxu0 0
        %1019 = vmatpush1.bf16.msra.mxu0 %v963
        %1020 = vmatprep.subr.bf16.mxu0 0
        %1021 = vmatpush1.bf16.msra.mxu0 %v964
        %1022 = vmatprep.subr.bf16.mxu0 0
        %1023 = vmatpush1.bf16.msra.mxu0 %v965
        %1024 = vmatprep.subr.bf16.mxu0 0
        %1025 = vmatpush1.bf16.msra.mxu0 %v966
        %1026 = vmatprep.subr.bf16.mxu0 0
        %1027 = vmatpush1.bf16.msra.mxu0 %v967
        %1028 = vmatprep.subr.bf16.mxu0 0
        %1029 = vmatpush1.bf16.msra.mxu0 %v968
        %1030 = vmatprep.subr.bf16.mxu0 0
        %1031 = vmatpush1.bf16.msra.mxu0 %v969
        %1032 = vmatprep.subr.bf16.mxu0 0
        %1033 = vmatpush1.bf16.msra.mxu0 %v970
        %1034 = vmatprep.subr.bf16.mxu0 0
        %1035 = vmatpush1.bf16.msra.mxu0 %v971
        %1036 = vmatprep.mubr.bf16.mxu0 %v479
        %1037 = vmatmul.mubr.bf16.gmra.mrb[0].mxu0 %v366
        %v1038 = vpop.f32.mrb[0].mxu0
        %v1039 = vadd.f32 0.0, %v1038
        %v1040 = vpop.f32.mrb[0].mxu0
        %v1041 = vpop.f32.mrb[0].mxu0
        %v1042 = vadd.f32 0.0, %v1041
        %v1043 = vpop.f32.mrb[0].mxu0
        %1044 = vmatprep.mubr.bf16.mxu0 %v491
        %1045 = vmatmul.mubr.bf16.gmra.mrb[0].mxu0 %v367
        %v1046 = vpop.f32.mrb[0].mxu0
        %v1047 = vadd.f32 0.0, %v1046
        %v1048 = vpop.f32.mrb[0].mxu0
        %v1049 = vpop.f32.mrb[0].mxu0
        %v1050 = vadd.f32 0.0, %v1049
        %v1051 = vpop.f32.mrb[0].mxu0
        %1052 = vmatprep.mubr.bf16.mxu0 %v503
        %1053 = vmatmul.mubr.bf16.gmra.mrb[0].mxu0 %v368
        %v1054 = vpop.f32.mrb[0].mxu0
        %v1055 = vadd.f32 0.0, %v1054
        %v1056 = vpop.f32.mrb[0].mxu0
        %v1057 = vpop.f32.mrb[0].mxu0
        %v1058 = vadd.f32 0.0, %v1057
        %v1059 = vpop.f32.mrb[0].mxu0
        %1060 = vmatprep.mubr.bf16.mxu0 %v515
        %1061 = vmatmul.mubr.bf16.gmra.mrb[0].mxu0 %v369
        %v1062 = vpop.f32.mrb[0].mxu0
        %v1063 = vadd.f32 0.0, %v1062
        %v1064 = vpop.f32.mrb[0].mxu0
        %v1065 = vpop.f32.mrb[0].mxu0
        %v1066 = vadd.f32 0.0, %v1065
        %v1067 = vpop.f32.mrb[0].mxu0
        %1068 = vmatprep.mubr.bf16.mxu0 %v527
        %1069 = vmatmul.mubr.bf16.gmra.mrb[0].mxu0 %v370
        %v1070 = vpop.f32.mrb[0].mxu0
        %v1071 = vadd.f32 0.0, %v1070
        %v1072 = vpop.f32.mrb[0].mxu0
        %v1073 = vpop.f32.mrb[0].mxu0
        %v1074 = vadd.f32 0.0, %v1073
        %v1075 = vpop.f32.mrb[0].mxu0
        %1076 = vmatprep.mubr.bf16.mxu0 %v539
        %1077 = vmatmul.mubr.bf16.gmra.mrb[0].mxu0 %v371
        %v1078 = vpop.f32.mrb[0].mxu0
        %v1079 = vadd.f32 0.0, %v1078
        %v1080 = vpop.f32.mrb[0].mxu0
        %v1081 = vpop.f32.mrb[0].mxu0
        %v1082 = vadd.f32 0.0, %v1081
        %v1083 = vpop.f32.mrb[0].mxu0
        %1084 = vmatprep.mubr.bf16.mxu0 %v551
        %1085 = vmatmul.mubr.bf16.gmra.mrb[0].mxu0 %v372
        %v1086 = vpop.f32.mrb[0].mxu0
        %v1087 = vadd.f32 0.0, %v1086
        %v1088 = vpop.f32.mrb[0].mxu0
        %v1089 = vpop.f32.mrb[0].mxu0
        %v1090 = vadd.f32 0.0, %v1089
        %v1091 = vpop.f32.mrb[0].mxu0
        %1092 = vmatprep.mubr.bf16.mxu0 %v563
        %1093 = vmatmul.mubr.bf16.gmra.mrb[0].mxu0 %v373
        %v1094 = vpop.f32.mrb[0].mxu0
        %v1095 = vadd.f32 0.0, %v1094
        %v1096 = vpop.f32.mrb[0].mxu0
        %v1097 = vpop.f32.mrb[0].mxu0
        %v1098 = vadd.f32 0.0, %v1097
        %v1099 = vpop.f32.mrb[0].mxu0
        %1100 = vmatprep.mubr.bf16.mxu0 %v575
        %1101 = vmatmul.mubr.bf16.gmra.mrb[0].mxu0 %v374
        %v1102 = vpop.f32.mrb[0].mxu0
        %v1103 = vadd.f32 0.0, %v1102
        %v1104 = vpop.f32.mrb[0].mxu0
        %v1105 = vpop.f32.mrb[0].mxu0
        %v1106 = vadd.f32 0.0, %v1105
        %v1107 = vpop.f32.mrb[0].mxu0
        %1108 = vmatprep.mubr.bf16.mxu0 %v587
        %1109 = vmatmul.mubr.bf16.gmra.mrb[0].mxu0 %v375
        %v1110 = vpop.f32.mrb[0].mxu0
        %v1111 = vadd.f32 0.0, %v1110
        %v1112 = vpop.f32.mrb[0].mxu0
        %v1113 = vpop.f32.mrb[0].mxu0
        %v1114 = vadd.f32 0.0, %v1113
        %v1115 = vpop.f32.mrb[0].mxu0
        %1116 = vmatprep.mubr.bf16.mxu0 %v599
        %1117 = vmatmul.mubr.bf16.gmra.mrb[0].mxu0 %v376
        %v1118 = vpop.f32.mrb[0].mxu0
        %v1119 = vadd.f32 0.0, %v1118
        %v1120 = vpop.f32.mrb[0].mxu0
        %v1121 = vpop.f32.mrb[0].mxu0
        %v1122 = vadd.f32 0.0, %v1121
        %v1123 = vpop.f32.mrb[0].mxu0
        %1124 = vmatprep.mubr.bf16.mxu0 %v611
        %1125 = vmatmul.mubr.bf16.gmra.mrb[0].mxu0 %v377
        %v1126 = vpop.f32.mrb[0].mxu0
        %v1127 = vadd.f32 0.0, %v1126
        %v1128 = vpop.f32.mrb[0].mxu0
        %v1129 = vpop.f32.mrb[0].mxu0
        %v1130 = vadd.f32 0.0, %v1129
        %v1131 = vpop.f32.mrb[0].mxu0
        %1132 = vmatprep.mubr.bf16.mxu0 %v623
        %1133 = vmatmul.mubr.bf16.gmra.mrb[0].mxu0 %v378
        %v1134 = vpop.f32.mrb[0].mxu0
        %v1135 = vadd.f32 0.0, %v1134
        %v1136 = vpop.f32.mrb[0].mxu0
        %v1137 = vpop.f32.mrb[0].mxu0
        %v1138 = vadd.f32 0.0, %v1137
        %v1139 = vpop.f32.mrb[0].mxu0
        %1140 = vmatprep.mubr.bf16.mxu0 %v635
        %1141 = vmatmul.mubr.bf16.gmra.mrb[0].mxu0 %v379
        %v1142 = vpop.f32.mrb[0].mxu0
        %v1143 = vadd.f32 0.0, %v1142
        %v1144 = vpop.f32.mrb[0].mxu0
        %v1145 = vpop.f32.mrb[0].mxu0
        %v1146 = vadd.f32 0.0, %v1145
        %v1147 = vpop.f32.mrb[0].mxu0
        %1148 = vmatprep.mubr.bf16.mxu0 %v647
        %1149 = vmatmul.mubr.bf16.gmra.mrb[0].mxu0 %v380
        %v1150 = vpop.f32.mrb[0].mxu0
        %v1151 = vadd.f32 0.0, %v1150
        %v1152 = vpop.f32.mrb[0].mxu0
        %v1153 = vpop.f32.mrb[0].mxu0
        %v1154 = vadd.f32 0.0, %v1153
        %v1155 = vpop.f32.mrb[0].mxu0
        %1156 = vmatprep.mubr.bf16.mxu0 %v659
        %1157 = vmatmul.mubr.bf16.gmra.mrb[0].mxu0 %v381
        %v1158 = vpop.f32.mrb[0].mxu0
        %v1159 = vadd.f32 0.0, %v1158
        %v1160 = vpop.f32.mrb[0].mxu0
        %v1161 = vpop.f32.mrb[0].mxu0
        %v1162 = vadd.f32 0.0, %v1161
        %v1163 = vpop.f32.mrb[0].mxu0
        %1164 = vdwg.mxu0
        %1165 = vmatprep.subr.bf16.mxu0 0
        %1166 = vmatpush1.bf16.msra.mxu0 %v972
        %1167 = vmatprep.subr.bf16.mxu0 0
        %1168 = vmatpush1.bf16.msra.mxu0 %v973
        %1169 = vmatprep.subr.bf16.mxu0 0
        %1170 = vmatpush1.bf16.msra.mxu0 %v974
        %1171 = vmatprep.subr.bf16.mxu0 0
        %1172 = vmatpush1.bf16.msra.mxu0 %v975
        %1173 = vmatprep.subr.bf16.mxu0 0
        %1174 = vmatpush1.bf16.msra.mxu0 %v976
        %1175 = vmatprep.subr.bf16.mxu0 0
        %1176 = vmatpush1.bf16.msra.mxu0 %v977
        %1177 = vmatprep.subr.bf16.mxu0 0
        %1178 = vmatpush1.bf16.msra.mxu0 %v978
        %1179 = vmatprep.subr.bf16.mxu0 0
        %1180 = vmatpush1.bf16.msra.mxu0 %v979
        %1181 = vmatprep.subr.bf16.mxu0 0
        %1182 = vmatpush1.bf16.msra.mxu0 0
        %1183 = vmatprep.subr.bf16.mxu0 0
        %1184 = vmatpush1.bf16.msra.mxu0 0
        %1185 = vmatprep.subr.bf16.mxu0 0
        %1186 = vmatpush1.bf16.msra.mxu0 0
        %1187 = vmatprep.subr.bf16.mxu0 0
        %1188 = vmatpush1.bf16.msra.mxu0 0
        %1189 = vmatprep.subr.bf16.mxu0 0
        %1190 = vmatpush1.bf16.msra.mxu0 0
        %1191 = vmatprep.subr.bf16.mxu0 0
        %1192 = vmatpush1.bf16.msra.mxu0 0
        %1193 = vmatprep.subr.bf16.mxu0 0
        %1194 = vmatpush1.bf16.msra.mxu0 0
        %1195 = vmatprep.subr.bf16.mxu0 0
        %1196 = vmatpush1.bf16.msra.mxu0 0
        %1197 = vmatprep.mubr.bf16.mxu0 0
        %1198 = vmatmul.mubr.bf16.gmra.mrb[0].mxu0 %v696
        %v1199 = vpop.f32.mrb[0].mxu0
        %v1200 = vadd.f32 %v1039, %v1199
        %v1201 = vpop.f32.mrb[0].mxu0
        %v1202 = vpop.f32.mrb[0].mxu0
        %v1203 = vadd.f32 %v1042, %v1202
        %v1204 = vpop.f32.mrb[0].mxu0
        %1205 = vmatprep.mubr.bf16.mxu0 0
        %1206 = vmatmul.mubr.bf16.gmra.mrb[0].mxu0 %v699
        %v1207 = vpop.f32.mrb[0].mxu0
        %v1208 = vadd.f32 %v1047, %v1207
        %v1209 = vpop.f32.mrb[0].mxu0
        %v1210 = vpop.f32.mrb[0].mxu0
        %v1211 = vadd.f32 %v1050, %v1210
        %v1212 = vpop.f32.mrb[0].mxu0
        %1213 = vmatprep.mubr.bf16.mxu0 0
        %1214 = vmatmul.mubr.bf16.gmra.mrb[0].mxu0 %v702
        %v1215 = vpop.f32.mrb[0].mxu0
        %v1216 = vadd.f32 %v1055, %v1215
        %v1217 = vpop.f32.mrb[0].mxu0
        %v1218 = vpop.f32.mrb[0].mxu0
        %v1219 = vadd.f32 %v1058, %v1218
        %v1220 = vpop.f32.mrb[0].mxu0
        %1221 = vmatprep.mubr.bf16.mxu0 0
        %1222 = vmatmul.mubr.bf16.gmra.mrb[0].mxu0 %v705
        %v1223 = vpop.f32.mrb[0].mxu0
        %v1224 = vadd.f32 %v1063, %v1223
        %v1225 = vpop.f32.mrb[0].mxu0
        %v1226 = vpop.f32.mrb[0].mxu0
        %v1227 = vadd.f32 %v1066, %v1226
        %v1228 = vpop.f32.mrb[0].mxu0
        %1229 = vmatprep.mubr.bf16.mxu0 0
        %1230 = vmatmul.mubr.bf16.gmra.mrb[0].mxu0 %v708
        %v1231 = vpop.f32.mrb[0].mxu0
        %v1232 = vadd.f32 %v1071, %v1231
        %v1233 = vpop.f32.mrb[0].mxu0
        %v1234 = vpop.f32.mrb[0].mxu0
        %v1235 = vadd.f32 %v1074, %v1234
        %v1236 = vpop.f32.mrb[0].mxu0
        %1237 = vmatprep.mubr.bf16.mxu0 0
        %1238 = vmatmul.mubr.bf16.gmra.mrb[0].mxu0 %v711
        %v1239 = vpop.f32.mrb[0].mxu0
        %v1240 = vadd.f32 %v1079, %v1239
        %v1241 = vpop.f32.mrb[0].mxu0
        %v1242 = vpop.f32.mrb[0].mxu0
        %v1243 = vadd.f32 %v1082, %v1242
        %v1244 = vpop.f32.mrb[0].mxu0
        %1245 = vmatprep.mubr.bf16.mxu0 0
        %1246 = vmatmul.mubr.bf16.gmra.mrb[0].mxu0 %v714
        %v1247 = vpop.f32.mrb[0].mxu0
        %v1248 = vadd.f32 %v1087, %v1247
        %v1249 = vpop.f32.mrb[0].mxu0
        %v1250 = vpop.f32.mrb[0].mxu0
        %v1251 = vadd.f32 %v1090, %v1250
        %v1252 = vpop.f32.mrb[0].mxu0
        %1253 = vmatprep.mubr.bf16.mxu0 0
        %1254 = vmatmul.mubr.bf16.gmra.mrb[0].mxu0 %v717
        %v1255 = vpop.f32.mrb[0].mxu0
        %v1256 = vadd.f32 %v1095, %v1255
        %v1257 = vpop.f32.mrb[0].mxu0
        %v1258 = vpop.f32.mrb[0].mxu0
        %v1259 = vadd.f32 %v1098, %v1258
        %v1260 = vpop.f32.mrb[0].mxu0
        %1261 = vmatprep.mubr.bf16.mxu0 0
        %1262 = vmatmul.mubr.bf16.gmra.mrb[0].mxu0 %v720
        %v1263 = vpop.f32.mrb[0].mxu0
        %v1264 = vadd.f32 %v1103, %v1263
        %v1265 = vpop.f32.mrb[0].mxu0
        %v1266 = vpop.f32.mrb[0].mxu0
        %v1267 = vadd.f32 %v1106, %v1266
        %v1268 = vpop.f32.mrb[0].mxu0
        %1269 = vmatprep.mubr.bf16.mxu0 0
        %1270 = vmatmul.mubr.bf16.gmra.mrb[0].mxu0 %v723
        %v1271 = vpop.f32.mrb[0].mxu0
        %v1272 = vadd.f32 %v1111, %v1271
        %v1273 = vpop.f32.mrb[0].mxu0
        %v1274 = vpop.f32.mrb[0].mxu0
        %v1275 = vadd.f32 %v1114, %v1274
        %v1276 = vpop.f32.mrb[0].mxu0
        %1277 = vmatprep.mubr.bf16.mxu0 0
        %1278 = vmatmul.mubr.bf16.gmra.mrb[0].mxu0 %v726
        %v1279 = vpop.f32.mrb[0].mxu0
        %v1280 = vadd.f32 %v1119, %v1279
        %v1281 = vpop.f32.mrb[0].mxu0
        %v1282 = vpop.f32.mrb[0].mxu0
        %v1283 = vadd.f32 %v1122, %v1282
        %v1284 = vpop.f32.mrb[0].mxu0
        %1285 = vmatprep.mubr.bf16.mxu0 0
        %1286 = vmatmul.mubr.bf16.gmra.mrb[0].mxu0 %v729
        %v1287 = vpop.f32.mrb[0].mxu0
        %v1288 = vadd.f32 %v1127, %v1287
        %v1289 = vpop.f32.mrb[0].mxu0
        %v1290 = vpop.f32.mrb[0].mxu0
        %v1291 = vadd.f32 %v1130, %v1290
        %v1292 = vpop.f32.mrb[0].mxu0
        %1293 = vmatprep.mubr.bf16.mxu0 0
        %1294 = vmatmul.mubr.bf16.gmra.mrb[0].mxu0 %v732
        %v1295 = vpop.f32.mrb[0].mxu0
        %v1296 = vadd.f32 %v1135, %v1295
        %v1297 = vpop.f32.mrb[0].mxu0
        %v1298 = vpop.f32.mrb[0].mxu0
        %v1299 = vadd.f32 %v1138, %v1298
        %v1300 = vpop.f32.mrb[0].mxu0
        %1301 = vmatprep.mubr.bf16.mxu0 0
        %1302 = vmatmul.mubr.bf16.gmra.mrb[0].mxu0 %v735
        %v1303 = vpop.f32.mrb[0].mxu0
        %v1304 = vadd.f32 %v1143, %v1303
        %v1305 = vpop.f32.mrb[0].mxu0
        %v1306 = vpop.f32.mrb[0].mxu0
        %v1307 = vadd.f32 %v1146, %v1306
        %v1308 = vpop.f32.mrb[0].mxu0
        %1309 = vmatprep.mubr.bf16.mxu0 0
        %1310 = vmatmul.mubr.bf16.gmra.mrb[0].mxu0 %v738
        %v1311 = vpop.f32.mrb[0].mxu0
        %v1312 = vadd.f32 %v1151, %v1311
        %v1313 = vpop.f32.mrb[0].mxu0
        %v1314 = vpop.f32.mrb[0].mxu0
        %v1315 = vadd.f32 %v1154, %v1314
        %v1316 = vpop.f32.mrb[0].mxu0
        %1317 = vmatprep.mubr.bf16.mxu0 0
        %1318 = vmatmul.mubr.bf16.gmra.mrb[0].mxu0 %v741
        %v1319 = vpop.f32.mrb[0].mxu0
        %v1320 = vadd.f32 %v1159, %v1319
        %v1321 = vpop.f32.mrb[0].mxu0
        %v1322 = vpop.f32.mrb[0].mxu0
        %v1323 = vadd.f32 %v1162, %v1322
        %v1324 = vpop.f32.mrb[0].mxu0
        %1325 = vdwg.mxu0
        %v1374 = vunpack.c.l.b16 %v763
        %v1375 = vunpack.c.l.b16 %v764
        %v1376 = vunpack.c.l.b16 %v765
        %v1377 = vunpack.c.l.b16 %v766
        %v1378 = vunpack.c.l.b16 %v767
        %v1379 = vunpack.c.l.b16 %v768
        %v1380 = vunpack.c.l.b16 %v769
        %v1381 = vunpack.c.l.b16 %v770
        %v1382 = vunpack.c.l.b16 %v771
        %v1383 = vunpack.c.l.b16 %v772
        %v1384 = vunpack.c.l.b16 %v773
        %v1385 = vunpack.c.l.b16 %v774
        %v1386 = vunpack.c.l.b16 %v775
        %v1387 = vunpack.c.l.b16 %v776
        %v1388 = vunpack.c.l.b16 %v777
        %v1389 = vunpack.c.l.b16 %v778
        %v1390 = vunpack.c.l.b16 %v779
        %v1391 = vunpack.c.l.b16 %v780
        %v1392 = vunpack.c.l.b16 %v781
        %v1393 = vunpack.c.l.b16 %v782
        %v1394 = vunpack.c.l.b16 %v783
        %v1395 = vunpack.c.l.b16 %v784
        %v1396 = vunpack.c.l.b16 %v785
        %v1397 = vunpack.c.l.b16 %v786
        %v1398 = vunpack.c.l.b16 %v787
        %v1399 = vunpack.c.l.b16 %v788
        %v1400 = vunpack.c.l.b16 %v789
        %v1401 = vunpack.c.l.b16 %v790
        %v1402 = vunpack.c.l.b16 %v791
        %v1403 = vunpack.c.l.b16 %v792
        %v1404 = vunpack.c.l.b16 %v793
        %v1405 = vunpack.c.l.b16 %v794
        %v1406 = vunpack.c.l.b16 %v795
        %v1407 = vunpack.c.l.b16 %v796
        %v1408 = vunpack.c.l.b16 %v797
        %v1409 = vunpack.c.l.b16 %v798
        %v1410 = vunpack.c.l.b16 %v799
        %v1411 = vunpack.c.l.b16 %v800
        %v1412 = vunpack.c.l.b16 %v801
        %v1413 = vunpack.c.l.b16 %v802
        %v1414 = vunpack.c.l.b16 %v803
        %v1415 = vunpack.c.l.b16 %v804
        %v1416 = vunpack.c.l.b16 %v805
        %v1417 = vunpack.c.l.b16 %v806
        %v1418 = vunpack.c.l.b16 %v807
        %v1419 = vunpack.c.l.b16 %v808
        %v1420 = vunpack.c.l.b16 %v809
        %v1421 = vunpack.c.l.b16 %v810
        %v1422 = vpack.c.b16 %v1375, %v1374
        %v1423 = vpack.c.b16 %v1377, %v1376
        %v1424 = vpack.c.b16 %v1379, %v1378
        %v1425 = vpack.c.b16 %v1381, %v1380
        %v1426 = vpack.c.b16 %v1383, %v1382
        %v1427 = vpack.c.b16 %v1385, %v1384
        %v1428 = vpack.c.b16 %v1387, %v1386
        %v1429 = vpack.c.b16 %v1389, %v1388
        %v1430 = vpack.c.b16 %v1391, %v1390
        %v1431 = vpack.c.b16 %v1393, %v1392
        %v1432 = vpack.c.b16 %v1395, %v1394
        %v1433 = vpack.c.b16 %v1397, %v1396
        %v1434 = vpack.c.b16 %v1399, %v1398
        %v1435 = vpack.c.b16 %v1401, %v1400
        %v1436 = vpack.c.b16 %v1403, %v1402
        %v1437 = vpack.c.b16 %v1405, %v1404
        %v1438 = vpack.c.b16 %v1407, %v1406
        %v1439 = vpack.c.b16 %v1409, %v1408
        %v1440 = vpack.c.b16 %v1411, %v1410
        %v1441 = vpack.c.b16 %v1413, %v1412
        %v1442 = vpack.c.b16 %v1415, %v1414
        %v1443 = vpack.c.b16 %v1417, %v1416
        %v1444 = vpack.c.b16 %v1419, %v1418
        %v1445 = vpack.c.b16 %v1421, %v1420
        %1470 = vmatprep.subr.bf16.mxu0 0
        %1471 = vmatpush1.bf16.msra.mxu0 %v1422
        %1472 = vmatprep.subr.bf16.mxu0 0
        %1473 = vmatpush1.bf16.msra.mxu0 %v1423
        %1474 = vmatprep.subr.bf16.mxu0 0
        %1475 = vmatpush1.bf16.msra.mxu0 %v1424
        %1476 = vmatprep.subr.bf16.mxu0 0
        %1477 = vmatpush1.bf16.msra.mxu0 %v1425
        %1478 = vmatprep.subr.bf16.mxu0 0
        %1479 = vmatpush1.bf16.msra.mxu0 %v1426
        %1480 = vmatprep.subr.bf16.mxu0 0
        %1481 = vmatpush1.bf16.msra.mxu0 %v1427
        %1482 = vmatprep.subr.bf16.mxu0 0
        %1483 = vmatpush1.bf16.msra.mxu0 %v1428
        %1484 = vmatprep.subr.bf16.mxu0 0
        %1485 = vmatpush1.bf16.msra.mxu0 %v1429
        %1486 = vmatprep.subr.bf16.mxu0 0
        %1487 = vmatpush1.bf16.msra.mxu0 %v1430
        %1488 = vmatprep.subr.bf16.mxu0 0
        %1489 = vmatpush1.bf16.msra.mxu0 %v1431
        %1490 = vmatprep.subr.bf16.mxu0 0
        %1491 = vmatpush1.bf16.msra.mxu0 %v1432
        %1492 = vmatprep.subr.bf16.mxu0 0
        %1493 = vmatpush1.bf16.msra.mxu0 %v1433
        %1494 = vmatprep.subr.bf16.mxu0 0
        %1495 = vmatpush1.bf16.msra.mxu0 %v1434
        %1496 = vmatprep.subr.bf16.mxu0 0
        %1497 = vmatpush1.bf16.msra.mxu0 %v1435
        %1498 = vmatprep.subr.bf16.mxu0 0
        %1499 = vmatpush1.bf16.msra.mxu0 %v1436
        %1500 = vmatprep.subr.bf16.mxu0 0
        %1501 = vmatpush1.bf16.msra.mxu0 %v1437
        %1502 = vmatprep.mubr.bf16.mxu0 %v467
        %1503 = vmatmul.mubr.bf16.gmra.mrb[0].mxu0 %v365
        %v1504 = vpop.f32.mrb[0].mxu0
        %v1505 = vadd.f32 %v1200, %v1504
        %v1506 = vpop.f32.mrb[0].mxu0
        %v1507 = vpop.f32.mrb[0].mxu0
        %v1508 = vadd.f32 %v1203, %v1507
        %v1509 = vpop.f32.mrb[0].mxu0
        %1510 = vmatprep.mubr.bf16.mxu0 %v479
        %1511 = vmatmul.mubr.bf16.gmra.mrb[0].mxu0 %v366
        %v1512 = vpop.f32.mrb[0].mxu0
        %v1513 = vadd.f32 %v1208, %v1512
        %v1514 = vpop.f32.mrb[0].mxu0
        %v1515 = vpop.f32.mrb[0].mxu0
        %v1516 = vadd.f32 %v1211, %v1515
        %v1517 = vpop.f32.mrb[0].mxu0
        %1518 = vmatprep.mubr.bf16.mxu0 %v491
        %1519 = vmatmul.mubr.bf16.gmra.mrb[0].mxu0 %v367
        %v1520 = vpop.f32.mrb[0].mxu0
        %v1521 = vadd.f32 %v1216, %v1520
        %v1522 = vpop.f32.mrb[0].mxu0
        %v1523 = vpop.f32.mrb[0].mxu0
        %v1524 = vadd.f32 %v1219, %v1523
        %v1525 = vpop.f32.mrb[0].mxu0
        %1526 = vmatprep.mubr.bf16.mxu0 %v503
        %1527 = vmatmul.mubr.bf16.gmra.mrb[0].mxu0 %v368
        %v1528 = vpop.f32.mrb[0].mxu0
        %v1529 = vadd.f32 %v1224, %v1528
        %v1530 = vpop.f32.mrb[0].mxu0
        %v1531 = vpop.f32.mrb[0].mxu0
        %v1532 = vadd.f32 %v1227, %v1531
        %v1533 = vpop.f32.mrb[0].mxu0
        %1534 = vmatprep.mubr.bf16.mxu0 %v515
        %1535 = vmatmul.mubr.bf16.gmra.mrb[0].mxu0 %v369
        %v1536 = vpop.f32.mrb[0].mxu0
        %v1537 = vadd.f32 %v1232, %v1536
        %v1538 = vpop.f32.mrb[0].mxu0
        %v1539 = vpop.f32.mrb[0].mxu0
        %v1540 = vadd.f32 %v1235, %v1539
        %v1541 = vpop.f32.mrb[0].mxu0
        %1542 = vmatprep.mubr.bf16.mxu0 %v527
        %1543 = vmatmul.mubr.bf16.gmra.mrb[0].mxu0 %v370
        %v1544 = vpop.f32.mrb[0].mxu0
        %v1545 = vadd.f32 %v1240, %v1544
        %v1546 = vpop.f32.mrb[0].mxu0
        %v1547 = vpop.f32.mrb[0].mxu0
        %v1548 = vadd.f32 %v1243, %v1547
        %v1549 = vpop.f32.mrb[0].mxu0
        %1550 = vmatprep.mubr.bf16.mxu0 %v539
        %1551 = vmatmul.mubr.bf16.gmra.mrb[0].mxu0 %v371
        %v1552 = vpop.f32.mrb[0].mxu0
        %v1553 = vadd.f32 %v1248, %v1552
        %v1554 = vpop.f32.mrb[0].mxu0
        %v1555 = vpop.f32.mrb[0].mxu0
        %v1556 = vadd.f32 %v1251, %v1555
        %v1557 = vpop.f32.mrb[0].mxu0
        %1558 = vmatprep.mubr.bf16.mxu0 %v551
        %1559 = vmatmul.mubr.bf16.gmra.mrb[0].mxu0 %v372
        %v1560 = vpop.f32.mrb[0].mxu0
        %v1561 = vadd.f32 %v1256, %v1560
        %v1562 = vpop.f32.mrb[0].mxu0
        %v1563 = vpop.f32.mrb[0].mxu0
        %v1564 = vadd.f32 %v1259, %v1563
        %v1565 = vpop.f32.mrb[0].mxu0
        %1566 = vmatprep.mubr.bf16.mxu0 %v563
        %1567 = vmatmul.mubr.bf16.gmra.mrb[0].mxu0 %v373
        %v1568 = vpop.f32.mrb[0].mxu0
        %v1569 = vadd.f32 %v1264, %v1568
        %v1570 = vpop.f32.mrb[0].mxu0
        %v1571 = vpop.f32.mrb[0].mxu0
        %v1572 = vadd.f32 %v1267, %v1571
        %v1573 = vpop.f32.mrb[0].mxu0
        %1574 = vmatprep.mubr.bf16.mxu0 %v575
        %1575 = vmatmul.mubr.bf16.gmra.mrb[0].mxu0 %v374
        %v1576 = vpop.f32.mrb[0].mxu0
        %v1577 = vadd.f32 %v1272, %v1576
        %v1578 = vpop.f32.mrb[0].mxu0
        %v1579 = vpop.f32.mrb[0].mxu0
        %v1580 = vadd.f32 %v1275, %v1579
        %v1581 = vpop.f32.mrb[0].mxu0
        %1582 = vmatprep.mubr.bf16.mxu0 %v587
        %1583 = vmatmul.mubr.bf16.gmra.mrb[0].mxu0 %v375
        %v1584 = vpop.f32.mrb[0].mxu0
        %v1585 = vadd.f32 %v1280, %v1584
        %v1586 = vpop.f32.mrb[0].mxu0
        %v1587 = vpop.f32.mrb[0].mxu0
        %v1588 = vadd.f32 %v1283, %v1587
        %v1589 = vpop.f32.mrb[0].mxu0
        %1590 = vmatprep.mubr.bf16.mxu0 %v599
        %1591 = vmatmul.mubr.bf16.gmra.mrb[0].mxu0 %v376
        %v1592 = vpop.f32.mrb[0].mxu0
        %v1593 = vadd.f32 %v1288, %v1592
        %v1594 = vpop.f32.mrb[0].mxu0
        %v1595 = vpop.f32.mrb[0].mxu0
        %v1596 = vadd.f32 %v1291, %v1595
        %v1597 = vpop.f32.mrb[0].mxu0
        %1598 = vmatprep.mubr.bf16.mxu0 %v611
        %1599 = vmatmul.mubr.bf16.gmra.mrb[0].mxu0 %v377
        %v1600 = vpop.f32.mrb[0].mxu0
        %v1601 = vadd.f32 %v1296, %v1600
        %v1602 = vpop.f32.mrb[0].mxu0
        %v1603 = vpop.f32.mrb[0].mxu0
        %v1604 = vadd.f32 %v1299, %v1603
        %v1605 = vpop.f32.mrb[0].mxu0
        %1606 = vmatprep.mubr.bf16.mxu0 %v623
        %1607 = vmatmul.mubr.bf16.gmra.mrb[0].mxu0 %v378
        %v1608 = vpop.f32.mrb[0].mxu0
        %v1609 = vadd.f32 %v1304, %v1608
        %v1610 = vpop.f32.mrb[0].mxu0
        %v1611 = vpop.f32.mrb[0].mxu0
        %v1612 = vadd.f32 %v1307, %v1611
        %v1613 = vpop.f32.mrb[0].mxu0
        %1614 = vmatprep.mubr.bf16.mxu0 %v635
        %1615 = vmatmul.mubr.bf16.gmra.mrb[0].mxu0 %v379
        %v1616 = vpop.f32.mrb[0].mxu0
        %v1617 = vadd.f32 %v1312, %v1616
        %v1618 = vpop.f32.mrb[0].mxu0
        %v1619 = vpop.f32.mrb[0].mxu0
        %v1620 = vadd.f32 %v1315, %v1619
        %v1621 = vpop.f32.mrb[0].mxu0
        %1622 = vmatprep.mubr.bf16.mxu0 %v647
        %1623 = vmatmul.mubr.bf16.gmra.mrb[0].mxu0 %v380
        %v1624 = vpop.f32.mrb[0].mxu0
        %v1625 = vadd.f32 %v1320, %v1624
        %v1626 = vpop.f32.mrb[0].mxu0
        %v1627 = vpop.f32.mrb[0].mxu0
        %v1628 = vadd.f32 %v1323, %v1627
        %v1629 = vpop.f32.mrb[0].mxu0
        %1630 = vdwg.mxu0
        %1631 = vmatprep.subr.bf16.mxu0 0
        %1632 = vmatpush1.bf16.msra.mxu0 %v1438
        %1633 = vmatprep.subr.bf16.mxu0 0
        %1634 = vmatpush1.bf16.msra.mxu0 %v1439
        %1635 = vmatprep.subr.bf16.mxu0 0
        %1636 = vmatpush1.bf16.msra.mxu0 %v1440
        %1637 = vmatprep.subr.bf16.mxu0 0
        %1638 = vmatpush1.bf16.msra.mxu0 %v1441
        %1639 = vmatprep.subr.bf16.mxu0 0
        %1640 = vmatpush1.bf16.msra.mxu0 %v1442
        %1641 = vmatprep.subr.bf16.mxu0 0
        %1642 = vmatpush1.bf16.msra.mxu0 %v1443
        %1643 = vmatprep.subr.bf16.mxu0 0
        %1644 = vmatpush1.bf16.msra.mxu0 %v1444
        %1645 = vmatprep.subr.bf16.mxu0 0
        %1646 = vmatpush1.bf16.msra.mxu0 %v1445
        %1647 = vmatprep.subr.bf16.mxu0 0
        %1648 = vmatpush1.bf16.msra.mxu0 0
        %1649 = vmatprep.subr.bf16.mxu0 0
        %1650 = vmatpush1.bf16.msra.mxu0 0
        %1651 = vmatprep.subr.bf16.mxu0 0
        %1652 = vmatpush1.bf16.msra.mxu0 0
        %1653 = vmatprep.subr.bf16.mxu0 0
        %1654 = vmatpush1.bf16.msra.mxu0 0
        %1655 = vmatprep.subr.bf16.mxu0 0
        %1656 = vmatpush1.bf16.msra.mxu0 0
        %1657 = vmatprep.subr.bf16.mxu0 0
        %1658 = vmatpush1.bf16.msra.mxu0 0
        %1659 = vmatprep.subr.bf16.mxu0 0
        %1660 = vmatpush1.bf16.msra.mxu0 0
        %1661 = vmatprep.subr.bf16.mxu0 0
        %1662 = vmatpush1.bf16.msra.mxu0 0
        %1663 = vmatprep.mubr.bf16.mxu0 0
        %1664 = vmatmul.mubr.bf16.gmra.mrb[0].mxu0 %v693
        %v1665 = vpop.f32.mrb[0].mxu0
        %v1666 = vadd.f32 %v1505, %v1665
        %v1667 = vpop.f32.mrb[0].mxu0
        %v1668 = vpop.f32.mrb[0].mxu0
        %v1669 = vadd.f32 %v1508, %v1668
        %v1670 = vpop.f32.mrb[0].mxu0
        %1671 = vmatprep.mubr.bf16.mxu0 0
        %1672 = vmatmul.mubr.bf16.gmra.mrb[0].mxu0 %v696
        %v1673 = vpop.f32.mrb[0].mxu0
        %v1674 = vadd.f32 %v1513, %v1673
        %v1675 = vpop.f32.mrb[0].mxu0
        %v1676 = vpop.f32.mrb[0].mxu0
        %v1677 = vadd.f32 %v1516, %v1676
        %v1678 = vpop.f32.mrb[0].mxu0
        %1679 = vmatprep.mubr.bf16.mxu0 0
        %1680 = vmatmul.mubr.bf16.gmra.mrb[0].mxu0 %v699
        %v1681 = vpop.f32.mrb[0].mxu0
        %v1682 = vadd.f32 %v1521, %v1681
        %v1683 = vpop.f32.mrb[0].mxu0
        %v1684 = vpop.f32.mrb[0].mxu0
        %v1685 = vadd.f32 %v1524, %v1684
        %v1686 = vpop.f32.mrb[0].mxu0
        %1687 = vmatprep.mubr.bf16.mxu0 0
        %1688 = vmatmul.mubr.bf16.gmra.mrb[0].mxu0 %v702
        %v1689 = vpop.f32.mrb[0].mxu0
        %v1690 = vadd.f32 %v1529, %v1689
        %v1691 = vpop.f32.mrb[0].mxu0
        %v1692 = vpop.f32.mrb[0].mxu0
        %v1693 = vadd.f32 %v1532, %v1692
        %v1694 = vpop.f32.mrb[0].mxu0
        %1695 = vmatprep.mubr.bf16.mxu0 0
        %1696 = vmatmul.mubr.bf16.gmra.mrb[0].mxu0 %v705
        %v1697 = vpop.f32.mrb[0].mxu0
        %v1698 = vadd.f32 %v1537, %v1697
        %v1699 = vpop.f32.mrb[0].mxu0
        %v1700 = vpop.f32.mrb[0].mxu0
        %v1701 = vadd.f32 %v1540, %v1700
        %v1702 = vpop.f32.mrb[0].mxu0
        %1703 = vmatprep.mubr.bf16.mxu0 0
        %1704 = vmatmul.mubr.bf16.gmra.mrb[0].mxu0 %v708
        %v1705 = vpop.f32.mrb[0].mxu0
        %v1706 = vadd.f32 %v1545, %v1705
        %v1707 = vpop.f32.mrb[0].mxu0
        %v1708 = vpop.f32.mrb[0].mxu0
        %v1709 = vadd.f32 %v1548, %v1708
        %v1710 = vpop.f32.mrb[0].mxu0
        %1711 = vmatprep.mubr.bf16.mxu0 0
        %1712 = vmatmul.mubr.bf16.gmra.mrb[0].mxu0 %v711
        %v1713 = vpop.f32.mrb[0].mxu0
        %v1714 = vadd.f32 %v1553, %v1713
        %v1715 = vpop.f32.mrb[0].mxu0
        %v1716 = vpop.f32.mrb[0].mxu0
        %v1717 = vadd.f32 %v1556, %v1716
        %v1718 = vpop.f32.mrb[0].mxu0
        %1719 = vmatprep.mubr.bf16.mxu0 0
        %1720 = vmatmul.mubr.bf16.gmra.mrb[0].mxu0 %v714
        %v1721 = vpop.f32.mrb[0].mxu0
        %v1722 = vadd.f32 %v1561, %v1721
        %v1723 = vpop.f32.mrb[0].mxu0
        %v1724 = vpop.f32.mrb[0].mxu0
        %v1725 = vadd.f32 %v1564, %v1724
        %v1726 = vpop.f32.mrb[0].mxu0
        %1727 = vmatprep.mubr.bf16.mxu0 0
        %1728 = vmatmul.mubr.bf16.gmra.mrb[0].mxu0 %v717
        %v1729 = vpop.f32.mrb[0].mxu0
        %v1730 = vadd.f32 %v1569, %v1729
        %v1731 = vpop.f32.mrb[0].mxu0
        %v1732 = vpop.f32.mrb[0].mxu0
        %v1733 = vadd.f32 %v1572, %v1732
        %v1734 = vpop.f32.mrb[0].mxu0
        %1735 = vmatprep.mubr.bf16.mxu0 0
        %1736 = vmatmul.mubr.bf16.gmra.mrb[0].mxu0 %v720
        %v1737 = vpop.f32.mrb[0].mxu0
        %v1738 = vadd.f32 %v1577, %v1737
        %v1739 = vpop.f32.mrb[0].mxu0
        %v1740 = vpop.f32.mrb[0].mxu0
        %v1741 = vadd.f32 %v1580, %v1740
        %v1742 = vpop.f32.mrb[0].mxu0
        %1743 = vmatprep.mubr.bf16.mxu0 0
        %1744 = vmatmul.mubr.bf16.gmra.mrb[0].mxu0 %v723
        %v1745 = vpop.f32.mrb[0].mxu0
        %v1746 = vadd.f32 %v1585, %v1745
        %v1747 = vpop.f32.mrb[0].mxu0
        %v1748 = vpop.f32.mrb[0].mxu0
        %v1749 = vadd.f32 %v1588, %v1748
        %v1750 = vpop.f32.mrb[0].mxu0
        %1751 = vmatprep.mubr.bf16.mxu0 0
        %1752 = vmatmul.mubr.bf16.gmra.mrb[0].mxu0 %v726
        %v1753 = vpop.f32.mrb[0].mxu0
        %v1754 = vadd.f32 %v1593, %v1753
        %v1755 = vpop.f32.mrb[0].mxu0
        %v1756 = vpop.f32.mrb[0].mxu0
        %v1757 = vadd.f32 %v1596, %v1756
        %v1758 = vpop.f32.mrb[0].mxu0
        %1759 = vmatprep.mubr.bf16.mxu0 0
        %1760 = vmatmul.mubr.bf16.gmra.mrb[0].mxu0 %v729
        %v1761 = vpop.f32.mrb[0].mxu0
        %v1762 = vadd.f32 %v1601, %v1761
        %v1763 = vpop.f32.mrb[0].mxu0
        %v1764 = vpop.f32.mrb[0].mxu0
        %v1765 = vadd.f32 %v1604, %v1764
        %v1766 = vpop.f32.mrb[0].mxu0
        %1767 = vmatprep.mubr.bf16.mxu0 0
        %1768 = vmatmul.mubr.bf16.gmra.mrb[0].mxu0 %v732
        %v1769 = vpop.f32.mrb[0].mxu0
        %v1770 = vadd.f32 %v1609, %v1769
        %v1771 = vpop.f32.mrb[0].mxu0
        %v1772 = vpop.f32.mrb[0].mxu0
        %v1773 = vadd.f32 %v1612, %v1772
        %v1774 = vpop.f32.mrb[0].mxu0
        %1775 = vmatprep.mubr.bf16.mxu0 0
        %1776 = vmatmul.mubr.bf16.gmra.mrb[0].mxu0 %v735
        %v1777 = vpop.f32.mrb[0].mxu0
        %v1778 = vadd.f32 %v1617, %v1777
        %v1779 = vpop.f32.mrb[0].mxu0
        %v1780 = vpop.f32.mrb[0].mxu0
        %v1781 = vadd.f32 %v1620, %v1780
        %v1782 = vpop.f32.mrb[0].mxu0
        %1783 = vmatprep.mubr.bf16.mxu0 0
        %1784 = vmatmul.mubr.bf16.gmra.mrb[0].mxu0 %v738
        %v1785 = vpop.f32.mrb[0].mxu0
        %v1786 = vadd.f32 %v1625, %v1785
        %v1787 = vpop.f32.mrb[0].mxu0
        %v1788 = vpop.f32.mrb[0].mxu0
        %v1789 = vadd.f32 %v1628, %v1788
        %v1790 = vpop.f32.mrb[0].mxu0
        %1791 = vdwg.mxu0
        %s1792 = scalar_lea.vmem %s1, 384
        %v1793 = vld [vmem:[%s1792] sm:$0xf]
        %v1794 = vld [vmem:[%s1792 + $0x4] sm:$0xf]
        %v1795 = vld [vmem:[%s1792 + $0x8] sm:$0xf]
        %v1796 = vld [vmem:[%s1792 + $0xc] sm:$0xf]
        %v1797 = vld [vmem:[%s1792 + $0x10] sm:$0xf]
        %v1798 = vld [vmem:[%s1792 + $0x14] sm:$0xf]
        %v1799 = vld [vmem:[%s1792 + $0x18] sm:$0xf]
        %v1800 = vld [vmem:[%s1792 + $0x1c] sm:$0xf]
        %v1801 = vld [vmem:[%s1792 + $0x20] sm:$0xf]
        %v1802 = vld [vmem:[%s1792 + $0x24] sm:$0xf]
        %v1803 = vld [vmem:[%s1792 + $0x28] sm:$0xf]
        %v1804 = vld [vmem:[%s1792 + $0x2c] sm:$0xf]
        %v1805 = vld [vmem:[%s1792 + $0x30] sm:$0xf]
        %v1806 = vld [vmem:[%s1792 + $0x34] sm:$0xf]
        %v1807 = vld [vmem:[%s1792 + $0x38] sm:$0xf]
        %v1808 = vld [vmem:[%s1792 + $0x3c] sm:$0xf]
        %v1809 = vld [vmem:[%s1792 + $0x40] sm:$0xf]
        %v1810 = vld [vmem:[%s1792 + $0x44] sm:$0xf]
        %v1811 = vld [vmem:[%s1792 + $0x48] sm:$0xf]
        %v1812 = vld [vmem:[%s1792 + $0x4c] sm:$0xf]
        %v1813 = vld [vmem:[%s1792 + $0x50] sm:$0xf]
        %v1814 = vld [vmem:[%s1792 + $0x54] sm:$0xf]
        %v1815 = vld [vmem:[%s1792 + $0x58] sm:$0xf]
        %v1816 = vld [vmem:[%s1792 + $0x5c] sm:$0xf]
        %v1817 = vld [vmem:[%s1792 + $0x60] sm:$0xf]
        %v1818 = vld [vmem:[%s1792 + $0x64] sm:$0xf]
        %v1819 = vld [vmem:[%s1792 + $0x68] sm:$0xf]
        %v1820 = vld [vmem:[%s1792 + $0x6c] sm:$0xf]
        %v1821 = vld [vmem:[%s1792 + $0x70] sm:$0xf]
        %v1822 = vld [vmem:[%s1792 + $0x74] sm:$0xf]
        %v1823 = vld [vmem:[%s1792 + $0x78] sm:$0xf]
        %v1824 = vld [vmem:[%s1792 + $0x7c] sm:$0xf]
        %v1825 = vld [vmem:[%s1792 + $0x80] sm:$0xf]
        %v1826 = vld [vmem:[%s1792 + $0x84] sm:$0xf]
        %v1827 = vld [vmem:[%s1792 + $0x88] sm:$0xf]
        %v1828 = vld [vmem:[%s1792 + $0x8c] sm:$0xf]
        %v1829 = vld [vmem:[%s1792 + $0x90] sm:$0xf]
        %v1830 = vld [vmem:[%s1792 + $0x94] sm:$0xf]
        %v1831 = vld [vmem:[%s1792 + $0x98] sm:$0xf]
        %v1832 = vld [vmem:[%s1792 + $0x9c] sm:$0xf]
        %v1833 = vld [vmem:[%s1792 + $0xa0] sm:$0xf]
        %v1834 = vld [vmem:[%s1792 + $0xa4] sm:$0xf]
        %v1835 = vld [vmem:[%s1792 + $0xa8] sm:$0xf]
        %v1836 = vld [vmem:[%s1792 + $0xac] sm:$0xf]
        %v1837 = vld [vmem:[%s1792 + $0xb0] sm:$0xf]
        %v1838 = vld [vmem:[%s1792 + $0xb4] sm:$0xf]
        %v1839 = vld [vmem:[%s1792 + $0xb8] sm:$0xf]
        %v1840 = vld [vmem:[%s1792 + $0xbc] sm:$0xf]
        %v1889 = vunpack.c.l.b16 %v1793
        %v1890 = vunpack.c.l.b16 %v1794
        %v1891 = vunpack.c.l.b16 %v1795
        %v1892 = vunpack.c.l.b16 %v1796
        %v1893 = vunpack.c.l.b16 %v1797
        %v1894 = vunpack.c.l.b16 %v1798
        %v1895 = vunpack.c.l.b16 %v1799
        %v1896 = vunpack.c.l.b16 %v1800
        %v1897 = vunpack.c.l.b16 %v1801
        %v1898 = vunpack.c.l.b16 %v1802
        %v1899 = vunpack.c.l.b16 %v1803
        %v1900 = vunpack.c.l.b16 %v1804
        %v1901 = vunpack.c.l.b16 %v1805
        %v1902 = vunpack.c.l.b16 %v1806
        %v1903 = vunpack.c.l.b16 %v1807
        %v1904 = vunpack.c.l.b16 %v1808
        %v1905 = vunpack.c.l.b16 %v1809
        %v1906 = vunpack.c.l.b16 %v1810
        %v1907 = vunpack.c.l.b16 %v1811
        %v1908 = vunpack.c.l.b16 %v1812
        %v1909 = vunpack.c.l.b16 %v1813
        %v1910 = vunpack.c.l.b16 %v1814
        %v1911 = vunpack.c.l.b16 %v1815
        %v1912 = vunpack.c.l.b16 %v1816
        %v1913 = vunpack.c.l.b16 %v1817
        %v1914 = vunpack.c.l.b16 %v1818
        %v1915 = vunpack.c.l.b16 %v1819
        %v1916 = vunpack.c.l.b16 %v1820
        %v1917 = vunpack.c.l.b16 %v1821
        %v1918 = vunpack.c.l.b16 %v1822
        %v1919 = vunpack.c.l.b16 %v1823
        %v1920 = vunpack.c.l.b16 %v1824
        %v1921 = vunpack.c.l.b16 %v1825
        %v1922 = vunpack.c.l.b16 %v1826
        %v1923 = vunpack.c.l.b16 %v1827
        %v1924 = vunpack.c.l.b16 %v1828
        %v1925 = vunpack.c.l.b16 %v1829
        %v1926 = vunpack.c.l.b16 %v1830
        %v1927 = vunpack.c.l.b16 %v1831
        %v1928 = vunpack.c.l.b16 %v1832
        %v1929 = vunpack.c.l.b16 %v1833
        %v1930 = vunpack.c.l.b16 %v1834
        %v1931 = vunpack.c.l.b16 %v1835
        %v1932 = vunpack.c.l.b16 %v1836
        %v1933 = vunpack.c.l.b16 %v1837
        %v1934 = vunpack.c.l.b16 %v1838
        %v1935 = vunpack.c.l.b16 %v1839
        %v1936 = vunpack.c.l.b16 %v1840
        %v1937 = vpack.c.b16 %v1890, %v1889
        %v1938 = vpack.c.b16 %v1892, %v1891
        %v1939 = vpack.c.b16 %v1894, %v1893
        %v1940 = vpack.c.b16 %v1896, %v1895
        %v1941 = vpack.c.b16 %v1898, %v1897
        %v1942 = vpack.c.b16 %v1900, %v1899
        %v1943 = vpack.c.b16 %v1902, %v1901
        %v1944 = vpack.c.b16 %v1904, %v1903
        %v1945 = vpack.c.b16 %v1906, %v1905
        %v1946 = vpack.c.b16 %v1908, %v1907
        %v1947 = vpack.c.b16 %v1910, %v1909
        %v1948 = vpack.c.b16 %v1912, %v1911
        %v1949 = vpack.c.b16 %v1914, %v1913
        %v1950 = vpack.c.b16 %v1916, %v1915
        %v1951 = vpack.c.b16 %v1918, %v1917
        %v1952 = vpack.c.b16 %v1920, %v1919
        %v1953 = vpack.c.b16 %v1922, %v1921
        %v1954 = vpack.c.b16 %v1924, %v1923
        %v1955 = vpack.c.b16 %v1926, %v1925
        %v1956 = vpack.c.b16 %v1928, %v1927
        %v1957 = vpack.c.b16 %v1930, %v1929
        %v1958 = vpack.c.b16 %v1932, %v1931
        %v1959 = vpack.c.b16 %v1934, %v1933
        %v1960 = vpack.c.b16 %v1936, %v1935
        %1985 = vmatprep.subr.bf16.mxu0 0
        %1986 = vmatpush1.bf16.msra.mxu0 %v1937
        %1987 = vmatprep.subr.bf16.mxu0 0
        %1988 = vmatpush1.bf16.msra.mxu0 %v1938
        %1989 = vmatprep.subr.bf16.mxu0 0
        %1990 = vmatpush1.bf16.msra.mxu0 %v1939
        %1991 = vmatprep.subr.bf16.mxu0 0
        %1992 = vmatpush1.bf16.msra.mxu0 %v1940
        %1993 = vmatprep.subr.bf16.mxu0 0
        %1994 = vmatpush1.bf16.msra.mxu0 %v1941
        %1995 = vmatprep.subr.bf16.mxu0 0
        %1996 = vmatpush1.bf16.msra.mxu0 %v1942
        %1997 = vmatprep.subr.bf16.mxu0 0
        %1998 = vmatpush1.bf16.msra.mxu0 %v1943
        %1999 = vmatprep.subr.bf16.mxu0 0
        %2000 = vmatpush1.bf16.msra.mxu0 %v1944
        %2001 = vmatprep.subr.bf16.mxu0 0
        %2002 = vmatpush1.bf16.msra.mxu0 %v1945
        %2003 = vmatprep.subr.bf16.mxu0 0
        %2004 = vmatpush1.bf16.msra.mxu0 %v1946
        %2005 = vmatprep.subr.bf16.mxu0 0
        %2006 = vmatpush1.bf16.msra.mxu0 %v1947
        %2007 = vmatprep.subr.bf16.mxu0 0
        %2008 = vmatpush1.bf16.msra.mxu0 %v1948
        %2009 = vmatprep.subr.bf16.mxu0 0
        %2010 = vmatpush1.bf16.msra.mxu0 %v1949
        %2011 = vmatprep.subr.bf16.mxu0 0
        %2012 = vmatpush1.bf16.msra.mxu0 %v1950
        %2013 = vmatprep.subr.bf16.mxu0 0
        %2014 = vmatpush1.bf16.msra.mxu0 %v1951
        %2015 = vmatprep.subr.bf16.mxu0 0
        %2016 = vmatpush1.bf16.msra.mxu0 %v1952
        %2017 = vmatprep.mubr.bf16.mxu0 %v491
        %2018 = vmatmul.mubr.bf16.gmra.mrb[0].mxu0 %v367
        %v2019 = vpop.f32.mrb[0].mxu0
        %v2020 = vadd.f32 0.0, %v2019
        %v2021 = vpop.f32.mrb[0].mxu0
        %v2022 = vpop.f32.mrb[0].mxu0
        %v2023 = vadd.f32 0.0, %v2022
        %v2024 = vpop.f32.mrb[0].mxu0
        %2025 = vmatprep.mubr.bf16.mxu0 %v503
        %2026 = vmatmul.mubr.bf16.gmra.mrb[0].mxu0 %v368
        %v2027 = vpop.f32.mrb[0].mxu0
        %v2028 = vadd.f32 0.0, %v2027
        %v2029 = vpop.f32.mrb[0].mxu0
        %v2030 = vpop.f32.mrb[0].mxu0
        %v2031 = vadd.f32 0.0, %v2030
        %v2032 = vpop.f32.mrb[0].mxu0
        %2033 = vmatprep.mubr.bf16.mxu0 %v515
        %2034 = vmatmul.mubr.bf16.gmra.mrb[0].mxu0 %v369
        %v2035 = vpop.f32.mrb[0].mxu0
        %v2036 = vadd.f32 0.0, %v2035
        %v2037 = vpop.f32.mrb[0].mxu0
        %v2038 = vpop.f32.mrb[0].mxu0
        %v2039 = vadd.f32 0.0, %v2038
        %v2040 = vpop.f32.mrb[0].mxu0
        %2041 = vmatprep.mubr.bf16.mxu0 %v527
        %2042 = vmatmul.mubr.bf16.gmra.mrb[0].mxu0 %v370
        %v2043 = vpop.f32.mrb[0].mxu0
        %v2044 = vadd.f32 0.0, %v2043
        %v2045 = vpop.f32.mrb[0].mxu0
        %v2046 = vpop.f32.mrb[0].mxu0
        %v2047 = vadd.f32 0.0, %v2046
        %v2048 = vpop.f32.mrb[0].mxu0
        %2049 = vmatprep.mubr.bf16.mxu0 %v539
        %2050 = vmatmul.mubr.bf16.gmra.mrb[0].mxu0 %v371
        %v2051 = vpop.f32.mrb[0].mxu0
        %v2052 = vadd.f32 0.0, %v2051
        %v2053 = vpop.f32.mrb[0].mxu0
        %v2054 = vpop.f32.mrb[0].mxu0
        %v2055 = vadd.f32 0.0, %v2054
        %v2056 = vpop.f32.mrb[0].mxu0
        %2057 = vmatprep.mubr.bf16.mxu0 %v551
        %2058 = vmatmul.mubr.bf16.gmra.mrb[0].mxu0 %v372
        %v2059 = vpop.f32.mrb[0].mxu0
        %v2060 = vadd.f32 0.0, %v2059
        %v2061 = vpop.f32.mrb[0].mxu0
        %v2062 = vpop.f32.mrb[0].mxu0
        %v2063 = vadd.f32 0.0, %v2062
        %v2064 = vpop.f32.mrb[0].mxu0
        %2065 = vmatprep.mubr.bf16.mxu0 %v563
        %2066 = vmatmul.mubr.bf16.gmra.mrb[0].mxu0 %v373
        %v2067 = vpop.f32.mrb[0].mxu0
        %v2068 = vadd.f32 0.0, %v2067
        %v2069 = vpop.f32.mrb[0].mxu0
        %v2070 = vpop.f32.mrb[0].mxu0
        %v2071 = vadd.f32 0.0, %v2070
        %v2072 = vpop.f32.mrb[0].mxu0
        %2073 = vmatprep.mubr.bf16.mxu0 %v575
        %2074 = vmatmul.mubr.bf16.gmra.mrb[0].mxu0 %v374
        %v2075 = vpop.f32.mrb[0].mxu0
        %v2076 = vadd.f32 0.0, %v2075
        %v2077 = vpop.f32.mrb[0].mxu0
        %v2078 = vpop.f32.mrb[0].mxu0
        %v2079 = vadd.f32 0.0, %v2078
        %v2080 = vpop.f32.mrb[0].mxu0
        %2081 = vmatprep.mubr.bf16.mxu0 %v587
        %2082 = vmatmul.mubr.bf16.gmra.mrb[0].mxu0 %v375
        %v2083 = vpop.f32.mrb[0].mxu0
        %v2084 = vadd.f32 0.0, %v2083
        %v2085 = vpop.f32.mrb[0].mxu0
        %v2086 = vpop.f32.mrb[0].mxu0
        %v2087 = vadd.f32 0.0, %v2086
        %v2088 = vpop.f32.mrb[0].mxu0
        %2089 = vmatprep.mubr.bf16.mxu0 %v599
        %2090 = vmatmul.mubr.bf16.gmra.mrb[0].mxu0 %v376
        %v2091 = vpop.f32.mrb[0].mxu0
        %v2092 = vadd.f32 0.0, %v2091
        %v2093 = vpop.f32.mrb[0].mxu0
        %v2094 = vpop.f32.mrb[0].mxu0
        %v2095 = vadd.f32 0.0, %v2094
        %v2096 = vpop.f32.mrb[0].mxu0
        %2097 = vmatprep.mubr.bf16.mxu0 %v611
        %2098 = vmatmul.mubr.bf16.gmra.mrb[0].mxu0 %v377
        %v2099 = vpop.f32.mrb[0].mxu0
        %v2100 = vadd.f32 0.0, %v2099
        %v2101 = vpop.f32.mrb[0].mxu0
        %v2102 = vpop.f32.mrb[0].mxu0
        %v2103 = vadd.f32 0.0, %v2102
        %v2104 = vpop.f32.mrb[0].mxu0
        %2105 = vmatprep.mubr.bf16.mxu0 %v623
        %2106 = vmatmul.mubr.bf16.gmra.mrb[0].mxu0 %v378
        %v2107 = vpop.f32.mrb[0].mxu0
        %v2108 = vadd.f32 0.0, %v2107
        %v2109 = vpop.f32.mrb[0].mxu0
        %v2110 = vpop.f32.mrb[0].mxu0
        %v2111 = vadd.f32 0.0, %v2110
        %v2112 = vpop.f32.mrb[0].mxu0
        %2113 = vmatprep.mubr.bf16.mxu0 %v635
        %2114 = vmatmul.mubr.bf16.gmra.mrb[0].mxu0 %v379
        %v2115 = vpop.f32.mrb[0].mxu0
        %v2116 = vadd.f32 0.0, %v2115
        %v2117 = vpop.f32.mrb[0].mxu0
        %v2118 = vpop.f32.mrb[0].mxu0
        %v2119 = vadd.f32 0.0, %v2118
        %v2120 = vpop.f32.mrb[0].mxu0
        %2121 = vmatprep.mubr.bf16.mxu0 %v647
        %2122 = vmatmul.mubr.bf16.gmra.mrb[0].mxu0 %v380
        %v2123 = vpop.f32.mrb[0].mxu0
        %v2124 = vadd.f32 0.0, %v2123
        %v2125 = vpop.f32.mrb[0].mxu0
        %v2126 = vpop.f32.mrb[0].mxu0
        %v2127 = vadd.f32 0.0, %v2126
        %v2128 = vpop.f32.mrb[0].mxu0
        %2129 = vmatprep.mubr.bf16.mxu0 %v659
        %2130 = vmatmul.mubr.bf16.gmra.mrb[0].mxu0 %v381
        %v2131 = vpop.f32.mrb[0].mxu0
        %v2132 = vadd.f32 0.0, %v2131
        %v2133 = vpop.f32.mrb[0].mxu0
        %v2134 = vpop.f32.mrb[0].mxu0
        %v2135 = vadd.f32 0.0, %v2134
        %v2136 = vpop.f32.mrb[0].mxu0
        %2137 = vmatprep.mubr.bf16.mxu0 %v671
        %2138 = vmatmul.mubr.bf16.gmra.mrb[0].mxu0 %v382
        %v2139 = vpop.f32.mrb[0].mxu0
        %v2140 = vadd.f32 0.0, %v2139
        %v2141 = vpop.f32.mrb[0].mxu0
        %v2142 = vpop.f32.mrb[0].mxu0
        %v2143 = vadd.f32 0.0, %v2142
        %v2144 = vpop.f32.mrb[0].mxu0
        %2145 = vdwg.mxu0
        %2146 = vmatprep.subr.bf16.mxu0 0
        %2147 = vmatpush1.bf16.msra.mxu0 %v1953
        %2148 = vmatprep.subr.bf16.mxu0 0
        %2149 = vmatpush1.bf16.msra.mxu0 %v1954
        %2150 = vmatprep.subr.bf16.mxu0 0
        %2151 = vmatpush1.bf16.msra.mxu0 %v1955
        %2152 = vmatprep.subr.bf16.mxu0 0
        %2153 = vmatpush1.bf16.msra.mxu0 %v1956
        %2154 = vmatprep.subr.bf16.mxu0 0
        %2155 = vmatpush1.bf16.msra.mxu0 %v1957
        %2156 = vmatprep.subr.bf16.mxu0 0
        %2157 = vmatpush1.bf16.msra.mxu0 %v1958
        %2158 = vmatprep.subr.bf16.mxu0 0
        %2159 = vmatpush1.bf16.msra.mxu0 %v1959
        %2160 = vmatprep.subr.bf16.mxu0 0
        %2161 = vmatpush1.bf16.msra.mxu0 %v1960
        %2162 = vmatprep.subr.bf16.mxu0 0
        %2163 = vmatpush1.bf16.msra.mxu0 0
        %2164 = vmatprep.subr.bf16.mxu0 0
        %2165 = vmatpush1.bf16.msra.mxu0 0
        %2166 = vmatprep.subr.bf16.mxu0 0
        %2167 = vmatpush1.bf16.msra.mxu0 0
        %2168 = vmatprep.subr.bf16.mxu0 0
        %2169 = vmatpush1.bf16.msra.mxu0 0
        %2170 = vmatprep.subr.bf16.mxu0 0
        %2171 = vmatpush1.bf16.msra.mxu0 0
        %2172 = vmatprep.subr.bf16.mxu0 0
        %2173 = vmatpush1.bf16.msra.mxu0 0
        %2174 = vmatprep.subr.bf16.mxu0 0
        %2175 = vmatpush1.bf16.msra.mxu0 0
        %2176 = vmatprep.subr.bf16.mxu0 0
        %2177 = vmatpush1.bf16.msra.mxu0 0
        %2178 = vmatprep.mubr.bf16.mxu0 0
        %2179 = vmatmul.mubr.bf16.gmra.mrb[0].mxu0 %v699
        %v2180 = vpop.f32.mrb[0].mxu0
        %v2181 = vadd.f32 %v2020, %v2180
        %v2182 = vpop.f32.mrb[0].mxu0
        %v2183 = vpop.f32.mrb[0].mxu0
        %v2184 = vadd.f32 %v2023, %v2183
        %v2185 = vpop.f32.mrb[0].mxu0
        %2186 = vmatprep.mubr.bf16.mxu0 0
        %2187 = vmatmul.mubr.bf16.gmra.mrb[0].mxu0 %v702
        %v2188 = vpop.f32.mrb[0].mxu0
        %v2189 = vadd.f32 %v2028, %v2188
        %v2190 = vpop.f32.mrb[0].mxu0
        %v2191 = vpop.f32.mrb[0].mxu0
        %v2192 = vadd.f32 %v2031, %v2191
        %v2193 = vpop.f32.mrb[0].mxu0
        %2194 = vmatprep.mubr.bf16.mxu0 0
        %2195 = vmatmul.mubr.bf16.gmra.mrb[0].mxu0 %v705
        %v2196 = vpop.f32.mrb[0].mxu0
        %v2197 = vadd.f32 %v2036, %v2196
        %v2198 = vpop.f32.mrb[0].mxu0
        %v2199 = vpop.f32.mrb[0].mxu0
        %v2200 = vadd.f32 %v2039, %v2199
        %v2201 = vpop.f32.mrb[0].mxu0
        %2202 = vmatprep.mubr.bf16.mxu0 0
        %2203 = vmatmul.mubr.bf16.gmra.mrb[0].mxu0 %v708
        %v2204 = vpop.f32.mrb[0].mxu0
        %v2205 = vadd.f32 %v2044, %v2204
        %v2206 = vpop.f32.mrb[0].mxu0
        %v2207 = vpop.f32.mrb[0].mxu0
        %v2208 = vadd.f32 %v2047, %v2207
        %v2209 = vpop.f32.mrb[0].mxu0
        %2210 = vmatprep.mubr.bf16.mxu0 0
        %2211 = vmatmul.mubr.bf16.gmra.mrb[0].mxu0 %v711
        %v2212 = vpop.f32.mrb[0].mxu0
        %v2213 = vadd.f32 %v2052, %v2212
        %v2214 = vpop.f32.mrb[0].mxu0
        %v2215 = vpop.f32.mrb[0].mxu0
        %v2216 = vadd.f32 %v2055, %v2215
        %v2217 = vpop.f32.mrb[0].mxu0
        %2218 = vmatprep.mubr.bf16.mxu0 0
        %2219 = vmatmul.mubr.bf16.gmra.mrb[0].mxu0 %v714
        %v2220 = vpop.f32.mrb[0].mxu0
        %v2221 = vadd.f32 %v2060, %v2220
        %v2222 = vpop.f32.mrb[0].mxu0
        %v2223 = vpop.f32.mrb[0].mxu0
        %v2224 = vadd.f32 %v2063, %v2223
        %v2225 = vpop.f32.mrb[0].mxu0
        %2226 = vmatprep.mubr.bf16.mxu0 0
        %2227 = vmatmul.mubr.bf16.gmra.mrb[0].mxu0 %v717
        %v2228 = vpop.f32.mrb[0].mxu0
        %v2229 = vadd.f32 %v2068, %v2228
        %v2230 = vpop.f32.mrb[0].mxu0
        %v2231 = vpop.f32.mrb[0].mxu0
        %v2232 = vadd.f32 %v2071, %v2231
        %v2233 = vpop.f32.mrb[0].mxu0
        %2234 = vmatprep.mubr.bf16.mxu0 0
        %2235 = vmatmul.mubr.bf16.gmra.mrb[0].mxu0 %v720
        %v2236 = vpop.f32.mrb[0].mxu0
        %v2237 = vadd.f32 %v2076, %v2236
        %v2238 = vpop.f32.mrb[0].mxu0
        %v2239 = vpop.f32.mrb[0].mxu0
        %v2240 = vadd.f32 %v2079, %v2239
        %v2241 = vpop.f32.mrb[0].mxu0
        %2242 = vmatprep.mubr.bf16.mxu0 0
        %2243 = vmatmul.mubr.bf16.gmra.mrb[0].mxu0 %v723
        %v2244 = vpop.f32.mrb[0].mxu0
        %v2245 = vadd.f32 %v2084, %v2244
        %v2246 = vpop.f32.mrb[0].mxu0
        %v2247 = vpop.f32.mrb[0].mxu0
        %v2248 = vadd.f32 %v2087, %v2247
        %v2249 = vpop.f32.mrb[0].mxu0
        %2250 = vmatprep.mubr.bf16.mxu0 0
        %2251 = vmatmul.mubr.bf16.gmra.mrb[0].mxu0 %v726
        %v2252 = vpop.f32.mrb[0].mxu0
        %v2253 = vadd.f32 %v2092, %v2252
        %v2254 = vpop.f32.mrb[0].mxu0
        %v2255 = vpop.f32.mrb[0].mxu0
        %v2256 = vadd.f32 %v2095, %v2255
        %v2257 = vpop.f32.mrb[0].mxu0
        %2258 = vmatprep.mubr.bf16.mxu0 0
        %2259 = vmatmul.mubr.bf16.gmra.mrb[0].mxu0 %v729
        %v2260 = vpop.f32.mrb[0].mxu0
        %v2261 = vadd.f32 %v2100, %v2260
        %v2262 = vpop.f32.mrb[0].mxu0
        %v2263 = vpop.f32.mrb[0].mxu0
        %v2264 = vadd.f32 %v2103, %v2263
        %v2265 = vpop.f32.mrb[0].mxu0
        %2266 = vmatprep.mubr.bf16.mxu0 0
        %2267 = vmatmul.mubr.bf16.gmra.mrb[0].mxu0 %v732
        %v2268 = vpop.f32.mrb[0].mxu0
        %v2269 = vadd.f32 %v2108, %v2268
        %v2270 = vpop.f32.mrb[0].mxu0
        %v2271 = vpop.f32.mrb[0].mxu0
        %v2272 = vadd.f32 %v2111, %v2271
        %v2273 = vpop.f32.mrb[0].mxu0
        %2274 = vmatprep.mubr.bf16.mxu0 0
        %2275 = vmatmul.mubr.bf16.gmra.mrb[0].mxu0 %v735
        %v2276 = vpop.f32.mrb[0].mxu0
        %v2277 = vadd.f32 %v2116, %v2276
        %v2278 = vpop.f32.mrb[0].mxu0
        %v2279 = vpop.f32.mrb[0].mxu0
        %v2280 = vadd.f32 %v2119, %v2279
        %v2281 = vpop.f32.mrb[0].mxu0
        %2282 = vmatprep.mubr.bf16.mxu0 0
        %2283 = vmatmul.mubr.bf16.gmra.mrb[0].mxu0 %v738
        %v2284 = vpop.f32.mrb[0].mxu0
        %v2285 = vadd.f32 %v2124, %v2284
        %v2286 = vpop.f32.mrb[0].mxu0
        %v2287 = vpop.f32.mrb[0].mxu0
        %v2288 = vadd.f32 %v2127, %v2287
        %v2289 = vpop.f32.mrb[0].mxu0
        %2290 = vmatprep.mubr.bf16.mxu0 0
        %2291 = vmatmul.mubr.bf16.gmra.mrb[0].mxu0 %v741
        %v2292 = vpop.f32.mrb[0].mxu0
        %v2293 = vadd.f32 %v2132, %v2292
        %v2294 = vpop.f32.mrb[0].mxu0
        %v2295 = vpop.f32.mrb[0].mxu0
        %v2296 = vadd.f32 %v2135, %v2295
        %v2297 = vpop.f32.mrb[0].mxu0
        %2298 = vmatprep.mubr.bf16.mxu0 0
        %2299 = vmatmul.mubr.bf16.gmra.mrb[0].mxu0 %v744
        %v2300 = vpop.f32.mrb[0].mxu0
        %v2301 = vadd.f32 %v2140, %v2300
        %v2302 = vpop.f32.mrb[0].mxu0
        %v2303 = vpop.f32.mrb[0].mxu0
        %v2304 = vadd.f32 %v2143, %v2303
        %v2305 = vpop.f32.mrb[0].mxu0
        %2306 = vdwg.mxu0
        %v2307 = vadd.f32 %v1666, %v2181
        %v2308 = vadd.f32 %v1669, %v2184
        %v2309 = vadd.f32 %v1674, %v2189
        %v2310 = vadd.f32 %v1677, %v2192
        %v2311 = vadd.f32 %v1682, %v2197
        %v2312 = vadd.f32 %v1685, %v2200
        %v2313 = vadd.f32 %v1690, %v2205
        %v2314 = vadd.f32 %v1693, %v2208
        %v2315 = vadd.f32 %v1698, %v2213
        %v2316 = vadd.f32 %v1701, %v2216
        %v2317 = vadd.f32 %v1706, %v2221
        %v2318 = vadd.f32 %v1709, %v2224
        %v2319 = vadd.f32 %v1714, %v2229
        %v2320 = vadd.f32 %v1717, %v2232
        %v2321 = vadd.f32 %v1722, %v2237
        %v2322 = vadd.f32 %v1725, %v2240
        %v2323 = vadd.f32 %v1730, %v2245
        %v2324 = vadd.f32 %v1733, %v2248
        %v2325 = vadd.f32 %v1738, %v2253
        %v2326 = vadd.f32 %v1741, %v2256
        %v2327 = vadd.f32 %v1746, %v2261
        %v2328 = vadd.f32 %v1749, %v2264
        %v2329 = vadd.f32 %v1754, %v2269
        %v2330 = vadd.f32 %v1757, %v2272
        %v2331 = vadd.f32 %v1762, %v2277
        %v2332 = vadd.f32 %v1765, %v2280
        %v2333 = vadd.f32 %v1770, %v2285
        %v2334 = vadd.f32 %v1773, %v2288
        %v2335 = vadd.f32 %v1778, %v2293
        %v2336 = vadd.f32 %v1781, %v2296
        %v2337 = vadd.f32 %v1786, %v2301
        %v2338 = vadd.f32 %v1789, %v2304
        %v2339 = vld [vmem:[%s4] sm:$0x1]
        %v2340 = vlaneseq
        %v2341 = vshrl.u32 %v2340, 7
        %v2342 = vsub.s32 0, %v2341
        %v2343 = vrot.slane %v2339, %v2342
        %v2344 = vmul.f32 %v2307, %v2343
        %v2345 = vmul.f32 %v2308, %v2343
        %v2346 = vmul.f32 %v2309, %v2343
        %v2347 = vmul.f32 %v2310, %v2343
        %v2348 = vmul.f32 %v2311, %v2343
        %v2349 = vmul.f32 %v2312, %v2343
        %v2350 = vmul.f32 %v2313, %v2343
        %v2351 = vmul.f32 %v2314, %v2343
        %v2352 = vmul.f32 %v2315, %v2343
        %v2353 = vmul.f32 %v2316, %v2343
        %v2354 = vmul.f32 %v2317, %v2343
        %v2355 = vmul.f32 %v2318, %v2343
        %v2356 = vmul.f32 %v2319, %v2343
        %v2357 = vmul.f32 %v2320, %v2343
        %v2358 = vmul.f32 %v2321, %v2343
        %v2359 = vmul.f32 %v2322, %v2343
        %v2360 = vmul.f32 %v2323, %v2343
        %v2361 = vmul.f32 %v2324, %v2343
        %v2362 = vmul.f32 %v2325, %v2343
        %v2363 = vmul.f32 %v2326, %v2343
        %v2364 = vmul.f32 %v2327, %v2343
        %v2365 = vmul.f32 %v2328, %v2343
        %v2366 = vmul.f32 %v2329, %v2343
        %v2367 = vmul.f32 %v2330, %v2343
        %v2368 = vmul.f32 %v2331, %v2343
        %v2369 = vmul.f32 %v2332, %v2343
        %v2370 = vmul.f32 %v2333, %v2343
        %v2371 = vmul.f32 %v2334, %v2343
        %v2372 = vmul.f32 %v2335, %v2343
        %v2373 = vmul.f32 %v2336, %v2343
        %v2374 = vmul.f32 %v2337, %v2343
        %v2375 = vmul.f32 %v2338, %v2343
        %v2376 = vld [vmem:[%s4 + $0x1] sm:$0x1]
        %v2377 = vlaneseq
        %v2378 = vshrl.u32 %v2377, 7
        %v2379 = vsub.s32 0, %v2378
        %v2380 = vrot.slane %v2376, %v2379
        %v2381 = vadd.f32 %v2344, %v2380
        %v2382 = vadd.f32 %v2345, %v2380
        %v2383 = vadd.f32 %v2346, %v2380
        %v2384 = vadd.f32 %v2347, %v2380
        %v2385 = vadd.f32 %v2348, %v2380
        %v2386 = vadd.f32 %v2349, %v2380
        %v2387 = vadd.f32 %v2350, %v2380
        %v2388 = vadd.f32 %v2351, %v2380
        %v2389 = vadd.f32 %v2352, %v2380
        %v2390 = vadd.f32 %v2353, %v2380
        %v2391 = vadd.f32 %v2354, %v2380
        %v2392 = vadd.f32 %v2355, %v2380
        %v2393 = vadd.f32 %v2356, %v2380
        %v2394 = vadd.f32 %v2357, %v2380
        %v2395 = vadd.f32 %v2358, %v2380
        %v2396 = vadd.f32 %v2359, %v2380
        %v2397 = vadd.f32 %v2360, %v2380
        %v2398 = vadd.f32 %v2361, %v2380
        %v2399 = vadd.f32 %v2362, %v2380
        %v2400 = vadd.f32 %v2363, %v2380
        %v2401 = vadd.f32 %v2364, %v2380
        %v2402 = vadd.f32 %v2365, %v2380
        %v2403 = vadd.f32 %v2366, %v2380
        %v2404 = vadd.f32 %v2367, %v2380
        %v2405 = vadd.f32 %v2368, %v2380
        %v2406 = vadd.f32 %v2369, %v2380
        %v2407 = vadd.f32 %v2370, %v2380
        %v2408 = vadd.f32 %v2371, %v2380
        %v2409 = vadd.f32 %v2372, %v2380
        %v2410 = vadd.f32 %v2373, %v2380
        %v2411 = vadd.f32 %v2374, %v2380
        %v2412 = vadd.f32 %v2375, %v2380
        %v2413 = vmax.f32 %v2381, 0.0
        %v2414 = vmax.f32 %v2382, 0.0
        %v2415 = vmax.f32 %v2383, 0.0
        %v2416 = vmax.f32 %v2384, 0.0
        %v2417 = vmax.f32 %v2385, 0.0
        %v2418 = vmax.f32 %v2386, 0.0
        %v2419 = vmax.f32 %v2387, 0.0
        %v2420 = vmax.f32 %v2388, 0.0
        %v2421 = vmax.f32 %v2389, 0.0
        %v2422 = vmax.f32 %v2390, 0.0
        %v2423 = vmax.f32 %v2391, 0.0
        %v2424 = vmax.f32 %v2392, 0.0
        %v2425 = vmax.f32 %v2393, 0.0
        %v2426 = vmax.f32 %v2394, 0.0
        %v2427 = vmax.f32 %v2395, 0.0
        %v2428 = vmax.f32 %v2396, 0.0
        %v2429 = vmax.f32 %v2397, 0.0
        %v2430 = vmax.f32 %v2398, 0.0
        %v2431 = vmax.f32 %v2399, 0.0
        %v2432 = vmax.f32 %v2400, 0.0
        %v2433 = vmax.f32 %v2401, 0.0
        %v2434 = vmax.f32 %v2402, 0.0
        %v2435 = vmax.f32 %v2403, 0.0
        %v2436 = vmax.f32 %v2404, 0.0
        %v2437 = vmax.f32 %v2405, 0.0
        %v2438 = vmax.f32 %v2406, 0.0
        %v2439 = vmax.f32 %v2407, 0.0
        %v2440 = vmax.f32 %v2408, 0.0
        %v2441 = vmax.f32 %v2409, 0.0
        %v2442 = vmax.f32 %v2410, 0.0
        %v2443 = vmax.f32 %v2411, 0.0
        %v2444 = vmax.f32 %v2412, 0.0
        %2445 = vst [vmem:[#allocation2] sm:$0xff] 0.0
        %2446 = vst [vmem:[#allocation2 + $0x8] sm:$0xff] 0.0
        %2447 = vst [vmem:[#allocation2 + $0x10] sm:$0x3] 0.0
        %2448 = vst [vmem:[#allocation2 + $0x18] sm:$0xff] 0.0
        %2449 = vst [vmem:[#allocation2 + $0x20] sm:$0xff] 0.0
        %2450 = vst [vmem:[#allocation2 + $0x28] sm:$0x3] 0.0
        %2451 = vst [vmem:[#allocation2 + $0x30] sm:$0xff] 0.0
        %2452 = vst [vmem:[#allocation2 + $0x38] sm:$0xff] 0.0
        %2453 = vst [vmem:[#allocation2 + $0x40] sm:$0x3] 0.0
        %2454 = vst [vmem:[#allocation2 + $0x48] sm:$0xff] 0.0
        %2455 = vst [vmem:[#allocation2 + $0x50] sm:$0xff] 0.0
        %2456 = vst [vmem:[#allocation2 + $0x58] sm:$0x3] 0.0
        %2457 = vst [vmem:[#allocation2 + $0x60] sm:$0xff] 0.0
        %2458 = vst [vmem:[#allocation2 + $0x68] sm:$0xff] 0.0
        %2459 = vst [vmem:[#allocation2 + $0x70] sm:$0x3] 0.0
        %2460 = vst [vmem:[#allocation2 + $0x78] sm:$0xff] 0.0
        %2461 = vst [vmem:[#allocation2 + $0x80] sm:$0xff] 0.0
        %2462 = vst [vmem:[#allocation2 + $0x88] sm:$0x3] 0.0
        %2463 = vst [vmem:[#allocation2 + $0x90] sm:$0xff] 0.0
        %2464 = vst [vmem:[#allocation2 + $0x98] sm:$0xff] 0.0
        %2465 = vst [vmem:[#allocation2 + $0xa0] sm:$0x3] 0.0
        %2466 = vst [vmem:[#allocation2 + $0xa8] sm:$0xff] 0.0
        %2467 = vst [vmem:[#allocation2 + $0xb0] sm:$0xff] 0.0
        %2468 = vst [vmem:[#allocation2 + $0xb8] sm:$0x3] 0.0
        %2469 = vst [vmem:[#allocation2 + $0xc0] sm:$0xff] 0.0
        %2470 = vst [vmem:[#allocation2 + $0xc8] sm:$0xff] 0.0
        %2471 = vst [vmem:[#allocation2 + $0xd0] sm:$0x3] 0.0
        %2472 = vst [vmem:[#allocation2 + $0xd8] sm:$0xff] 0.0
        %2473 = vst [vmem:[#allocation2 + $0xe0] sm:$0xff] 0.0
        %2474 = vst [vmem:[#allocation2 + $0xe8] sm:$0x3] 0.0
        %2475 = vst [vmem:[#allocation2 + $0xf0] sm:$0xff] 0.0
        %2476 = vst [vmem:[#allocation2 + $0xf8] sm:$0xff] 0.0
        %2477 = vst [vmem:[#allocation2 + $0x100] sm:$0x3] 0.0
        %2478 = vst [vmem:[#allocation2 + $0x108] sm:$0xff] 0.0
        %2479 = vst [vmem:[#allocation2 + $0x110] sm:$0xff] 0.0
        %2480 = vst [vmem:[#allocation2 + $0x118] sm:$0x3] 0.0
        %2481 = vst [vmem:[#allocation2 + $0x120] sm:$0xff] 0.0
        %2482 = vst [vmem:[#allocation2 + $0x128] sm:$0xff] 0.0
        %2483 = vst [vmem:[#allocation2 + $0x130] sm:$0x3] 0.0
        %2484 = vst [vmem:[#allocation2 + $0x138] sm:$0xff] 0.0
        %2485 = vst [vmem:[#allocation2 + $0x140] sm:$0xff] 0.0
        %2486 = vst [vmem:[#allocation2 + $0x148] sm:$0x3] 0.0
        %2487 = vst [vmem:[#allocation2 + $0x150] sm:$0xff] 0.0
        %2488 = vst [vmem:[#allocation2 + $0x158] sm:$0xff] 0.0
        %2489 = vst [vmem:[#allocation2 + $0x160] sm:$0x3] 0.0
        %2490 = vst [vmem:[#allocation2 + $0x168] sm:$0xff] 0.0
        %2491 = vst [vmem:[#allocation2 + $0x170] sm:$0xff] 0.0
        %2492 = vst [vmem:[#allocation2 + $0x178] sm:$0x3] 0.0
        %2493 = vst [vmem:[#allocation2 + $0x180] sm:$0xff] 0.0
        %2494 = vst [vmem:[#allocation2 + $0x188] sm:$0xff] 0.0
        %2495 = vst [vmem:[#allocation2 + $0x190] sm:$0x3] 0.0
        %2496 = vst [vmem:[#allocation2 + $0x198] sm:$0xff] 0.0
        %2497 = vst [vmem:[#allocation2 + $0x1a0] sm:$0xff] 0.0
        %2498 = vst [vmem:[#allocation2 + $0x1a8] sm:$0x3] 0.0
        %s2499 = scalar_lea.vmem [#allocation2], 24
        %2500 = vst [vmem:[%s2499 + $0x1] sm:$0xff] %v2413
        %2501 = vst [vmem:[%s2499 + $0x9] sm:$0xff] %v2414
        %2502 = vst [vmem:[%s2499 + $0x19] sm:$0xff] %v2415
        %2503 = vst [vmem:[%s2499 + $0x21] sm:$0xff] %v2416
        %2504 = vst [vmem:[%s2499 + $0x31] sm:$0xff] %v2417
        %2505 = vst [vmem:[%s2499 + $0x39] sm:$0xff] %v2418
        %2506 = vst [vmem:[%s2499 + $0x49] sm:$0xff] %v2419
        %2507 = vst [vmem:[%s2499 + $0x51] sm:$0xff] %v2420
        %2508 = vst [vmem:[%s2499 + $0x61] sm:$0xff] %v2421
        %2509 = vst [vmem:[%s2499 + $0x69] sm:$0xff] %v2422
        %2510 = vst [vmem:[%s2499 + $0x79] sm:$0xff] %v2423
        %2511 = vst [vmem:[%s2499 + $0x81] sm:$0xff] %v2424
        %2512 = vst [vmem:[%s2499 + $0x91] sm:$0xff] %v2425
        %2513 = vst [vmem:[%s2499 + $0x99] sm:$0xff] %v2426
        %2514 = vst [vmem:[%s2499 + $0xa9] sm:$0xff] %v2427
        %2515 = vst [vmem:[%s2499 + $0xb1] sm:$0xff] %v2428
        %2516 = vst [vmem:[%s2499 + $0xc1] sm:$0xff] %v2429
        %2517 = vst [vmem:[%s2499 + $0xc9] sm:$0xff] %v2430
        %2518 = vst [vmem:[%s2499 + $0xd9] sm:$0xff] %v2431
        %2519 = vst [vmem:[%s2499 + $0xe1] sm:$0xff] %v2432
        %2520 = vst [vmem:[%s2499 + $0xf1] sm:$0xff] %v2433
        %2521 = vst [vmem:[%s2499 + $0xf9] sm:$0xff] %v2434
        %2522 = vst [vmem:[%s2499 + $0x109] sm:$0xff] %v2435
        %2523 = vst [vmem:[%s2499 + $0x111] sm:$0xff] %v2436
        %2524 = vst [vmem:[%s2499 + $0x121] sm:$0xff] %v2437
        %2525 = vst [vmem:[%s2499 + $0x129] sm:$0xff] %v2438
        %2526 = vst [vmem:[%s2499 + $0x139] sm:$0xff] %v2439
        %2527 = vst [vmem:[%s2499 + $0x141] sm:$0xff] %v2440
        %2528 = vst [vmem:[%s2499 + $0x151] sm:$0xff] %v2441
        %2529 = vst [vmem:[%s2499 + $0x159] sm:$0xff] %v2442
        %2530 = vst [vmem:[%s2499 + $0x169] sm:$0xff] %v2443
        %2531 = vst [vmem:[%s2499 + $0x171] sm:$0xff] %v2444
        %v2532 = vld [vmem:[#allocation2] sm:$0xff]
        %v2533 = vld [vmem:[#allocation2 + $0x8] sm:$0xff]
        %v2534 = vld [vmem:[#allocation2 + $0x10] sm:$0x3]
        %v2535 = vld [vmem:[#allocation2 + $0x18] sm:$0xff]
        %v2536 = vld [vmem:[#allocation2 + $0x20] sm:$0xff]
        %v2537 = vld [vmem:[#allocation2 + $0x28] sm:$0x3]
        %v2538 = vld [vmem:[#allocation2 + $0x30] sm:$0xff]
        %v2539 = vld [vmem:[#allocation2 + $0x38] sm:$0xff]
        %v2540 = vld [vmem:[#allocation2 + $0x40] sm:$0x3]
        %v2541 = vld [vmem:[#allocation2 + $0x48] sm:$0xff]
        %v2542 = vld [vmem:[#allocation2 + $0x50] sm:$0xff]
        %v2543 = vld [vmem:[#allocation2 + $0x58] sm:$0x3]
        %v2544 = vld [vmem:[#allocation2 + $0x60] sm:$0xff]
        %v2545 = vld [vmem:[#allocation2 + $0x68] sm:$0xff]
        %v2546 = vld [vmem:[#allocation2 + $0x70] sm:$0x3]
        %v2547 = vld [vmem:[#allocation2 + $0x78] sm:$0xff]
        %v2548 = vld [vmem:[#allocation2 + $0x80] sm:$0xff]
        %v2549 = vld [vmem:[#allocation2 + $0x88] sm:$0x3]
        %v2550 = vld [vmem:[#allocation2 + $0x90] sm:$0xff]
        %v2551 = vld [vmem:[#allocation2 + $0x98] sm:$0xff]
        %v2552 = vld [vmem:[#allocation2 + $0xa0] sm:$0x3]
        %v2553 = vld [vmem:[#allocation2 + $0xa8] sm:$0xff]
        %v2554 = vld [vmem:[#allocation2 + $0xb0] sm:$0xff]
        %v2555 = vld [vmem:[#allocation2 + $0xb8] sm:$0x3]
        %v2556 = vld [vmem:[#allocation2 + $0xc0] sm:$0xff]
        %v2557 = vld [vmem:[#allocation2 + $0xc8] sm:$0xff]
        %v2558 = vld [vmem:[#allocation2 + $0xd0] sm:$0x3]
        %v2559 = vld [vmem:[#allocation2 + $0xd8] sm:$0xff]
        %v2560 = vld [vmem:[#allocation2 + $0xe0] sm:$0xff]
        %v2561 = vld [vmem:[#allocation2 + $0xe8] sm:$0x3]
        %v2562 = vld [vmem:[#allocation2 + $0xf0] sm:$0xff]
        %v2563 = vld [vmem:[#allocation2 + $0xf8] sm:$0xff]
        %v2564 = vld [vmem:[#allocation2 + $0x100] sm:$0x3]
        %v2565 = vld [vmem:[#allocation2 + $0x108] sm:$0xff]
        %v2566 = vld [vmem:[#allocation2 + $0x110] sm:$0xff]
        %v2567 = vld [vmem:[#allocation2 + $0x118] sm:$0x3]
        %v2568 = vld [vmem:[#allocation2 + $0x120] sm:$0xff]
        %v2569 = vld [vmem:[#allocation2 + $0x128] sm:$0xff]
        %v2570 = vld [vmem:[#allocation2 + $0x130] sm:$0x3]
        %v2571 = vld [vmem:[#allocation2 + $0x138] sm:$0xff]
        %v2572 = vld [vmem:[#allocation2 + $0x140] sm:$0xff]
        %v2573 = vld [vmem:[#allocation2 + $0x148] sm:$0x3]
        %v2574 = vld [vmem:[#allocation2 + $0x150] sm:$0xff]
        %v2575 = vld [vmem:[#allocation2 + $0x158] sm:$0xff]
        %v2576 = vld [vmem:[#allocation2 + $0x160] sm:$0x3]
        %v2577 = vld [vmem:[#allocation2 + $0x168] sm:$0xff]
        %v2578 = vld [vmem:[#allocation2 + $0x170] sm:$0xff]
        %v2579 = vld [vmem:[#allocation2 + $0x178] sm:$0x3]
        %v2580 = vld [vmem:[#allocation2 + $0x180] sm:$0xff]
        %v2581 = vld [vmem:[#allocation2 + $0x188] sm:$0xff]
        %v2582 = vld [vmem:[#allocation2 + $0x190] sm:$0x3]
        %v2583 = vld [vmem:[#allocation2 + $0x198] sm:$0xff]
        %v2584 = vld [vmem:[#allocation2 + $0x1a0] sm:$0xff]
        %v2585 = vld [vmem:[#allocation2 + $0x1a8] sm:$0x3]
        %v2586 = vpack.c.bf16 %v2533, %v2532
        %v2587 = vpack.c.bf16 %v2534, %v2534
        %v2588 = vpack.c.bf16 %v2536, %v2535
        %v2589 = vpack.c.bf16 %v2537, %v2537
        %v2590 = vpack.c.bf16 %v2539, %v2538
        %v2591 = vpack.c.bf16 %v2540, %v2540
        %v2592 = vpack.c.bf16 %v2542, %v2541
        %v2593 = vpack.c.bf16 %v2543, %v2543
        %v2594 = vpack.c.bf16 %v2545, %v2544
        %v2595 = vpack.c.bf16 %v2546, %v2546
        %v2596 = vpack.c.bf16 %v2548, %v2547
        %v2597 = vpack.c.bf16 %v2549, %v2549
        %v2598 = vpack.c.bf16 %v2551, %v2550
        %v2599 = vpack.c.bf16 %v2552, %v2552
        %v2600 = vpack.c.bf16 %v2554, %v2553
        %v2601 = vpack.c.bf16 %v2555, %v2555
        %v2602 = vpack.c.bf16 %v2557, %v2556
        %v2603 = vpack.c.bf16 %v2558, %v2558
        %v2604 = vpack.c.bf16 %v2560, %v2559
        %v2605 = vpack.c.bf16 %v2561, %v2561
        %v2606 = vpack.c.bf16 %v2563, %v2562
        %v2607 = vpack.c.bf16 %v2564, %v2564
        %v2608 = vpack.c.bf16 %v2566, %v2565
        %v2609 = vpack.c.bf16 %v2567, %v2567
        %v2610 = vpack.c.bf16 %v2569, %v2568
        %v2611 = vpack.c.bf16 %v2570, %v2570
        %v2612 = vpack.c.bf16 %v2572, %v2571
        %v2613 = vpack.c.bf16 %v2573, %v2573
        %v2614 = vpack.c.bf16 %v2575, %v2574
        %v2615 = vpack.c.bf16 %v2576, %v2576
        %v2616 = vpack.c.bf16 %v2578, %v2577
        %v2617 = vpack.c.bf16 %v2579, %v2579
        %v2618 = vpack.c.bf16 %v2581, %v2580
        %v2619 = vpack.c.bf16 %v2582, %v2582
        %v2620 = vpack.c.bf16 %v2584, %v2583
        %v2621 = vpack.c.bf16 %v2585, %v2585
        %v2623 = vshrl.u32 %v2586, 16
        %v2625 = vshll.u32 %v2586, 16
        %v2627 = vrot.slane %v2625, 1
        %v2628 = vor.u32 %v2623, %v2627
        %v2630 = vshll.u32 %v2587, 16
        %v2632 = vrot.slane %v2630, 1
        %v2633 = vsel %vm455, %v2628, %v2632
        %v2635 = vshrl.u32 %v2588, 16
        %v2637 = vshll.u32 %v2588, 16
        %v2639 = vrot.slane %v2637, 1
        %v2640 = vor.u32 %v2635, %v2639
        %v2642 = vshll.u32 %v2589, 16
        %v2644 = vrot.slane %v2642, 1
        %v2645 = vsel %vm455, %v2640, %v2644
        %v2647 = vshrl.u32 %v2590, 16
        %v2649 = vshll.u32 %v2590, 16
        %v2651 = vrot.slane %v2649, 1
        %v2652 = vor.u32 %v2647, %v2651
        %v2654 = vshll.u32 %v2591, 16
        %v2656 = vrot.slane %v2654, 1
        %v2657 = vsel %vm455, %v2652, %v2656
        %v2659 = vshrl.u32 %v2592, 16
        %v2661 = vshll.u32 %v2592, 16
        %v2663 = vrot.slane %v2661, 1
        %v2664 = vor.u32 %v2659, %v2663
        %v2666 = vshll.u32 %v2593, 16
        %v2668 = vrot.slane %v2666, 1
        %v2669 = vsel %vm455, %v2664, %v2668
        %v2671 = vshrl.u32 %v2594, 16
        %v2673 = vshll.u32 %v2594, 16
        %v2675 = vrot.slane %v2673, 1
        %v2676 = vor.u32 %v2671, %v2675
        %v2678 = vshll.u32 %v2595, 16
        %v2680 = vrot.slane %v2678, 1
        %v2681 = vsel %vm455, %v2676, %v2680
        %v2683 = vshrl.u32 %v2596, 16
        %v2685 = vshll.u32 %v2596, 16
        %v2687 = vrot.slane %v2685, 1
        %v2688 = vor.u32 %v2683, %v2687
        %v2690 = vshll.u32 %v2597, 16
        %v2692 = vrot.slane %v2690, 1
        %v2693 = vsel %vm455, %v2688, %v2692
        %v2695 = vshrl.u32 %v2598, 16
        %v2697 = vshll.u32 %v2598, 16
        %v2699 = vrot.slane %v2697, 1
        %v2700 = vor.u32 %v2695, %v2699
        %v2702 = vshll.u32 %v2599, 16
        %v2704 = vrot.slane %v2702, 1
        %v2705 = vsel %vm455, %v2700, %v2704
        %v2707 = vshrl.u32 %v2600, 16
        %v2709 = vshll.u32 %v2600, 16
        %v2711 = vrot.slane %v2709, 1
        %v2712 = vor.u32 %v2707, %v2711
        %v2714 = vshll.u32 %v2601, 16
        %v2716 = vrot.slane %v2714, 1
        %v2717 = vsel %vm455, %v2712, %v2716
        %v2719 = vshrl.u32 %v2602, 16
        %v2721 = vshll.u32 %v2602, 16
        %v2723 = vrot.slane %v2721, 1
        %v2724 = vor.u32 %v2719, %v2723
        %v2726 = vshll.u32 %v2603, 16
        %v2728 = vrot.slane %v2726, 1
        %v2729 = vsel %vm455, %v2724, %v2728
        %v2731 = vshrl.u32 %v2604, 16
        %v2733 = vshll.u32 %v2604, 16
        %v2735 = vrot.slane %v2733, 1
        %v2736 = vor.u32 %v2731, %v2735
        %v2738 = vshll.u32 %v2605, 16
        %v2740 = vrot.slane %v2738, 1
        %v2741 = vsel %vm455, %v2736, %v2740
        %v2743 = vshrl.u32 %v2606, 16
        %v2745 = vshll.u32 %v2606, 16
        %v2747 = vrot.slane %v2745, 1
        %v2748 = vor.u32 %v2743, %v2747
        %v2750 = vshll.u32 %v2607, 16
        %v2752 = vrot.slane %v2750, 1
        %v2753 = vsel %vm455, %v2748, %v2752
        %v2755 = vshrl.u32 %v2608, 16
        %v2757 = vshll.u32 %v2608, 16
        %v2759 = vrot.slane %v2757, 1
        %v2760 = vor.u32 %v2755, %v2759
        %v2762 = vshll.u32 %v2609, 16
        %v2764 = vrot.slane %v2762, 1
        %v2765 = vsel %vm455, %v2760, %v2764
        %v2767 = vshrl.u32 %v2610, 16
        %v2769 = vshll.u32 %v2610, 16
        %v2771 = vrot.slane %v2769, 1
        %v2772 = vor.u32 %v2767, %v2771
        %v2774 = vshll.u32 %v2611, 16
        %v2776 = vrot.slane %v2774, 1
        %v2777 = vsel %vm455, %v2772, %v2776
        %v2779 = vshrl.u32 %v2612, 16
        %v2781 = vshll.u32 %v2612, 16
        %v2783 = vrot.slane %v2781, 1
        %v2784 = vor.u32 %v2779, %v2783
        %v2786 = vshll.u32 %v2613, 16
        %v2788 = vrot.slane %v2786, 1
        %v2789 = vsel %vm455, %v2784, %v2788
        %v2791 = vshrl.u32 %v2614, 16
        %v2793 = vshll.u32 %v2614, 16
        %v2795 = vrot.slane %v2793, 1
        %v2796 = vor.u32 %v2791, %v2795
        %v2798 = vshll.u32 %v2615, 16
        %v2800 = vrot.slane %v2798, 1
        %v2801 = vsel %vm455, %v2796, %v2800
        %v2803 = vshrl.u32 %v2616, 16
        %v2805 = vshll.u32 %v2616, 16
        %v2807 = vrot.slane %v2805, 1
        %v2808 = vor.u32 %v2803, %v2807
        %v2810 = vshll.u32 %v2617, 16
        %v2812 = vrot.slane %v2810, 1
        %v2813 = vsel %vm455, %v2808, %v2812
        %v2815 = vshrl.u32 %v2618, 16
        %v2817 = vshll.u32 %v2618, 16
        %v2819 = vrot.slane %v2817, 1
        %v2820 = vor.u32 %v2815, %v2819
        %v2822 = vshll.u32 %v2619, 16
        %v2824 = vrot.slane %v2822, 1
        %v2825 = vsel %vm455, %v2820, %v2824
        %v2827 = vshrl.u32 %v2620, 16
        %v2829 = vshll.u32 %v2620, 16
        %v2831 = vrot.slane %v2829, 1
        %v2832 = vor.u32 %v2827, %v2831
        %v2834 = vshll.u32 %v2621, 16
        %v2836 = vrot.slane %v2834, 1
        %v2837 = vsel %vm455, %v2832, %v2836
        %v2892 = vrot.slane %v2586, 1
        %v2893 = vrot.slane %v2587, 1
        %v2894 = vsel %vm690, %v2892, %v2893
        %v2895 = vrot.slane %v2588, 1
        %v2896 = vrot.slane %v2589, 1
        %v2897 = vsel %vm690, %v2895, %v2896
        %v2898 = vrot.slane %v2590, 1
        %v2899 = vrot.slane %v2591, 1
        %v2900 = vsel %vm690, %v2898, %v2899
        %v2901 = vrot.slane %v2592, 1
        %v2902 = vrot.slane %v2593, 1
        %v2903 = vsel %vm690, %v2901, %v2902
        %v2904 = vrot.slane %v2594, 1
        %v2905 = vrot.slane %v2595, 1
        %v2906 = vsel %vm690, %v2904, %v2905
        %v2907 = vrot.slane %v2596, 1
        %v2908 = vrot.slane %v2597, 1
        %v2909 = vsel %vm690, %v2907, %v2908
        %v2910 = vrot.slane %v2598, 1
        %v2911 = vrot.slane %v2599, 1
        %v2912 = vsel %vm690, %v2910, %v2911
        %v2913 = vrot.slane %v2600, 1
        %v2914 = vrot.slane %v2601, 1
        %v2915 = vsel %vm690, %v2913, %v2914
        %v2916 = vrot.slane %v2602, 1
        %v2917 = vrot.slane %v2603, 1
        %v2918 = vsel %vm690, %v2916, %v2917
        %v2919 = vrot.slane %v2604, 1
        %v2920 = vrot.slane %v2605, 1
        %v2921 = vsel %vm690, %v2919, %v2920
        %v2922 = vrot.slane %v2606, 1
        %v2923 = vrot.slane %v2607, 1
        %v2924 = vsel %vm690, %v2922, %v2923
        %v2925 = vrot.slane %v2608, 1
        %v2926 = vrot.slane %v2609, 1
        %v2927 = vsel %vm690, %v2925, %v2926
        %v2928 = vrot.slane %v2610, 1
        %v2929 = vrot.slane %v2611, 1
        %v2930 = vsel %vm690, %v2928, %v2929
        %v2931 = vrot.slane %v2612, 1
        %v2932 = vrot.slane %v2613, 1
        %v2933 = vsel %vm690, %v2931, %v2932
        %v2934 = vrot.slane %v2614, 1
        %v2935 = vrot.slane %v2615, 1
        %v2936 = vsel %vm690, %v2934, %v2935
        %v2937 = vrot.slane %v2616, 1
        %v2938 = vrot.slane %v2617, 1
        %v2939 = vsel %vm690, %v2937, %v2938
        %v2940 = vrot.slane %v2618, 1
        %v2941 = vrot.slane %v2619, 1
        %v2942 = vsel %vm690, %v2940, %v2941
        %v2943 = vrot.slane %v2620, 1
        %v2944 = vrot.slane %v2621, 1
        %v2945 = vsel %vm690, %v2943, %v2944
        %v2964 = vld [vmem:[#allocation3] sm:$0xf]
        %v2965 = vld [vmem:[#allocation3 + $0x4] sm:$0xf]
        %v2966 = vld [vmem:[#allocation3 + $0x8] sm:$0xf]
        %v2967 = vld [vmem:[#allocation3 + $0xc] sm:$0xf]
        %v2968 = vld [vmem:[#allocation3 + $0x10] sm:$0xf]
        %v2969 = vld [vmem:[#allocation3 + $0x14] sm:$0xf]
        %v2970 = vld [vmem:[#allocation3 + $0x18] sm:$0xf]
        %v2971 = vld [vmem:[#allocation3 + $0x1c] sm:$0xf]
        %v2972 = vld [vmem:[#allocation3 + $0x20] sm:$0xf]
        %v2973 = vld [vmem:[#allocation3 + $0x24] sm:$0xf]
        %v2974 = vld [vmem:[#allocation3 + $0x28] sm:$0xf]
        %v2975 = vld [vmem:[#allocation3 + $0x2c] sm:$0xf]
        %v2976 = vld [vmem:[#allocation3 + $0x30] sm:$0xf]
        %v2977 = vld [vmem:[#allocation3 + $0x34] sm:$0xf]
        %v2978 = vld [vmem:[#allocation3 + $0x38] sm:$0xf]
        %v2979 = vld [vmem:[#allocation3 + $0x3c] sm:$0xf]
        %v2980 = vld [vmem:[#allocation3 + $0x40] sm:$0xf]
        %v2981 = vld [vmem:[#allocation3 + $0x44] sm:$0xf]
        %v2982 = vld [vmem:[#allocation3 + $0x48] sm:$0xf]
        %v2983 = vld [vmem:[#allocation3 + $0x4c] sm:$0xf]
        %v2984 = vld [vmem:[#allocation3 + $0x50] sm:$0xf]
        %v2985 = vld [vmem:[#allocation3 + $0x54] sm:$0xf]
        %v2986 = vld [vmem:[#allocation3 + $0x58] sm:$0xf]
        %v2987 = vld [vmem:[#allocation3 + $0x5c] sm:$0xf]
        %v2988 = vld [vmem:[#allocation3 + $0x60] sm:$0xf]
        %v2989 = vld [vmem:[#allocation3 + $0x64] sm:$0xf]
        %v2990 = vld [vmem:[#allocation3 + $0x68] sm:$0xf]
        %v2991 = vld [vmem:[#allocation3 + $0x6c] sm:$0xf]
        %v2992 = vld [vmem:[#allocation3 + $0x70] sm:$0xf]
        %v2993 = vld [vmem:[#allocation3 + $0x74] sm:$0xf]
        %v2994 = vld [vmem:[#allocation3 + $0x78] sm:$0xf]
        %v2995 = vld [vmem:[#allocation3 + $0x7c] sm:$0xf]
        %v2996 = vld [vmem:[#allocation3 + $0x80] sm:$0xf]
        %v2997 = vld [vmem:[#allocation3 + $0x84] sm:$0xf]
        %v2998 = vld [vmem:[#allocation3 + $0x88] sm:$0xf]
        %v2999 = vld [vmem:[#allocation3 + $0x8c] sm:$0xf]
        %v3000 = vld [vmem:[#allocation3 + $0x90] sm:$0xf]
        %v3001 = vld [vmem:[#allocation3 + $0x94] sm:$0xf]
        %v3002 = vld [vmem:[#allocation3 + $0x98] sm:$0xf]
        %v3003 = vld [vmem:[#allocation3 + $0x9c] sm:$0xf]
        %v3004 = vld [vmem:[#allocation3 + $0xa0] sm:$0xf]
        %v3005 = vld [vmem:[#allocation3 + $0xa4] sm:$0xf]
        %v3006 = vld [vmem:[#allocation3 + $0xa8] sm:$0xf]
        %v3007 = vld [vmem:[#allocation3 + $0xac] sm:$0xf]
        %v3008 = vld [vmem:[#allocation3 + $0xb0] sm:$0xf]
        %v3009 = vld [vmem:[#allocation3 + $0xb4] sm:$0xf]
        %v3010 = vld [vmem:[#allocation3 + $0xb8] sm:$0xf]
        %v3011 = vld [vmem:[#allocation3 + $0xbc] sm:$0xf]
        %s3012 = scalar_lea.vmem [#allocation3], 192
        %v3013 = vld [vmem:[%s3012] sm:$0xf]
        %v3014 = vld [vmem:[%s3012 + $0x4] sm:$0xf]
        %v3015 = vld [vmem:[%s3012 + $0x8] sm:$0xf]
        %v3016 = vld [vmem:[%s3012 + $0xc] sm:$0xf]
        %v3017 = vld [vmem:[%s3012 + $0x10] sm:$0xf]
        %v3018 = vld [vmem:[%s3012 + $0x14] sm:$0xf]
        %v3019 = vld [vmem:[%s3012 + $0x18] sm:$0xf]
        %v3020 = vld [vmem:[%s3012 + $0x1c] sm:$0xf]
        %v3021 = vld [vmem:[%s3012 + $0x20] sm:$0xf]
        %v3022 = vld [vmem:[%s3012 + $0x24] sm:$0xf]
        %v3023 = vld [vmem:[%s3012 + $0x28] sm:$0xf]
        %v3024 = vld [vmem:[%s3012 + $0x2c] sm:$0xf]
        %v3025 = vld [vmem:[%s3012 + $0x30] sm:$0xf]
        %v3026 = vld [vmem:[%s3012 + $0x34] sm:$0xf]
        %v3027 = vld [vmem:[%s3012 + $0x38] sm:$0xf]
        %v3028 = vld [vmem:[%s3012 + $0x3c] sm:$0xf]
        %v3029 = vld [vmem:[%s3012 + $0x40] sm:$0xf]
        %v3030 = vld [vmem:[%s3012 + $0x44] sm:$0xf]
        %v3031 = vld [vmem:[%s3012 + $0x48] sm:$0xf]
        %v3032 = vld [vmem:[%s3012 + $0x4c] sm:$0xf]
        %v3033 = vld [vmem:[%s3012 + $0x50] sm:$0xf]
        %v3034 = vld [vmem:[%s3012 + $0x54] sm:$0xf]
        %v3035 = vld [vmem:[%s3012 + $0x58] sm:$0xf]
        %v3036 = vld [vmem:[%s3012 + $0x5c] sm:$0xf]
        %v3037 = vld [vmem:[%s3012 + $0x60] sm:$0xf]
        %v3038 = vld [vmem:[%s3012 + $0x64] sm:$0xf]
        %v3039 = vld [vmem:[%s3012 + $0x68] sm:$0xf]
        %v3040 = vld [vmem:[%s3012 + $0x6c] sm:$0xf]
        %v3041 = vld [vmem:[%s3012 + $0x70] sm:$0xf]
        %v3042 = vld [vmem:[%s3012 + $0x74] sm:$0xf]
        %v3043 = vld [vmem:[%s3012 + $0x78] sm:$0xf]
        %v3044 = vld [vmem:[%s3012 + $0x7c] sm:$0xf]
        %v3045 = vld [vmem:[%s3012 + $0x80] sm:$0xf]
        %v3046 = vld [vmem:[%s3012 + $0x84] sm:$0xf]
        %v3047 = vld [vmem:[%s3012 + $0x88] sm:$0xf]
        %v3048 = vld [vmem:[%s3012 + $0x8c] sm:$0xf]
        %v3049 = vld [vmem:[%s3012 + $0x90] sm:$0xf]
        %v3050 = vld [vmem:[%s3012 + $0x94] sm:$0xf]
        %v3051 = vld [vmem:[%s3012 + $0x98] sm:$0xf]
        %v3052 = vld [vmem:[%s3012 + $0x9c] sm:$0xf]
        %v3053 = vld [vmem:[%s3012 + $0xa0] sm:$0xf]
        %v3054 = vld [vmem:[%s3012 + $0xa4] sm:$0xf]
        %v3055 = vld [vmem:[%s3012 + $0xa8] sm:$0xf]
        %v3056 = vld [vmem:[%s3012 + $0xac] sm:$0xf]
        %v3057 = vld [vmem:[%s3012 + $0xb0] sm:$0xf]
        %v3058 = vld [vmem:[%s3012 + $0xb4] sm:$0xf]
        %v3059 = vld [vmem:[%s3012 + $0xb8] sm:$0xf]
        %v3060 = vld [vmem:[%s3012 + $0xbc] sm:$0xf]
        %v3109 = vunpack.c.l.b16 %v3013
        %v3110 = vunpack.c.l.b16 %v3014
        %v3111 = vunpack.c.l.b16 %v3015
        %v3112 = vunpack.c.l.b16 %v3016
        %v3113 = vunpack.c.l.b16 %v3017
        %v3114 = vunpack.c.l.b16 %v3018
        %v3115 = vunpack.c.l.b16 %v3019
        %v3116 = vunpack.c.l.b16 %v3020
        %v3117 = vunpack.c.l.b16 %v3021
        %v3118 = vunpack.c.l.b16 %v3022
        %v3119 = vunpack.c.l.b16 %v3023
        %v3120 = vunpack.c.l.b16 %v3024
        %v3121 = vunpack.c.l.b16 %v3025
        %v3122 = vunpack.c.l.b16 %v3026
        %v3123 = vunpack.c.l.b16 %v3027
        %v3124 = vunpack.c.l.b16 %v3028
        %v3125 = vunpack.c.l.b16 %v3029
        %v3126 = vunpack.c.l.b16 %v3030
        %v3127 = vunpack.c.l.b16 %v3031
        %v3128 = vunpack.c.l.b16 %v3032
        %v3129 = vunpack.c.l.b16 %v3033
        %v3130 = vunpack.c.l.b16 %v3034
        %v3131 = vunpack.c.l.b16 %v3035
        %v3132 = vunpack.c.l.b16 %v3036
        %v3133 = vunpack.c.l.b16 %v3037
        %v3134 = vunpack.c.l.b16 %v3038
        %v3135 = vunpack.c.l.b16 %v3039
        %v3136 = vunpack.c.l.b16 %v3040
        %v3137 = vunpack.c.l.b16 %v3041
        %v3138 = vunpack.c.l.b16 %v3042
        %v3139 = vunpack.c.l.b16 %v3043
        %v3140 = vunpack.c.l.b16 %v3044
        %v3141 = vunpack.c.l.b16 %v3045
        %v3142 = vunpack.c.l.b16 %v3046
        %v3143 = vunpack.c.l.b16 %v3047
        %v3144 = vunpack.c.l.b16 %v3048
        %v3145 = vunpack.c.l.b16 %v3049
        %v3146 = vunpack.c.l.b16 %v3050
        %v3147 = vunpack.c.l.b16 %v3051
        %v3148 = vunpack.c.l.b16 %v3052
        %v3149 = vunpack.c.l.b16 %v3053
        %v3150 = vunpack.c.l.b16 %v3054
        %v3151 = vunpack.c.l.b16 %v3055
        %v3152 = vunpack.c.l.b16 %v3056
        %v3153 = vunpack.c.l.b16 %v3057
        %v3154 = vunpack.c.l.b16 %v3058
        %v3155 = vunpack.c.l.b16 %v3059
        %v3156 = vunpack.c.l.b16 %v3060
        %v3157 = vpack.c.b16 %v3110, %v3109
        %v3158 = vpack.c.b16 %v3112, %v3111
        %v3159 = vpack.c.b16 %v3114, %v3113
        %v3160 = vpack.c.b16 %v3116, %v3115
        %v3161 = vpack.c.b16 %v3118, %v3117
        %v3162 = vpack.c.b16 %v3120, %v3119
        %v3163 = vpack.c.b16 %v3122, %v3121
        %v3164 = vpack.c.b16 %v3124, %v3123
        %v3165 = vpack.c.b16 %v3126, %v3125
        %v3166 = vpack.c.b16 %v3128, %v3127
        %v3167 = vpack.c.b16 %v3130, %v3129
        %v3168 = vpack.c.b16 %v3132, %v3131
        %v3169 = vpack.c.b16 %v3134, %v3133
        %v3170 = vpack.c.b16 %v3136, %v3135
        %v3171 = vpack.c.b16 %v3138, %v3137
        %v3172 = vpack.c.b16 %v3140, %v3139
        %v3173 = vpack.c.b16 %v3142, %v3141
        %v3174 = vpack.c.b16 %v3144, %v3143
        %v3175 = vpack.c.b16 %v3146, %v3145
        %v3176 = vpack.c.b16 %v3148, %v3147
        %v3177 = vpack.c.b16 %v3150, %v3149
        %v3178 = vpack.c.b16 %v3152, %v3151
        %v3179 = vpack.c.b16 %v3154, %v3153
        %v3180 = vpack.c.b16 %v3156, %v3155
        %3205 = vmatprep.subr.bf16.mxu0 0
        %3206 = vmatpush1.bf16.msra.mxu0 %v3157
        %3207 = vmatprep.subr.bf16.mxu0 0
        %3208 = vmatpush1.bf16.msra.mxu0 %v3158
        %3209 = vmatprep.subr.bf16.mxu0 0
        %3210 = vmatpush1.bf16.msra.mxu0 %v3159
        %3211 = vmatprep.subr.bf16.mxu0 0
        %3212 = vmatpush1.bf16.msra.mxu0 %v3160
        %3213 = vmatprep.subr.bf16.mxu0 0
        %3214 = vmatpush1.bf16.msra.mxu0 %v3161
        %3215 = vmatprep.subr.bf16.mxu0 0
        %3216 = vmatpush1.bf16.msra.mxu0 %v3162
        %3217 = vmatprep.subr.bf16.mxu0 0
        %3218 = vmatpush1.bf16.msra.mxu0 %v3163
        %3219 = vmatprep.subr.bf16.mxu0 0
        %3220 = vmatpush1.bf16.msra.mxu0 %v3164
        %3221 = vmatprep.subr.bf16.mxu0 0
        %3222 = vmatpush1.bf16.msra.mxu0 %v3165
        %3223 = vmatprep.subr.bf16.mxu0 0
        %3224 = vmatpush1.bf16.msra.mxu0 %v3166
        %3225 = vmatprep.subr.bf16.mxu0 0
        %3226 = vmatpush1.bf16.msra.mxu0 %v3167
        %3227 = vmatprep.subr.bf16.mxu0 0
        %3228 = vmatpush1.bf16.msra.mxu0 %v3168
        %3229 = vmatprep.subr.bf16.mxu0 0
        %3230 = vmatpush1.bf16.msra.mxu0 %v3169
        %3231 = vmatprep.subr.bf16.mxu0 0
        %3232 = vmatpush1.bf16.msra.mxu0 %v3170
        %3233 = vmatprep.subr.bf16.mxu0 0
        %3234 = vmatpush1.bf16.msra.mxu0 %v3171
        %3235 = vmatprep.subr.bf16.mxu0 0
        %3236 = vmatpush1.bf16.msra.mxu0 %v3172
        %3237 = vmatprep.mubr.bf16.mxu0 %v2645
        %3238 = vmatmul.mubr.bf16.gmra.mrb[0].mxu0 %v2588
        %v3239 = vpop.f32.mrb[0].mxu0
        %v3240 = vadd.f32 0.0, %v3239
        %v3241 = vpop.f32.mrb[0].mxu0
        %v3242 = vpop.f32.mrb[0].mxu0
        %v3243 = vadd.f32 0.0, %v3242
        %v3244 = vpop.f32.mrb[0].mxu0
        %3245 = vmatprep.mubr.bf16.mxu0 %v2657
        %3246 = vmatmul.mubr.bf16.gmra.mrb[0].mxu0 %v2590
        %v3247 = vpop.f32.mrb[0].mxu0
        %v3248 = vadd.f32 0.0, %v3247
        %v3249 = vpop.f32.mrb[0].mxu0
        %v3250 = vpop.f32.mrb[0].mxu0
        %v3251 = vadd.f32 0.0, %v3250
        %v3252 = vpop.f32.mrb[0].mxu0
        %3253 = vmatprep.mubr.bf16.mxu0 %v2669
        %3254 = vmatmul.mubr.bf16.gmra.mrb[0].mxu0 %v2592
        %v3255 = vpop.f32.mrb[0].mxu0
        %v3256 = vadd.f32 0.0, %v3255
        %v3257 = vpop.f32.mrb[0].mxu0
        %v3258 = vpop.f32.mrb[0].mxu0
        %v3259 = vadd.f32 0.0, %v3258
        %v3260 = vpop.f32.mrb[0].mxu0
        %3261 = vmatprep.mubr.bf16.mxu0 %v2681
        %3262 = vmatmul.mubr.bf16.gmra.mrb[0].mxu0 %v2594
        %v3263 = vpop.f32.mrb[0].mxu0
        %v3264 = vadd.f32 0.0, %v3263
        %v3265 = vpop.f32.mrb[0].mxu0
        %v3266 = vpop.f32.mrb[0].mxu0
        %v3267 = vadd.f32 0.0, %v3266
        %v3268 = vpop.f32.mrb[0].mxu0
        %3269 = vmatprep.mubr.bf16.mxu0 %v2693
        %3270 = vmatmul.mubr.bf16.gmra.mrb[0].mxu0 %v2596
        %v3271 = vpop.f32.mrb[0].mxu0
        %v3272 = vadd.f32 0.0, %v3271
        %v3273 = vpop.f32.mrb[0].mxu0
        %v3274 = vpop.f32.mrb[0].mxu0
        %v3275 = vadd.f32 0.0, %v3274
        %v3276 = vpop.f32.mrb[0].mxu0
        %3277 = vmatprep.mubr.bf16.mxu0 %v2705
        %3278 = vmatmul.mubr.bf16.gmra.mrb[0].mxu0 %v2598
        %v3279 = vpop.f32.mrb[0].mxu0
        %v3280 = vadd.f32 0.0, %v3279
        %v3281 = vpop.f32.mrb[0].mxu0
        %v3282 = vpop.f32.mrb[0].mxu0
        %v3283 = vadd.f32 0.0, %v3282
        %v3284 = vpop.f32.mrb[0].mxu0
        %3285 = vmatprep.mubr.bf16.mxu0 %v2717
        %3286 = vmatmul.mubr.bf16.gmra.mrb[0].mxu0 %v2600
        %v3287 = vpop.f32.mrb[0].mxu0
        %v3288 = vadd.f32 0.0, %v3287
        %v3289 = vpop.f32.mrb[0].mxu0
        %v3290 = vpop.f32.mrb[0].mxu0
        %v3291 = vadd.f32 0.0, %v3290
        %v3292 = vpop.f32.mrb[0].mxu0
        %3293 = vmatprep.mubr.bf16.mxu0 %v2729
        %3294 = vmatmul.mubr.bf16.gmra.mrb[0].mxu0 %v2602
        %v3295 = vpop.f32.mrb[0].mxu0
        %v3296 = vadd.f32 0.0, %v3295
        %v3297 = vpop.f32.mrb[0].mxu0
        %v3298 = vpop.f32.mrb[0].mxu0
        %v3299 = vadd.f32 0.0, %v3298
        %v3300 = vpop.f32.mrb[0].mxu0
        %3301 = vmatprep.mubr.bf16.mxu0 %v2741
        %3302 = vmatmul.mubr.bf16.gmra.mrb[0].mxu0 %v2604
        %v3303 = vpop.f32.mrb[0].mxu0
        %v3304 = vadd.f32 0.0, %v3303
        %v3305 = vpop.f32.mrb[0].mxu0
        %v3306 = vpop.f32.mrb[0].mxu0
        %v3307 = vadd.f32 0.0, %v3306
        %v3308 = vpop.f32.mrb[0].mxu0
        %3309 = vmatprep.mubr.bf16.mxu0 %v2753
        %3310 = vmatmul.mubr.bf16.gmra.mrb[0].mxu0 %v2606
        %v3311 = vpop.f32.mrb[0].mxu0
        %v3312 = vadd.f32 0.0, %v3311
        %v3313 = vpop.f32.mrb[0].mxu0
        %v3314 = vpop.f32.mrb[0].mxu0
        %v3315 = vadd.f32 0.0, %v3314
        %v3316 = vpop.f32.mrb[0].mxu0
        %3317 = vmatprep.mubr.bf16.mxu0 %v2765
        %3318 = vmatmul.mubr.bf16.gmra.mrb[0].mxu0 %v2608
        %v3319 = vpop.f32.mrb[0].mxu0
        %v3320 = vadd.f32 0.0, %v3319
        %v3321 = vpop.f32.mrb[0].mxu0
        %v3322 = vpop.f32.mrb[0].mxu0
        %v3323 = vadd.f32 0.0, %v3322
        %v3324 = vpop.f32.mrb[0].mxu0
        %3325 = vmatprep.mubr.bf16.mxu0 %v2777
        %3326 = vmatmul.mubr.bf16.gmra.mrb[0].mxu0 %v2610
        %v3327 = vpop.f32.mrb[0].mxu0
        %v3328 = vadd.f32 0.0, %v3327
        %v3329 = vpop.f32.mrb[0].mxu0
        %v3330 = vpop.f32.mrb[0].mxu0
        %v3331 = vadd.f32 0.0, %v3330
        %v3332 = vpop.f32.mrb[0].mxu0
        %3333 = vmatprep.mubr.bf16.mxu0 %v2789
        %3334 = vmatmul.mubr.bf16.gmra.mrb[0].mxu0 %v2612
        %v3335 = vpop.f32.mrb[0].mxu0
        %v3336 = vadd.f32 0.0, %v3335
        %v3337 = vpop.f32.mrb[0].mxu0
        %v3338 = vpop.f32.mrb[0].mxu0
        %v3339 = vadd.f32 0.0, %v3338
        %v3340 = vpop.f32.mrb[0].mxu0
        %3341 = vmatprep.mubr.bf16.mxu0 %v2801
        %3342 = vmatmul.mubr.bf16.gmra.mrb[0].mxu0 %v2614
        %v3343 = vpop.f32.mrb[0].mxu0
        %v3344 = vadd.f32 0.0, %v3343
        %v3345 = vpop.f32.mrb[0].mxu0
        %v3346 = vpop.f32.mrb[0].mxu0
        %v3347 = vadd.f32 0.0, %v3346
        %v3348 = vpop.f32.mrb[0].mxu0
        %3349 = vmatprep.mubr.bf16.mxu0 %v2813
        %3350 = vmatmul.mubr.bf16.gmra.mrb[0].mxu0 %v2616
        %v3351 = vpop.f32.mrb[0].mxu0
        %v3352 = vadd.f32 0.0, %v3351
        %v3353 = vpop.f32.mrb[0].mxu0
        %v3354 = vpop.f32.mrb[0].mxu0
        %v3355 = vadd.f32 0.0, %v3354
        %v3356 = vpop.f32.mrb[0].mxu0
        %3357 = vmatprep.mubr.bf16.mxu0 %v2825
        %3358 = vmatmul.mubr.bf16.gmra.mrb[0].mxu0 %v2618
        %v3359 = vpop.f32.mrb[0].mxu0
        %v3360 = vadd.f32 0.0, %v3359
        %v3361 = vpop.f32.mrb[0].mxu0
        %v3362 = vpop.f32.mrb[0].mxu0
        %v3363 = vadd.f32 0.0, %v3362
        %v3364 = vpop.f32.mrb[0].mxu0
        %3365 = vdwg.mxu0
        %3366 = vmatprep.subr.bf16.mxu0 0
        %3367 = vmatpush1.bf16.msra.mxu0 %v3173
        %3368 = vmatprep.subr.bf16.mxu0 0
        %3369 = vmatpush1.bf16.msra.mxu0 %v3174
        %3370 = vmatprep.subr.bf16.mxu0 0
        %3371 = vmatpush1.bf16.msra.mxu0 %v3175
        %3372 = vmatprep.subr.bf16.mxu0 0
        %3373 = vmatpush1.bf16.msra.mxu0 %v3176
        %3374 = vmatprep.subr.bf16.mxu0 0
        %3375 = vmatpush1.bf16.msra.mxu0 %v3177
        %3376 = vmatprep.subr.bf16.mxu0 0
        %3377 = vmatpush1.bf16.msra.mxu0 %v3178
        %3378 = vmatprep.subr.bf16.mxu0 0
        %3379 = vmatpush1.bf16.msra.mxu0 %v3179
        %3380 = vmatprep.subr.bf16.mxu0 0
        %3381 = vmatpush1.bf16.msra.mxu0 %v3180
        %3382 = vmatprep.subr.bf16.mxu0 0
        %3383 = vmatpush1.bf16.msra.mxu0 0
        %3384 = vmatprep.subr.bf16.mxu0 0
        %3385 = vmatpush1.bf16.msra.mxu0 0
        %3386 = vmatprep.subr.bf16.mxu0 0
        %3387 = vmatpush1.bf16.msra.mxu0 0
        %3388 = vmatprep.subr.bf16.mxu0 0
        %3389 = vmatpush1.bf16.msra.mxu0 0
        %3390 = vmatprep.subr.bf16.mxu0 0
        %3391 = vmatpush1.bf16.msra.mxu0 0
        %3392 = vmatprep.subr.bf16.mxu0 0
        %3393 = vmatpush1.bf16.msra.mxu0 0
        %3394 = vmatprep.subr.bf16.mxu0 0
        %3395 = vmatpush1.bf16.msra.mxu0 0
        %3396 = vmatprep.subr.bf16.mxu0 0
        %3397 = vmatpush1.bf16.msra.mxu0 0
        %3398 = vmatprep.mubr.bf16.mxu0 0
        %3399 = vmatmul.mubr.bf16.gmra.mrb[0].mxu0 %v2897
        %v3400 = vpop.f32.mrb[0].mxu0
        %v3401 = vadd.f32 %v3240, %v3400
        %v3402 = vpop.f32.mrb[0].mxu0
        %v3403 = vpop.f32.mrb[0].mxu0
        %v3404 = vadd.f32 %v3243, %v3403
        %v3405 = vpop.f32.mrb[0].mxu0
        %3406 = vmatprep.mubr.bf16.mxu0 0
        %3407 = vmatmul.mubr.bf16.gmra.mrb[0].mxu0 %v2900
        %v3408 = vpop.f32.mrb[0].mxu0
        %v3409 = vadd.f32 %v3248, %v3408
        %v3410 = vpop.f32.mrb[0].mxu0
        %v3411 = vpop.f32.mrb[0].mxu0
        %v3412 = vadd.f32 %v3251, %v3411
        %v3413 = vpop.f32.mrb[0].mxu0
        %3414 = vmatprep.mubr.bf16.mxu0 0
        %3415 = vmatmul.mubr.bf16.gmra.mrb[0].mxu0 %v2903
        %v3416 = vpop.f32.mrb[0].mxu0
        %v3417 = vadd.f32 %v3256, %v3416
        %v3418 = vpop.f32.mrb[0].mxu0
        %v3419 = vpop.f32.mrb[0].mxu0
        %v3420 = vadd.f32 %v3259, %v3419
        %v3421 = vpop.f32.mrb[0].mxu0
        %3422 = vmatprep.mubr.bf16.mxu0 0
        %3423 = vmatmul.mubr.bf16.gmra.mrb[0].mxu0 %v2906
        %v3424 = vpop.f32.mrb[0].mxu0
        %v3425 = vadd.f32 %v3264, %v3424
        %v3426 = vpop.f32.mrb[0].mxu0
        %v3427 = vpop.f32.mrb[0].mxu0
        %v3428 = vadd.f32 %v3267, %v3427
        %v3429 = vpop.f32.mrb[0].mxu0
        %3430 = vmatprep.mubr.bf16.mxu0 0
        %3431 = vmatmul.mubr.bf16.gmra.mrb[0].mxu0 %v2909
        %v3432 = vpop.f32.mrb[0].mxu0
        %v3433 = vadd.f32 %v3272, %v3432
        %v3434 = vpop.f32.mrb[0].mxu0
        %v3435 = vpop.f32.mrb[0].mxu0
        %v3436 = vadd.f32 %v3275, %v3435
        %v3437 = vpop.f32.mrb[0].mxu0
        %3438 = vmatprep.mubr.bf16.mxu0 0
        %3439 = vmatmul.mubr.bf16.gmra.mrb[0].mxu0 %v2912
        %v3440 = vpop.f32.mrb[0].mxu0
        %v3441 = vadd.f32 %v3280, %v3440
        %v3442 = vpop.f32.mrb[0].mxu0
        %v3443 = vpop.f32.mrb[0].mxu0
        %v3444 = vadd.f32 %v3283, %v3443
        %v3445 = vpop.f32.mrb[0].mxu0
        %3446 = vmatprep.mubr.bf16.mxu0 0
        %3447 = vmatmul.mubr.bf16.gmra.mrb[0].mxu0 %v2915
        %v3448 = vpop.f32.mrb[0].mxu0
        %v3449 = vadd.f32 %v3288, %v3448
        %v3450 = vpop.f32.mrb[0].mxu0
        %v3451 = vpop.f32.mrb[0].mxu0
        %v3452 = vadd.f32 %v3291, %v3451
        %v3453 = vpop.f32.mrb[0].mxu0
        %3454 = vmatprep.mubr.bf16.mxu0 0
        %3455 = vmatmul.mubr.bf16.gmra.mrb[0].mxu0 %v2918
        %v3456 = vpop.f32.mrb[0].mxu0
        %v3457 = vadd.f32 %v3296, %v3456
        %v3458 = vpop.f32.mrb[0].mxu0
        %v3459 = vpop.f32.mrb[0].mxu0
        %v3460 = vadd.f32 %v3299, %v3459
        %v3461 = vpop.f32.mrb[0].mxu0
        %3462 = vmatprep.mubr.bf16.mxu0 0
        %3463 = vmatmul.mubr.bf16.gmra.mrb[0].mxu0 %v2921
        %v3464 = vpop.f32.mrb[0].mxu0
        %v3465 = vadd.f32 %v3304, %v3464
        %v3466 = vpop.f32.mrb[0].mxu0
        %v3467 = vpop.f32.mrb[0].mxu0
        %v3468 = vadd.f32 %v3307, %v3467
        %v3469 = vpop.f32.mrb[0].mxu0
        %3470 = vmatprep.mubr.bf16.mxu0 0
        %3471 = vmatmul.mubr.bf16.gmra.mrb[0].mxu0 %v2924
        %v3472 = vpop.f32.mrb[0].mxu0
        %v3473 = vadd.f32 %v3312, %v3472
        %v3474 = vpop.f32.mrb[0].mxu0
        %v3475 = vpop.f32.mrb[0].mxu0
        %v3476 = vadd.f32 %v3315, %v3475
        %v3477 = vpop.f32.mrb[0].mxu0
        %3478 = vmatprep.mubr.bf16.mxu0 0
        %3479 = vmatmul.mubr.bf16.gmra.mrb[0].mxu0 %v2927
        %v3480 = vpop.f32.mrb[0].mxu0
        %v3481 = vadd.f32 %v3320, %v3480
        %v3482 = vpop.f32.mrb[0].mxu0
        %v3483 = vpop.f32.mrb[0].mxu0
        %v3484 = vadd.f32 %v3323, %v3483
        %v3485 = vpop.f32.mrb[0].mxu0
        %3486 = vmatprep.mubr.bf16.mxu0 0
        %3487 = vmatmul.mubr.bf16.gmra.mrb[0].mxu0 %v2930
        %v3488 = vpop.f32.mrb[0].mxu0
        %v3489 = vadd.f32 %v3328, %v3488
        %v3490 = vpop.f32.mrb[0].mxu0
        %v3491 = vpop.f32.mrb[0].mxu0
        %v3492 = vadd.f32 %v3331, %v3491
        %v3493 = vpop.f32.mrb[0].mxu0
        %3494 = vmatprep.mubr.bf16.mxu0 0
        %3495 = vmatmul.mubr.bf16.gmra.mrb[0].mxu0 %v2933
        %v3496 = vpop.f32.mrb[0].mxu0
        %v3497 = vadd.f32 %v3336, %v3496
        %v3498 = vpop.f32.mrb[0].mxu0
        %v3499 = vpop.f32.mrb[0].mxu0
        %v3500 = vadd.f32 %v3339, %v3499
        %v3501 = vpop.f32.mrb[0].mxu0
        %3502 = vmatprep.mubr.bf16.mxu0 0
        %3503 = vmatmul.mubr.bf16.gmra.mrb[0].mxu0 %v2936
        %v3504 = vpop.f32.mrb[0].mxu0
        %v3505 = vadd.f32 %v3344, %v3504
        %v3506 = vpop.f32.mrb[0].mxu0
        %v3507 = vpop.f32.mrb[0].mxu0
        %v3508 = vadd.f32 %v3347, %v3507
        %v3509 = vpop.f32.mrb[0].mxu0
        %3510 = vmatprep.mubr.bf16.mxu0 0
        %3511 = vmatmul.mubr.bf16.gmra.mrb[0].mxu0 %v2939
        %v3512 = vpop.f32.mrb[0].mxu0
        %v3513 = vadd.f32 %v3352, %v3512
        %v3514 = vpop.f32.mrb[0].mxu0
        %v3515 = vpop.f32.mrb[0].mxu0
        %v3516 = vadd.f32 %v3355, %v3515
        %v3517 = vpop.f32.mrb[0].mxu0
        %3518 = vmatprep.mubr.bf16.mxu0 0
        %3519 = vmatmul.mubr.bf16.gmra.mrb[0].mxu0 %v2942
        %v3520 = vpop.f32.mrb[0].mxu0
        %v3521 = vadd.f32 %v3360, %v3520
        %v3522 = vpop.f32.mrb[0].mxu0
        %v3523 = vpop.f32.mrb[0].mxu0
        %v3524 = vadd.f32 %v3363, %v3523
        %v3525 = vpop.f32.mrb[0].mxu0
        %3526 = vdwg.mxu0
        %v3575 = vunpack.c.l.b16 %v2964
        %v3576 = vunpack.c.l.b16 %v2965
        %v3577 = vunpack.c.l.b16 %v2966
        %v3578 = vunpack.c.l.b16 %v2967
        %v3579 = vunpack.c.l.b16 %v2968
        %v3580 = vunpack.c.l.b16 %v2969
        %v3581 = vunpack.c.l.b16 %v2970
        %v3582 = vunpack.c.l.b16 %v2971
        %v3583 = vunpack.c.l.b16 %v2972
        %v3584 = vunpack.c.l.b16 %v2973
        %v3585 = vunpack.c.l.b16 %v2974
        %v3586 = vunpack.c.l.b16 %v2975
        %v3587 = vunpack.c.l.b16 %v2976
        %v3588 = vunpack.c.l.b16 %v2977
        %v3589 = vunpack.c.l.b16 %v2978
        %v3590 = vunpack.c.l.b16 %v2979
        %v3591 = vunpack.c.l.b16 %v2980
        %v3592 = vunpack.c.l.b16 %v2981
        %v3593 = vunpack.c.l.b16 %v2982
        %v3594 = vunpack.c.l.b16 %v2983
        %v3595 = vunpack.c.l.b16 %v2984
        %v3596 = vunpack.c.l.b16 %v2985
        %v3597 = vunpack.c.l.b16 %v2986
        %v3598 = vunpack.c.l.b16 %v2987
        %v3599 = vunpack.c.l.b16 %v2988
        %v3600 = vunpack.c.l.b16 %v2989
        %v3601 = vunpack.c.l.b16 %v2990
        %v3602 = vunpack.c.l.b16 %v2991
        %v3603 = vunpack.c.l.b16 %v2992
        %v3604 = vunpack.c.l.b16 %v2993
        %v3605 = vunpack.c.l.b16 %v2994
        %v3606 = vunpack.c.l.b16 %v2995
        %v3607 = vunpack.c.l.b16 %v2996
        %v3608 = vunpack.c.l.b16 %v2997
        %v3609 = vunpack.c.l.b16 %v2998
        %v3610 = vunpack.c.l.b16 %v2999
        %v3611 = vunpack.c.l.b16 %v3000
        %v3612 = vunpack.c.l.b16 %v3001
        %v3613 = vunpack.c.l.b16 %v3002
        %v3614 = vunpack.c.l.b16 %v3003
        %v3615 = vunpack.c.l.b16 %v3004
        %v3616 = vunpack.c.l.b16 %v3005
        %v3617 = vunpack.c.l.b16 %v3006
        %v3618 = vunpack.c.l.b16 %v3007
        %v3619 = vunpack.c.l.b16 %v3008
        %v3620 = vunpack.c.l.b16 %v3009
        %v3621 = vunpack.c.l.b16 %v3010
        %v3622 = vunpack.c.l.b16 %v3011
        %v3623 = vpack.c.b16 %v3576, %v3575
        %v3624 = vpack.c.b16 %v3578, %v3577
        %v3625 = vpack.c.b16 %v3580, %v3579
        %v3626 = vpack.c.b16 %v3582, %v3581
        %v3627 = vpack.c.b16 %v3584, %v3583
        %v3628 = vpack.c.b16 %v3586, %v3585
        %v3629 = vpack.c.b16 %v3588, %v3587
        %v3630 = vpack.c.b16 %v3590, %v3589
        %v3631 = vpack.c.b16 %v3592, %v3591
        %v3632 = vpack.c.b16 %v3594, %v3593
        %v3633 = vpack.c.b16 %v3596, %v3595
        %v3634 = vpack.c.b16 %v3598, %v3597
        %v3635 = vpack.c.b16 %v3600, %v3599
        %v3636 = vpack.c.b16 %v3602, %v3601
        %v3637 = vpack.c.b16 %v3604, %v3603
        %v3638 = vpack.c.b16 %v3606, %v3605
        %v3639 = vpack.c.b16 %v3608, %v3607
        %v3640 = vpack.c.b16 %v3610, %v3609
        %v3641 = vpack.c.b16 %v3612, %v3611
        %v3642 = vpack.c.b16 %v3614, %v3613
        %v3643 = vpack.c.b16 %v3616, %v3615
        %v3644 = vpack.c.b16 %v3618, %v3617
        %v3645 = vpack.c.b16 %v3620, %v3619
        %v3646 = vpack.c.b16 %v3622, %v3621
        %3671 = vmatprep.subr.bf16.mxu0 0
        %3672 = vmatpush1.bf16.msra.mxu0 %v3623
        %3673 = vmatprep.subr.bf16.mxu0 0
        %3674 = vmatpush1.bf16.msra.mxu0 %v3624
        %3675 = vmatprep.subr.bf16.mxu0 0
        %3676 = vmatpush1.bf16.msra.mxu0 %v3625
        %3677 = vmatprep.subr.bf16.mxu0 0
        %3678 = vmatpush1.bf16.msra.mxu0 %v3626
        %3679 = vmatprep.subr.bf16.mxu0 0
        %3680 = vmatpush1.bf16.msra.mxu0 %v3627
        %3681 = vmatprep.subr.bf16.mxu0 0
        %3682 = vmatpush1.bf16.msra.mxu0 %v3628
        %3683 = vmatprep.subr.bf16.mxu0 0
        %3684 = vmatpush1.bf16.msra.mxu0 %v3629
        %3685 = vmatprep.subr.bf16.mxu0 0
        %3686 = vmatpush1.bf16.msra.mxu0 %v3630
        %3687 = vmatprep.subr.bf16.mxu0 0
        %3688 = vmatpush1.bf16.msra.mxu0 %v3631
        %3689 = vmatprep.subr.bf16.mxu0 0
        %3690 = vmatpush1.bf16.msra.mxu0 %v3632
        %3691 = vmatprep.subr.bf16.mxu0 0
        %3692 = vmatpush1.bf16.msra.mxu0 %v3633
        %3693 = vmatprep.subr.bf16.mxu0 0
        %3694 = vmatpush1.bf16.msra.mxu0 %v3634
        %3695 = vmatprep.subr.bf16.mxu0 0
        %3696 = vmatpush1.bf16.msra.mxu0 %v3635
        %3697 = vmatprep.subr.bf16.mxu0 0
        %3698 = vmatpush1.bf16.msra.mxu0 %v3636
        %3699 = vmatprep.subr.bf16.mxu0 0
        %3700 = vmatpush1.bf16.msra.mxu0 %v3637
        %3701 = vmatprep.subr.bf16.mxu0 0
        %3702 = vmatpush1.bf16.msra.mxu0 %v3638
        %3703 = vmatprep.mubr.bf16.mxu0 %v2633
        %3704 = vmatmul.mubr.bf16.gmra.mrb[0].mxu0 %v2586
        %v3705 = vpop.f32.mrb[0].mxu0
        %v3706 = vadd.f32 %v3401, %v3705
        %v3707 = vpop.f32.mrb[0].mxu0
        %v3708 = vpop.f32.mrb[0].mxu0
        %v3709 = vadd.f32 %v3404, %v3708
        %v3710 = vpop.f32.mrb[0].mxu0
        %3711 = vmatprep.mubr.bf16.mxu0 %v2645
        %3712 = vmatmul.mubr.bf16.gmra.mrb[0].mxu0 %v2588
        %v3713 = vpop.f32.mrb[0].mxu0
        %v3714 = vadd.f32 %v3409, %v3713
        %v3715 = vpop.f32.mrb[0].mxu0
        %v3716 = vpop.f32.mrb[0].mxu0
        %v3717 = vadd.f32 %v3412, %v3716
        %v3718 = vpop.f32.mrb[0].mxu0
        %3719 = vmatprep.mubr.bf16.mxu0 %v2657
        %3720 = vmatmul.mubr.bf16.gmra.mrb[0].mxu0 %v2590
        %v3721 = vpop.f32.mrb[0].mxu0
        %v3722 = vadd.f32 %v3417, %v3721
        %v3723 = vpop.f32.mrb[0].mxu0
        %v3724 = vpop.f32.mrb[0].mxu0
        %v3725 = vadd.f32 %v3420, %v3724
        %v3726 = vpop.f32.mrb[0].mxu0
        %3727 = vmatprep.mubr.bf16.mxu0 %v2669
        %3728 = vmatmul.mubr.bf16.gmra.mrb[0].mxu0 %v2592
        %v3729 = vpop.f32.mrb[0].mxu0
        %v3730 = vadd.f32 %v3425, %v3729
        %v3731 = vpop.f32.mrb[0].mxu0
        %v3732 = vpop.f32.mrb[0].mxu0
        %v3733 = vadd.f32 %v3428, %v3732
        %v3734 = vpop.f32.mrb[0].mxu0
        %3735 = vmatprep.mubr.bf16.mxu0 %v2681
        %3736 = vmatmul.mubr.bf16.gmra.mrb[0].mxu0 %v2594
        %v3737 = vpop.f32.mrb[0].mxu0
        %v3738 = vadd.f32 %v3433, %v3737
        %v3739 = vpop.f32.mrb[0].mxu0
        %v3740 = vpop.f32.mrb[0].mxu0
        %v3741 = vadd.f32 %v3436, %v3740
        %v3742 = vpop.f32.mrb[0].mxu0
        %3743 = vmatprep.mubr.bf16.mxu0 %v2693
        %3744 = vmatmul.mubr.bf16.gmra.mrb[0].mxu0 %v2596
        %v3745 = vpop.f32.mrb[0].mxu0
        %v3746 = vadd.f32 %v3441, %v3745
        %v3747 = vpop.f32.mrb[0].mxu0
        %v3748 = vpop.f32.mrb[0].mxu0
        %v3749 = vadd.f32 %v3444, %v3748
        %v3750 = vpop.f32.mrb[0].mxu0
        %3751 = vmatprep.mubr.bf16.mxu0 %v2705
        %3752 = vmatmul.mubr.bf16.gmra.mrb[0].mxu0 %v2598
        %v3753 = vpop.f32.mrb[0].mxu0
        %v3754 = vadd.f32 %v3449, %v3753
        %v3755 = vpop.f32.mrb[0].mxu0
        %v3756 = vpop.f32.mrb[0].mxu0
        %v3757 = vadd.f32 %v3452, %v3756
        %v3758 = vpop.f32.mrb[0].mxu0
        %3759 = vmatprep.mubr.bf16.mxu0 %v2717
        %3760 = vmatmul.mubr.bf16.gmra.mrb[0].mxu0 %v2600
        %v3761 = vpop.f32.mrb[0].mxu0
        %v3762 = vadd.f32 %v3457, %v3761
        %v3763 = vpop.f32.mrb[0].mxu0
        %v3764 = vpop.f32.mrb[0].mxu0
        %v3765 = vadd.f32 %v3460, %v3764
        %v3766 = vpop.f32.mrb[0].mxu0
        %3767 = vmatprep.mubr.bf16.mxu0 %v2729
        %3768 = vmatmul.mubr.bf16.gmra.mrb[0].mxu0 %v2602
        %v3769 = vpop.f32.mrb[0].mxu0
        %v3770 = vadd.f32 %v3465, %v3769
        %v3771 = vpop.f32.mrb[0].mxu0
        %v3772 = vpop.f32.mrb[0].mxu0
        %v3773 = vadd.f32 %v3468, %v3772
        %v3774 = vpop.f32.mrb[0].mxu0
        %3775 = vmatprep.mubr.bf16.mxu0 %v2741
        %3776 = vmatmul.mubr.bf16.gmra.mrb[0].mxu0 %v2604
        %v3777 = vpop.f32.mrb[0].mxu0
        %v3778 = vadd.f32 %v3473, %v3777
        %v3779 = vpop.f32.mrb[0].mxu0
        %v3780 = vpop.f32.mrb[0].mxu0
        %v3781 = vadd.f32 %v3476, %v3780
        %v3782 = vpop.f32.mrb[0].mxu0
        %3783 = vmatprep.mubr.bf16.mxu0 %v2753
        %3784 = vmatmul.mubr.bf16.gmra.mrb[0].mxu0 %v2606
        %v3785 = vpop.f32.mrb[0].mxu0
        %v3786 = vadd.f32 %v3481, %v3785
        %v3787 = vpop.f32.mrb[0].mxu0
        %v3788 = vpop.f32.mrb[0].mxu0
        %v3789 = vadd.f32 %v3484, %v3788
        %v3790 = vpop.f32.mrb[0].mxu0
        %3791 = vmatprep.mubr.bf16.mxu0 %v2765
        %3792 = vmatmul.mubr.bf16.gmra.mrb[0].mxu0 %v2608
        %v3793 = vpop.f32.mrb[0].mxu0
        %v3794 = vadd.f32 %v3489, %v3793
        %v3795 = vpop.f32.mrb[0].mxu0
        %v3796 = vpop.f32.mrb[0].mxu0
        %v3797 = vadd.f32 %v3492, %v3796
        %v3798 = vpop.f32.mrb[0].mxu0
        %3799 = vmatprep.mubr.bf16.mxu0 %v2777
        %3800 = vmatmul.mubr.bf16.gmra.mrb[0].mxu0 %v2610
        %v3801 = vpop.f32.mrb[0].mxu0
        %v3802 = vadd.f32 %v3497, %v3801
        %v3803 = vpop.f32.mrb[0].mxu0
        %v3804 = vpop.f32.mrb[0].mxu0
        %v3805 = vadd.f32 %v3500, %v3804
        %v3806 = vpop.f32.mrb[0].mxu0
        %3807 = vmatprep.mubr.bf16.mxu0 %v2789
        %3808 = vmatmul.mubr.bf16.gmra.mrb[0].mxu0 %v2612
        %v3809 = vpop.f32.mrb[0].mxu0
        %v3810 = vadd.f32 %v3505, %v3809
        %v3811 = vpop.f32.mrb[0].mxu0
        %v3812 = vpop.f32.mrb[0].mxu0
        %v3813 = vadd.f32 %v3508, %v3812
        %v3814 = vpop.f32.mrb[0].mxu0
        %3815 = vmatprep.mubr.bf16.mxu0 %v2801
        %3816 = vmatmul.mubr.bf16.gmra.mrb[0].mxu0 %v2614
        %v3817 = vpop.f32.mrb[0].mxu0
        %v3818 = vadd.f32 %v3513, %v3817
        %v3819 = vpop.f32.mrb[0].mxu0
        %v3820 = vpop.f32.mrb[0].mxu0
        %v3821 = vadd.f32 %v3516, %v3820
        %v3822 = vpop.f32.mrb[0].mxu0
        %3823 = vmatprep.mubr.bf16.mxu0 %v2813
        %3824 = vmatmul.mubr.bf16.gmra.mrb[0].mxu0 %v2616
        %v3825 = vpop.f32.mrb[0].mxu0
        %v3826 = vadd.f32 %v3521, %v3825
        %v3827 = vpop.f32.mrb[0].mxu0
        %v3828 = vpop.f32.mrb[0].mxu0
        %v3829 = vadd.f32 %v3524, %v3828
        %v3830 = vpop.f32.mrb[0].mxu0
        %3831 = vdwg.mxu0
        %3832 = vmatprep.subr.bf16.mxu0 0
        %3833 = vmatpush1.bf16.msra.mxu0 %v3639
        %3834 = vmatprep.subr.bf16.mxu0 0
        %3835 = vmatpush1.bf16.msra.mxu0 %v3640
        %3836 = vmatprep.subr.bf16.mxu0 0
        %3837 = vmatpush1.bf16.msra.mxu0 %v3641
        %3838 = vmatprep.subr.bf16.mxu0 0
        %3839 = vmatpush1.bf16.msra.mxu0 %v3642
        %3840 = vmatprep.subr.bf16.mxu0 0
        %3841 = vmatpush1.bf16.msra.mxu0 %v3643
        %3842 = vmatprep.subr.bf16.mxu0 0
        %3843 = vmatpush1.bf16.msra.mxu0 %v3644
        %3844 = vmatprep.subr.bf16.mxu0 0
        %3845 = vmatpush1.bf16.msra.mxu0 %v3645
        %3846 = vmatprep.subr.bf16.mxu0 0
        %3847 = vmatpush1.bf16.msra.mxu0 %v3646
        %3848 = vmatprep.subr.bf16.mxu0 0
        %3849 = vmatpush1.bf16.msra.mxu0 0
        %3850 = vmatprep.subr.bf16.mxu0 0
        %3851 = vmatpush1.bf16.msra.mxu0 0
        %3852 = vmatprep.subr.bf16.mxu0 0
        %3853 = vmatpush1.bf16.msra.mxu0 0
        %3854 = vmatprep.subr.bf16.mxu0 0
        %3855 = vmatpush1.bf16.msra.mxu0 0
        %3856 = vmatprep.subr.bf16.mxu0 0
        %3857 = vmatpush1.bf16.msra.mxu0 0
        %3858 = vmatprep.subr.bf16.mxu0 0
        %3859 = vmatpush1.bf16.msra.mxu0 0
        %3860 = vmatprep.subr.bf16.mxu0 0
        %3861 = vmatpush1.bf16.msra.mxu0 0
        %3862 = vmatprep.subr.bf16.mxu0 0
        %3863 = vmatpush1.bf16.msra.mxu0 0
        %3864 = vmatprep.mubr.bf16.mxu0 0
        %3865 = vmatmul.mubr.bf16.gmra.mrb[0].mxu0 %v2894
        %v3866 = vpop.f32.mrb[0].mxu0
        %v3867 = vadd.f32 %v3706, %v3866
        %v3868 = vpop.f32.mrb[0].mxu0
        %v3869 = vpop.f32.mrb[0].mxu0
        %v3870 = vadd.f32 %v3709, %v3869
        %v3871 = vpop.f32.mrb[0].mxu0
        %3872 = vmatprep.mubr.bf16.mxu0 0
        %3873 = vmatmul.mubr.bf16.gmra.mrb[0].mxu0 %v2897
        %v3874 = vpop.f32.mrb[0].mxu0
        %v3875 = vadd.f32 %v3714, %v3874
        %v3876 = vpop.f32.mrb[0].mxu0
        %v3877 = vpop.f32.mrb[0].mxu0
        %v3878 = vadd.f32 %v3717, %v3877
        %v3879 = vpop.f32.mrb[0].mxu0
        %3880 = vmatprep.mubr.bf16.mxu0 0
        %3881 = vmatmul.mubr.bf16.gmra.mrb[0].mxu0 %v2900
        %v3882 = vpop.f32.mrb[0].mxu0
        %v3883 = vadd.f32 %v3722, %v3882
        %v3884 = vpop.f32.mrb[0].mxu0
        %v3885 = vpop.f32.mrb[0].mxu0
        %v3886 = vadd.f32 %v3725, %v3885
        %v3887 = vpop.f32.mrb[0].mxu0
        %3888 = vmatprep.mubr.bf16.mxu0 0
        %3889 = vmatmul.mubr.bf16.gmra.mrb[0].mxu0 %v2903
        %v3890 = vpop.f32.mrb[0].mxu0
        %v3891 = vadd.f32 %v3730, %v3890
        %v3892 = vpop.f32.mrb[0].mxu0
        %v3893 = vpop.f32.mrb[0].mxu0
        %v3894 = vadd.f32 %v3733, %v3893
        %v3895 = vpop.f32.mrb[0].mxu0
        %3896 = vmatprep.mubr.bf16.mxu0 0
        %3897 = vmatmul.mubr.bf16.gmra.mrb[0].mxu0 %v2906
        %v3898 = vpop.f32.mrb[0].mxu0
        %v3899 = vadd.f32 %v3738, %v3898
        %v3900 = vpop.f32.mrb[0].mxu0
        %v3901 = vpop.f32.mrb[0].mxu0
        %v3902 = vadd.f32 %v3741, %v3901
        %v3903 = vpop.f32.mrb[0].mxu0
        %3904 = vmatprep.mubr.bf16.mxu0 0
        %3905 = vmatmul.mubr.bf16.gmra.mrb[0].mxu0 %v2909
        %v3906 = vpop.f32.mrb[0].mxu0
        %v3907 = vadd.f32 %v3746, %v3906
        %v3908 = vpop.f32.mrb[0].mxu0
        %v3909 = vpop.f32.mrb[0].mxu0
        %v3910 = vadd.f32 %v3749, %v3909
        %v3911 = vpop.f32.mrb[0].mxu0
        %3912 = vmatprep.mubr.bf16.mxu0 0
        %3913 = vmatmul.mubr.bf16.gmra.mrb[0].mxu0 %v2912
        %v3914 = vpop.f32.mrb[0].mxu0
        %v3915 = vadd.f32 %v3754, %v3914
        %v3916 = vpop.f32.mrb[0].mxu0
        %v3917 = vpop.f32.mrb[0].mxu0
        %v3918 = vadd.f32 %v3757, %v3917
        %v3919 = vpop.f32.mrb[0].mxu0
        %3920 = vmatprep.mubr.bf16.mxu0 0
        %3921 = vmatmul.mubr.bf16.gmra.mrb[0].mxu0 %v2915
        %v3922 = vpop.f32.mrb[0].mxu0
        %v3923 = vadd.f32 %v3762, %v3922
        %v3924 = vpop.f32.mrb[0].mxu0
        %v3925 = vpop.f32.mrb[0].mxu0
        %v3926 = vadd.f32 %v3765, %v3925
        %v3927 = vpop.f32.mrb[0].mxu0
        %3928 = vmatprep.mubr.bf16.mxu0 0
        %3929 = vmatmul.mubr.bf16.gmra.mrb[0].mxu0 %v2918
        %v3930 = vpop.f32.mrb[0].mxu0
        %v3931 = vadd.f32 %v3770, %v3930
        %v3932 = vpop.f32.mrb[0].mxu0
        %v3933 = vpop.f32.mrb[0].mxu0
        %v3934 = vadd.f32 %v3773, %v3933
        %v3935 = vpop.f32.mrb[0].mxu0
        %3936 = vmatprep.mubr.bf16.mxu0 0
        %3937 = vmatmul.mubr.bf16.gmra.mrb[0].mxu0 %v2921
        %v3938 = vpop.f32.mrb[0].mxu0
        %v3939 = vadd.f32 %v3778, %v3938
        %v3940 = vpop.f32.mrb[0].mxu0
        %v3941 = vpop.f32.mrb[0].mxu0
        %v3942 = vadd.f32 %v3781, %v3941
        %v3943 = vpop.f32.mrb[0].mxu0
        %3944 = vmatprep.mubr.bf16.mxu0 0
        %3945 = vmatmul.mubr.bf16.gmra.mrb[0].mxu0 %v2924
        %v3946 = vpop.f32.mrb[0].mxu0
        %v3947 = vadd.f32 %v3786, %v3946
        %v3948 = vpop.f32.mrb[0].mxu0
        %v3949 = vpop.f32.mrb[0].mxu0
        %v3950 = vadd.f32 %v3789, %v3949
        %v3951 = vpop.f32.mrb[0].mxu0
        %3952 = vmatprep.mubr.bf16.mxu0 0
        %3953 = vmatmul.mubr.bf16.gmra.mrb[0].mxu0 %v2927
        %v3954 = vpop.f32.mrb[0].mxu0
        %v3955 = vadd.f32 %v3794, %v3954
        %v3956 = vpop.f32.mrb[0].mxu0
        %v3957 = vpop.f32.mrb[0].mxu0
        %v3958 = vadd.f32 %v3797, %v3957
        %v3959 = vpop.f32.mrb[0].mxu0
        %3960 = vmatprep.mubr.bf16.mxu0 0
        %3961 = vmatmul.mubr.bf16.gmra.mrb[0].mxu0 %v2930
        %v3962 = vpop.f32.mrb[0].mxu0
        %v3963 = vadd.f32 %v3802, %v3962
        %v3964 = vpop.f32.mrb[0].mxu0
        %v3965 = vpop.f32.mrb[0].mxu0
        %v3966 = vadd.f32 %v3805, %v3965
        %v3967 = vpop.f32.mrb[0].mxu0
        %3968 = vmatprep.mubr.bf16.mxu0 0
        %3969 = vmatmul.mubr.bf16.gmra.mrb[0].mxu0 %v2933
        %v3970 = vpop.f32.mrb[0].mxu0
        %v3971 = vadd.f32 %v3810, %v3970
        %v3972 = vpop.f32.mrb[0].mxu0
        %v3973 = vpop.f32.mrb[0].mxu0
        %v3974 = vadd.f32 %v3813, %v3973
        %v3975 = vpop.f32.mrb[0].mxu0
        %3976 = vmatprep.mubr.bf16.mxu0 0
        %3977 = vmatmul.mubr.bf16.gmra.mrb[0].mxu0 %v2936
        %v3978 = vpop.f32.mrb[0].mxu0
        %v3979 = vadd.f32 %v3818, %v3978
        %v3980 = vpop.f32.mrb[0].mxu0
        %v3981 = vpop.f32.mrb[0].mxu0
        %v3982 = vadd.f32 %v3821, %v3981
        %v3983 = vpop.f32.mrb[0].mxu0
        %3984 = vmatprep.mubr.bf16.mxu0 0
        %3985 = vmatmul.mubr.bf16.gmra.mrb[0].mxu0 %v2939
        %v3986 = vpop.f32.mrb[0].mxu0
        %v3987 = vadd.f32 %v3826, %v3986
        %v3988 = vpop.f32.mrb[0].mxu0
        %v3989 = vpop.f32.mrb[0].mxu0
        %v3990 = vadd.f32 %v3829, %v3989
        %v3991 = vpop.f32.mrb[0].mxu0
        %3992 = vdwg.mxu0
        %s3993 = scalar_lea.vmem [#allocation3], 384
        %v3994 = vld [vmem:[%s3993] sm:$0xf]
        %v3995 = vld [vmem:[%s3993 + $0x4] sm:$0xf]
        %v3996 = vld [vmem:[%s3993 + $0x8] sm:$0xf]
        %v3997 = vld [vmem:[%s3993 + $0xc] sm:$0xf]
        %v3998 = vld [vmem:[%s3993 + $0x10] sm:$0xf]
        %v3999 = vld [vmem:[%s3993 + $0x14] sm:$0xf]
        %v4000 = vld [vmem:[%s3993 + $0x18] sm:$0xf]
        %v4001 = vld [vmem:[%s3993 + $0x1c] sm:$0xf]
        %v4002 = vld [vmem:[%s3993 + $0x20] sm:$0xf]
        %v4003 = vld [vmem:[%s3993 + $0x24] sm:$0xf]
        %v4004 = vld [vmem:[%s3993 + $0x28] sm:$0xf]
        %v4005 = vld [vmem:[%s3993 + $0x2c] sm:$0xf]
        %v4006 = vld [vmem:[%s3993 + $0x30] sm:$0xf]
        %v4007 = vld [vmem:[%s3993 + $0x34] sm:$0xf]
        %v4008 = vld [vmem:[%s3993 + $0x38] sm:$0xf]
        %v4009 = vld [vmem:[%s3993 + $0x3c] sm:$0xf]
        %v4010 = vld [vmem:[%s3993 + $0x40] sm:$0xf]
        %v4011 = vld [vmem:[%s3993 + $0x44] sm:$0xf]
        %v4012 = vld [vmem:[%s3993 + $0x48] sm:$0xf]
        %v4013 = vld [vmem:[%s3993 + $0x4c] sm:$0xf]
        %v4014 = vld [vmem:[%s3993 + $0x50] sm:$0xf]
        %v4015 = vld [vmem:[%s3993 + $0x54] sm:$0xf]
        %v4016 = vld [vmem:[%s3993 + $0x58] sm:$0xf]
        %v4017 = vld [vmem:[%s3993 + $0x5c] sm:$0xf]
        %v4018 = vld [vmem:[%s3993 + $0x60] sm:$0xf]
        %v4019 = vld [vmem:[%s3993 + $0x64] sm:$0xf]
        %v4020 = vld [vmem:[%s3993 + $0x68] sm:$0xf]
        %v4021 = vld [vmem:[%s3993 + $0x6c] sm:$0xf]
        %v4022 = vld [vmem:[%s3993 + $0x70] sm:$0xf]
        %v4023 = vld [vmem:[%s3993 + $0x74] sm:$0xf]
        %v4024 = vld [vmem:[%s3993 + $0x78] sm:$0xf]
        %v4025 = vld [vmem:[%s3993 + $0x7c] sm:$0xf]
        %v4026 = vld [vmem:[%s3993 + $0x80] sm:$0xf]
        %v4027 = vld [vmem:[%s3993 + $0x84] sm:$0xf]
        %v4028 = vld [vmem:[%s3993 + $0x88] sm:$0xf]
        %v4029 = vld [vmem:[%s3993 + $0x8c] sm:$0xf]
        %v4030 = vld [vmem:[%s3993 + $0x90] sm:$0xf]
        %v4031 = vld [vmem:[%s3993 + $0x94] sm:$0xf]
        %v4032 = vld [vmem:[%s3993 + $0x98] sm:$0xf]
        %v4033 = vld [vmem:[%s3993 + $0x9c] sm:$0xf]
        %v4034 = vld [vmem:[%s3993 + $0xa0] sm:$0xf]
        %v4035 = vld [vmem:[%s3993 + $0xa4] sm:$0xf]
        %v4036 = vld [vmem:[%s3993 + $0xa8] sm:$0xf]
        %v4037 = vld [vmem:[%s3993 + $0xac] sm:$0xf]
        %v4038 = vld [vmem:[%s3993 + $0xb0] sm:$0xf]
        %v4039 = vld [vmem:[%s3993 + $0xb4] sm:$0xf]
        %v4040 = vld [vmem:[%s3993 + $0xb8] sm:$0xf]
        %v4041 = vld [vmem:[%s3993 + $0xbc] sm:$0xf]
        %v4090 = vunpack.c.l.b16 %v3994
        %v4091 = vunpack.c.l.b16 %v3995
        %v4092 = vunpack.c.l.b16 %v3996
        %v4093 = vunpack.c.l.b16 %v3997
        %v4094 = vunpack.c.l.b16 %v3998
        %v4095 = vunpack.c.l.b16 %v3999
        %v4096 = vunpack.c.l.b16 %v4000
        %v4097 = vunpack.c.l.b16 %v4001
        %v4098 = vunpack.c.l.b16 %v4002
        %v4099 = vunpack.c.l.b16 %v4003
        %v4100 = vunpack.c.l.b16 %v4004
        %v4101 = vunpack.c.l.b16 %v4005
        %v4102 = vunpack.c.l.b16 %v4006
        %v4103 = vunpack.c.l.b16 %v4007
        %v4104 = vunpack.c.l.b16 %v4008
        %v4105 = vunpack.c.l.b16 %v4009
        %v4106 = vunpack.c.l.b16 %v4010
        %v4107 = vunpack.c.l.b16 %v4011
        %v4108 = vunpack.c.l.b16 %v4012
        %v4109 = vunpack.c.l.b16 %v4013
        %v4110 = vunpack.c.l.b16 %v4014
        %v4111 = vunpack.c.l.b16 %v4015
        %v4112 = vunpack.c.l.b16 %v4016
        %v4113 = vunpack.c.l.b16 %v4017
        %v4114 = vunpack.c.l.b16 %v4018
        %v4115 = vunpack.c.l.b16 %v4019
        %v4116 = vunpack.c.l.b16 %v4020
        %v4117 = vunpack.c.l.b16 %v4021
        %v4118 = vunpack.c.l.b16 %v4022
        %v4119 = vunpack.c.l.b16 %v4023
        %v4120 = vunpack.c.l.b16 %v4024
        %v4121 = vunpack.c.l.b16 %v4025
        %v4122 = vunpack.c.l.b16 %v4026
        %v4123 = vunpack.c.l.b16 %v4027
        %v4124 = vunpack.c.l.b16 %v4028
        %v4125 = vunpack.c.l.b16 %v4029
        %v4126 = vunpack.c.l.b16 %v4030
        %v4127 = vunpack.c.l.b16 %v4031
        %v4128 = vunpack.c.l.b16 %v4032
        %v4129 = vunpack.c.l.b16 %v4033
        %v4130 = vunpack.c.l.b16 %v4034
        %v4131 = vunpack.c.l.b16 %v4035
        %v4132 = vunpack.c.l.b16 %v4036
        %v4133 = vunpack.c.l.b16 %v4037
        %v4134 = vunpack.c.l.b16 %v4038
        %v4135 = vunpack.c.l.b16 %v4039
        %v4136 = vunpack.c.l.b16 %v4040
        %v4137 = vunpack.c.l.b16 %v4041
        %v4138 = vpack.c.b16 %v4091, %v4090
        %v4139 = vpack.c.b16 %v4093, %v4092
        %v4140 = vpack.c.b16 %v4095, %v4094
        %v4141 = vpack.c.b16 %v4097, %v4096
        %v4142 = vpack.c.b16 %v4099, %v4098
        %v4143 = vpack.c.b16 %v4101, %v4100
        %v4144 = vpack.c.b16 %v4103, %v4102
        %v4145 = vpack.c.b16 %v4105, %v4104
        %v4146 = vpack.c.b16 %v4107, %v4106
        %v4147 = vpack.c.b16 %v4109, %v4108
        %v4148 = vpack.c.b16 %v4111, %v4110
        %v4149 = vpack.c.b16 %v4113, %v4112
        %v4150 = vpack.c.b16 %v4115, %v4114
        %v4151 = vpack.c.b16 %v4117, %v4116
        %v4152 = vpack.c.b16 %v4119, %v4118
        %v4153 = vpack.c.b16 %v4121, %v4120
        %v4154 = vpack.c.b16 %v4123, %v4122
        %v4155 = vpack.c.b16 %v4125, %v4124
        %v4156 = vpack.c.b16 %v4127, %v4126
        %v4157 = vpack.c.b16 %v4129, %v4128
        %v4158 = vpack.c.b16 %v4131, %v4130
        %v4159 = vpack.c.b16 %v4133, %v4132
        %v4160 = vpack.c.b16 %v4135, %v4134
        %v4161 = vpack.c.b16 %v4137, %v4136
        %4186 = vmatprep.subr.bf16.mxu0 0
        %4187 = vmatpush1.bf16.msra.mxu0 %v4138
        %4188 = vmatprep.subr.bf16.mxu0 0
        %4189 = vmatpush1.bf16.msra.mxu0 %v4139
        %4190 = vmatprep.subr.bf16.mxu0 0
        %4191 = vmatpush1.bf16.msra.mxu0 %v4140
        %4192 = vmatprep.subr.bf16.mxu0 0
        %4193 = vmatpush1.bf16.msra.mxu0 %v4141
        %4194 = vmatprep.subr.bf16.mxu0 0
        %4195 = vmatpush1.bf16.msra.mxu0 %v4142
        %4196 = vmatprep.subr.bf16.mxu0 0
        %4197 = vmatpush1.bf16.msra.mxu0 %v4143
        %4198 = vmatprep.subr.bf16.mxu0 0
        %4199 = vmatpush1.bf16.msra.mxu0 %v4144
        %4200 = vmatprep.subr.bf16.mxu0 0
        %4201 = vmatpush1.bf16.msra.mxu0 %v4145
        %4202 = vmatprep.subr.bf16.mxu0 0
        %4203 = vmatpush1.bf16.msra.mxu0 %v4146
        %4204 = vmatprep.subr.bf16.mxu0 0
        %4205 = vmatpush1.bf16.msra.mxu0 %v4147
        %4206 = vmatprep.subr.bf16.mxu0 0
        %4207 = vmatpush1.bf16.msra.mxu0 %v4148
        %4208 = vmatprep.subr.bf16.mxu0 0
        %4209 = vmatpush1.bf16.msra.mxu0 %v4149
        %4210 = vmatprep.subr.bf16.mxu0 0
        %4211 = vmatpush1.bf16.msra.mxu0 %v4150
        %4212 = vmatprep.subr.bf16.mxu0 0
        %4213 = vmatpush1.bf16.msra.mxu0 %v4151
        %4214 = vmatprep.subr.bf16.mxu0 0
        %4215 = vmatpush1.bf16.msra.mxu0 %v4152
        %4216 = vmatprep.subr.bf16.mxu0 0
        %4217 = vmatpush1.bf16.msra.mxu0 %v4153
        %4218 = vmatprep.mubr.bf16.mxu0 %v2657
        %4219 = vmatmul.mubr.bf16.gmra.mrb[0].mxu0 %v2590
        %v4220 = vpop.f32.mrb[0].mxu0
        %v4221 = vadd.f32 0.0, %v4220
        %v4222 = vpop.f32.mrb[0].mxu0
        %v4223 = vpop.f32.mrb[0].mxu0
        %v4224 = vadd.f32 0.0, %v4223
        %v4225 = vpop.f32.mrb[0].mxu0
        %4226 = vmatprep.mubr.bf16.mxu0 %v2669
        %4227 = vmatmul.mubr.bf16.gmra.mrb[0].mxu0 %v2592
        %v4228 = vpop.f32.mrb[0].mxu0
        %v4229 = vadd.f32 0.0, %v4228
        %v4230 = vpop.f32.mrb[0].mxu0
        %v4231 = vpop.f32.mrb[0].mxu0
        %v4232 = vadd.f32 0.0, %v4231
        %v4233 = vpop.f32.mrb[0].mxu0
        %4234 = vmatprep.mubr.bf16.mxu0 %v2681
        %4235 = vmatmul.mubr.bf16.gmra.mrb[0].mxu0 %v2594
        %v4236 = vpop.f32.mrb[0].mxu0
        %v4237 = vadd.f32 0.0, %v4236
        %v4238 = vpop.f32.mrb[0].mxu0
        %v4239 = vpop.f32.mrb[0].mxu0
        %v4240 = vadd.f32 0.0, %v4239
        %v4241 = vpop.f32.mrb[0].mxu0
        %4242 = vmatprep.mubr.bf16.mxu0 %v2693
        %4243 = vmatmul.mubr.bf16.gmra.mrb[0].mxu0 %v2596
        %v4244 = vpop.f32.mrb[0].mxu0
        %v4245 = vadd.f32 0.0, %v4244
        %v4246 = vpop.f32.mrb[0].mxu0
        %v4247 = vpop.f32.mrb[0].mxu0
        %v4248 = vadd.f32 0.0, %v4247
        %v4249 = vpop.f32.mrb[0].mxu0
        %4250 = vmatprep.mubr.bf16.mxu0 %v2705
        %4251 = vmatmul.mubr.bf16.gmra.mrb[0].mxu0 %v2598
        %v4252 = vpop.f32.mrb[0].mxu0
        %v4253 = vadd.f32 0.0, %v4252
        %v4254 = vpop.f32.mrb[0].mxu0
        %v4255 = vpop.f32.mrb[0].mxu0
        %v4256 = vadd.f32 0.0, %v4255
        %v4257 = vpop.f32.mrb[0].mxu0
        %4258 = vmatprep.mubr.bf16.mxu0 %v2717
        %4259 = vmatmul.mubr.bf16.gmra.mrb[0].mxu0 %v2600
        %v4260 = vpop.f32.mrb[0].mxu0
        %v4261 = vadd.f32 0.0, %v4260
        %v4262 = vpop.f32.mrb[0].mxu0
        %v4263 = vpop.f32.mrb[0].mxu0
        %v4264 = vadd.f32 0.0, %v4263
        %v4265 = vpop.f32.mrb[0].mxu0
        %4266 = vmatprep.mubr.bf16.mxu0 %v2729
        %4267 = vmatmul.mubr.bf16.gmra.mrb[0].mxu0 %v2602
        %v4268 = vpop.f32.mrb[0].mxu0
        %v4269 = vadd.f32 0.0, %v4268
        %v4270 = vpop.f32.mrb[0].mxu0
        %v4271 = vpop.f32.mrb[0].mxu0
        %v4272 = vadd.f32 0.0, %v4271
        %v4273 = vpop.f32.mrb[0].mxu0
        %4274 = vmatprep.mubr.bf16.mxu0 %v2741
        %4275 = vmatmul.mubr.bf16.gmra.mrb[0].mxu0 %v2604
        %v4276 = vpop.f32.mrb[0].mxu0
        %v4277 = vadd.f32 0.0, %v4276
        %v4278 = vpop.f32.mrb[0].mxu0
        %v4279 = vpop.f32.mrb[0].mxu0
        %v4280 = vadd.f32 0.0, %v4279
        %v4281 = vpop.f32.mrb[0].mxu0
        %4282 = vmatprep.mubr.bf16.mxu0 %v2753
        %4283 = vmatmul.mubr.bf16.gmra.mrb[0].mxu0 %v2606
        %v4284 = vpop.f32.mrb[0].mxu0
        %v4285 = vadd.f32 0.0, %v4284
        %v4286 = vpop.f32.mrb[0].mxu0
        %v4287 = vpop.f32.mrb[0].mxu0
        %v4288 = vadd.f32 0.0, %v4287
        %v4289 = vpop.f32.mrb[0].mxu0
        %4290 = vmatprep.mubr.bf16.mxu0 %v2765
        %4291 = vmatmul.mubr.bf16.gmra.mrb[0].mxu0 %v2608
        %v4292 = vpop.f32.mrb[0].mxu0
        %v4293 = vadd.f32 0.0, %v4292
        %v4294 = vpop.f32.mrb[0].mxu0
        %v4295 = vpop.f32.mrb[0].mxu0
        %v4296 = vadd.f32 0.0, %v4295
        %v4297 = vpop.f32.mrb[0].mxu0
        %4298 = vmatprep.mubr.bf16.mxu0 %v2777
        %4299 = vmatmul.mubr.bf16.gmra.mrb[0].mxu0 %v2610
        %v4300 = vpop.f32.mrb[0].mxu0
        %v4301 = vadd.f32 0.0, %v4300
        %v4302 = vpop.f32.mrb[0].mxu0
        %v4303 = vpop.f32.mrb[0].mxu0
        %v4304 = vadd.f32 0.0, %v4303
        %v4305 = vpop.f32.mrb[0].mxu0
        %4306 = vmatprep.mubr.bf16.mxu0 %v2789
        %4307 = vmatmul.mubr.bf16.gmra.mrb[0].mxu0 %v2612
        %v4308 = vpop.f32.mrb[0].mxu0
        %v4309 = vadd.f32 0.0, %v4308
        %v4310 = vpop.f32.mrb[0].mxu0
        %v4311 = vpop.f32.mrb[0].mxu0
        %v4312 = vadd.f32 0.0, %v4311
        %v4313 = vpop.f32.mrb[0].mxu0
        %4314 = vmatprep.mubr.bf16.mxu0 %v2801
        %4315 = vmatmul.mubr.bf16.gmra.mrb[0].mxu0 %v2614
        %v4316 = vpop.f32.mrb[0].mxu0
        %v4317 = vadd.f32 0.0, %v4316
        %v4318 = vpop.f32.mrb[0].mxu0
        %v4319 = vpop.f32.mrb[0].mxu0
        %v4320 = vadd.f32 0.0, %v4319
        %v4321 = vpop.f32.mrb[0].mxu0
        %4322 = vmatprep.mubr.bf16.mxu0 %v2813
        %4323 = vmatmul.mubr.bf16.gmra.mrb[0].mxu0 %v2616
        %v4324 = vpop.f32.mrb[0].mxu0
        %v4325 = vadd.f32 0.0, %v4324
        %v4326 = vpop.f32.mrb[0].mxu0
        %v4327 = vpop.f32.mrb[0].mxu0
        %v4328 = vadd.f32 0.0, %v4327
        %v4329 = vpop.f32.mrb[0].mxu0
        %4330 = vmatprep.mubr.bf16.mxu0 %v2825
        %4331 = vmatmul.mubr.bf16.gmra.mrb[0].mxu0 %v2618
        %v4332 = vpop.f32.mrb[0].mxu0
        %v4333 = vadd.f32 0.0, %v4332
        %v4334 = vpop.f32.mrb[0].mxu0
        %v4335 = vpop.f32.mrb[0].mxu0
        %v4336 = vadd.f32 0.0, %v4335
        %v4337 = vpop.f32.mrb[0].mxu0
        %4338 = vmatprep.mubr.bf16.mxu0 %v2837
        %4339 = vmatmul.mubr.bf16.gmra.mrb[0].mxu0 %v2620
        %v4340 = vpop.f32.mrb[0].mxu0
        %v4341 = vadd.f32 0.0, %v4340
        %v4342 = vpop.f32.mrb[0].mxu0
        %v4343 = vpop.f32.mrb[0].mxu0
        %v4344 = vadd.f32 0.0, %v4343
        %v4345 = vpop.f32.mrb[0].mxu0
        %4346 = vdwg.mxu0
        %4347 = vmatprep.subr.bf16.mxu0 0
        %4348 = vmatpush1.bf16.msra.mxu0 %v4154
        %4349 = vmatprep.subr.bf16.mxu0 0
        %4350 = vmatpush1.bf16.msra.mxu0 %v4155
        %4351 = vmatprep.subr.bf16.mxu0 0
        %4352 = vmatpush1.bf16.msra.mxu0 %v4156
        %4353 = vmatprep.subr.bf16.mxu0 0
        %4354 = vmatpush1.bf16.msra.mxu0 %v4157
        %4355 = vmatprep.subr.bf16.mxu0 0
        %4356 = vmatpush1.bf16.msra.mxu0 %v4158
        %4357 = vmatprep.subr.bf16.mxu0 0
        %4358 = vmatpush1.bf16.msra.mxu0 %v4159
        %4359 = vmatprep.subr.bf16.mxu0 0
        %4360 = vmatpush1.bf16.msra.mxu0 %v4160
        %4361 = vmatprep.subr.bf16.mxu0 0
        %4362 = vmatpush1.bf16.msra.mxu0 %v4161
        %4363 = vmatprep.subr.bf16.mxu0 0
        %4364 = vmatpush1.bf16.msra.mxu0 0
        %4365 = vmatprep.subr.bf16.mxu0 0
        %4366 = vmatpush1.bf16.msra.mxu0 0
        %4367 = vmatprep.subr.bf16.mxu0 0
        %4368 = vmatpush1.bf16.msra.mxu0 0
        %4369 = vmatprep.subr.bf16.mxu0 0
        %4370 = vmatpush1.bf16.msra.mxu0 0
        %4371 = vmatprep.subr.bf16.mxu0 0
        %4372 = vmatpush1.bf16.msra.mxu0 0
        %4373 = vmatprep.subr.bf16.mxu0 0
        %4374 = vmatpush1.bf16.msra.mxu0 0
        %4375 = vmatprep.subr.bf16.mxu0 0
        %4376 = vmatpush1.bf16.msra.mxu0 0
        %4377 = vmatprep.subr.bf16.mxu0 0
        %4378 = vmatpush1.bf16.msra.mxu0 0
        %4379 = vmatprep.mubr.bf16.mxu0 0
        %4380 = vmatmul.mubr.bf16.gmra.mrb[0].mxu0 %v2900
        %v4381 = vpop.f32.mrb[0].mxu0
        %v4382 = vadd.f32 %v4221, %v4381
        %v4383 = vpop.f32.mrb[0].mxu0
        %v4384 = vpop.f32.mrb[0].mxu0
        %v4385 = vadd.f32 %v4224, %v4384
        %v4386 = vpop.f32.mrb[0].mxu0
        %4387 = vmatprep.mubr.bf16.mxu0 0
        %4388 = vmatmul.mubr.bf16.gmra.mrb[0].mxu0 %v2903
        %v4389 = vpop.f32.mrb[0].mxu0
        %v4390 = vadd.f32 %v4229, %v4389
        %v4391 = vpop.f32.mrb[0].mxu0
        %v4392 = vpop.f32.mrb[0].mxu0
        %v4393 = vadd.f32 %v4232, %v4392
        %v4394 = vpop.f32.mrb[0].mxu0
        %4395 = vmatprep.mubr.bf16.mxu0 0
        %4396 = vmatmul.mubr.bf16.gmra.mrb[0].mxu0 %v2906
        %v4397 = vpop.f32.mrb[0].mxu0
        %v4398 = vadd.f32 %v4237, %v4397
        %v4399 = vpop.f32.mrb[0].mxu0
        %v4400 = vpop.f32.mrb[0].mxu0
        %v4401 = vadd.f32 %v4240, %v4400
        %v4402 = vpop.f32.mrb[0].mxu0
        %4403 = vmatprep.mubr.bf16.mxu0 0
        %4404 = vmatmul.mubr.bf16.gmra.mrb[0].mxu0 %v2909
        %v4405 = vpop.f32.mrb[0].mxu0
        %v4406 = vadd.f32 %v4245, %v4405
        %v4407 = vpop.f32.mrb[0].mxu0
        %v4408 = vpop.f32.mrb[0].mxu0
        %v4409 = vadd.f32 %v4248, %v4408
        %v4410 = vpop.f32.mrb[0].mxu0
        %4411 = vmatprep.mubr.bf16.mxu0 0
        %4412 = vmatmul.mubr.bf16.gmra.mrb[0].mxu0 %v2912
        %v4413 = vpop.f32.mrb[0].mxu0
        %v4414 = vadd.f32 %v4253, %v4413
        %v4415 = vpop.f32.mrb[0].mxu0
        %v4416 = vpop.f32.mrb[0].mxu0
        %v4417 = vadd.f32 %v4256, %v4416
        %v4418 = vpop.f32.mrb[0].mxu0
        %4419 = vmatprep.mubr.bf16.mxu0 0
        %4420 = vmatmul.mubr.bf16.gmra.mrb[0].mxu0 %v2915
        %v4421 = vpop.f32.mrb[0].mxu0
        %v4422 = vadd.f32 %v4261, %v4421
        %v4423 = vpop.f32.mrb[0].mxu0
        %v4424 = vpop.f32.mrb[0].mxu0
        %v4425 = vadd.f32 %v4264, %v4424
        %v4426 = vpop.f32.mrb[0].mxu0
        %4427 = vmatprep.mubr.bf16.mxu0 0
        %4428 = vmatmul.mubr.bf16.gmra.mrb[0].mxu0 %v2918
        %v4429 = vpop.f32.mrb[0].mxu0
        %v4430 = vadd.f32 %v4269, %v4429
        %v4431 = vpop.f32.mrb[0].mxu0
        %v4432 = vpop.f32.mrb[0].mxu0
        %v4433 = vadd.f32 %v4272, %v4432
        %v4434 = vpop.f32.mrb[0].mxu0
        %4435 = vmatprep.mubr.bf16.mxu0 0
        %4436 = vmatmul.mubr.bf16.gmra.mrb[0].mxu0 %v2921
        %v4437 = vpop.f32.mrb[0].mxu0
        %v4438 = vadd.f32 %v4277, %v4437
        %v4439 = vpop.f32.mrb[0].mxu0
        %v4440 = vpop.f32.mrb[0].mxu0
        %v4441 = vadd.f32 %v4280, %v4440
        %v4442 = vpop.f32.mrb[0].mxu0
        %4443 = vmatprep.mubr.bf16.mxu0 0
        %4444 = vmatmul.mubr.bf16.gmra.mrb[0].mxu0 %v2924
        %v4445 = vpop.f32.mrb[0].mxu0
        %v4446 = vadd.f32 %v4285, %v4445
        %v4447 = vpop.f32.mrb[0].mxu0
        %v4448 = vpop.f32.mrb[0].mxu0
        %v4449 = vadd.f32 %v4288, %v4448
        %v4450 = vpop.f32.mrb[0].mxu0
        %4451 = vmatprep.mubr.bf16.mxu0 0
        %4452 = vmatmul.mubr.bf16.gmra.mrb[0].mxu0 %v2927
        %v4453 = vpop.f32.mrb[0].mxu0
        %v4454 = vadd.f32 %v4293, %v4453
        %v4455 = vpop.f32.mrb[0].mxu0
        %v4456 = vpop.f32.mrb[0].mxu0
        %v4457 = vadd.f32 %v4296, %v4456
        %v4458 = vpop.f32.mrb[0].mxu0
        %4459 = vmatprep.mubr.bf16.mxu0 0
        %4460 = vmatmul.mubr.bf16.gmra.mrb[0].mxu0 %v2930
        %v4461 = vpop.f32.mrb[0].mxu0
        %v4462 = vadd.f32 %v4301, %v4461
        %v4463 = vpop.f32.mrb[0].mxu0
        %v4464 = vpop.f32.mrb[0].mxu0
        %v4465 = vadd.f32 %v4304, %v4464
        %v4466 = vpop.f32.mrb[0].mxu0
        %4467 = vmatprep.mubr.bf16.mxu0 0
        %4468 = vmatmul.mubr.bf16.gmra.mrb[0].mxu0 %v2933
        %v4469 = vpop.f32.mrb[0].mxu0
        %v4470 = vadd.f32 %v4309, %v4469
        %v4471 = vpop.f32.mrb[0].mxu0
        %v4472 = vpop.f32.mrb[0].mxu0
        %v4473 = vadd.f32 %v4312, %v4472
        %v4474 = vpop.f32.mrb[0].mxu0
        %4475 = vmatprep.mubr.bf16.mxu0 0
        %4476 = vmatmul.mubr.bf16.gmra.mrb[0].mxu0 %v2936
        %v4477 = vpop.f32.mrb[0].mxu0
        %v4478 = vadd.f32 %v4317, %v4477
        %v4479 = vpop.f32.mrb[0].mxu0
        %v4480 = vpop.f32.mrb[0].mxu0
        %v4481 = vadd.f32 %v4320, %v4480
        %v4482 = vpop.f32.mrb[0].mxu0
        %4483 = vmatprep.mubr.bf16.mxu0 0
        %4484 = vmatmul.mubr.bf16.gmra.mrb[0].mxu0 %v2939
        %v4485 = vpop.f32.mrb[0].mxu0
        %v4486 = vadd.f32 %v4325, %v4485
        %v4487 = vpop.f32.mrb[0].mxu0
        %v4488 = vpop.f32.mrb[0].mxu0
        %v4489 = vadd.f32 %v4328, %v4488
        %v4490 = vpop.f32.mrb[0].mxu0
        %4491 = vmatprep.mubr.bf16.mxu0 0
        %4492 = vmatmul.mubr.bf16.gmra.mrb[0].mxu0 %v2942
        %v4493 = vpop.f32.mrb[0].mxu0
        %v4494 = vadd.f32 %v4333, %v4493
        %v4495 = vpop.f32.mrb[0].mxu0
        %v4496 = vpop.f32.mrb[0].mxu0
        %v4497 = vadd.f32 %v4336, %v4496
        %v4498 = vpop.f32.mrb[0].mxu0
        %4499 = vmatprep.mubr.bf16.mxu0 0
        %4500 = vmatmul.mubr.bf16.gmra.mrb[0].mxu0 %v2945
        %v4501 = vpop.f32.mrb[0].mxu0
        %v4502 = vadd.f32 %v4341, %v4501
        %v4503 = vpop.f32.mrb[0].mxu0
        %v4504 = vpop.f32.mrb[0].mxu0
        %v4505 = vadd.f32 %v4344, %v4504
        %v4506 = vpop.f32.mrb[0].mxu0
        %4507 = vdwg.mxu0
        %v4508 = vadd.f32 %v3867, %v4382
        %v4509 = vadd.f32 %v3870, %v4385
        %v4510 = vadd.f32 %v3875, %v4390
        %v4511 = vadd.f32 %v3878, %v4393
        %v4512 = vadd.f32 %v3883, %v4398
        %v4513 = vadd.f32 %v3886, %v4401
        %v4514 = vadd.f32 %v3891, %v4406
        %v4515 = vadd.f32 %v3894, %v4409
        %v4516 = vadd.f32 %v3899, %v4414
        %v4517 = vadd.f32 %v3902, %v4417
        %v4518 = vadd.f32 %v3907, %v4422
        %v4519 = vadd.f32 %v3910, %v4425
        %v4520 = vadd.f32 %v3915, %v4430
        %v4521 = vadd.f32 %v3918, %v4433
        %v4522 = vadd.f32 %v3923, %v4438
        %v4523 = vadd.f32 %v3926, %v4441
        %v4524 = vadd.f32 %v3931, %v4446
        %v4525 = vadd.f32 %v3934, %v4449
        %v4526 = vadd.f32 %v3939, %v4454
        %v4527 = vadd.f32 %v3942, %v4457
        %v4528 = vadd.f32 %v3947, %v4462
        %v4529 = vadd.f32 %v3950, %v4465
        %v4530 = vadd.f32 %v3955, %v4470
        %v4531 = vadd.f32 %v3958, %v4473
        %v4532 = vadd.f32 %v3963, %v4478
        %v4533 = vadd.f32 %v3966, %v4481
        %v4534 = vadd.f32 %v3971, %v4486
        %v4535 = vadd.f32 %v3974, %v4489
        %v4536 = vadd.f32 %v3979, %v4494
        %v4537 = vadd.f32 %v3982, %v4497
        %v4538 = vadd.f32 %v3987, %v4502
        %v4539 = vadd.f32 %v3990, %v4505
        %v4540 = vld [vmem:[%s4 + $0x2] sm:$0x1]
        %v4541 = vlaneseq
        %v4542 = vshrl.u32 %v4541, 7
        %v4543 = vsub.s32 0, %v4542
        %v4544 = vrot.slane %v4540, %v4543
        %v4545 = vmul.f32 %v4508, %v4544
        %v4546 = vmul.f32 %v4509, %v4544
        %v4547 = vmul.f32 %v4510, %v4544
        %v4548 = vmul.f32 %v4511, %v4544
        %v4549 = vmul.f32 %v4512, %v4544
        %v4550 = vmul.f32 %v4513, %v4544
        %v4551 = vmul.f32 %v4514, %v4544
        %v4552 = vmul.f32 %v4515, %v4544
        %v4553 = vmul.f32 %v4516, %v4544
        %v4554 = vmul.f32 %v4517, %v4544
        %v4555 = vmul.f32 %v4518, %v4544
        %v4556 = vmul.f32 %v4519, %v4544
        %v4557 = vmul.f32 %v4520, %v4544
        %v4558 = vmul.f32 %v4521, %v4544
        %v4559 = vmul.f32 %v4522, %v4544
        %v4560 = vmul.f32 %v4523, %v4544
        %v4561 = vmul.f32 %v4524, %v4544
        %v4562 = vmul.f32 %v4525, %v4544
        %v4563 = vmul.f32 %v4526, %v4544
        %v4564 = vmul.f32 %v4527, %v4544
        %v4565 = vmul.f32 %v4528, %v4544
        %v4566 = vmul.f32 %v4529, %v4544
        %v4567 = vmul.f32 %v4530, %v4544
        %v4568 = vmul.f32 %v4531, %v4544
        %v4569 = vmul.f32 %v4532, %v4544
        %v4570 = vmul.f32 %v4533, %v4544
        %v4571 = vmul.f32 %v4534, %v4544
        %v4572 = vmul.f32 %v4535, %v4544
        %v4573 = vmul.f32 %v4536, %v4544
        %v4574 = vmul.f32 %v4537, %v4544
        %v4575 = vmul.f32 %v4538, %v4544
        %v4576 = vmul.f32 %v4539, %v4544
        %v4577 = vld [vmem:[%s4 + $0x3] sm:$0x1]
        %v4578 = vlaneseq
        %v4579 = vshrl.u32 %v4578, 7
        %v4580 = vsub.s32 0, %v4579
        %v4581 = vrot.slane %v4577, %v4580
        %v4582 = vadd.f32 %v4545, %v4581
        %v4583 = vadd.f32 %v4546, %v4581
        %v4584 = vadd.f32 %v4547, %v4581
        %v4585 = vadd.f32 %v4548, %v4581
        %v4586 = vadd.f32 %v4549, %v4581
        %v4587 = vadd.f32 %v4550, %v4581
        %v4588 = vadd.f32 %v4551, %v4581
        %v4589 = vadd.f32 %v4552, %v4581
        %v4590 = vadd.f32 %v4553, %v4581
        %v4591 = vadd.f32 %v4554, %v4581
        %v4592 = vadd.f32 %v4555, %v4581
        %v4593 = vadd.f32 %v4556, %v4581
        %v4594 = vadd.f32 %v4557, %v4581
        %v4595 = vadd.f32 %v4558, %v4581
        %v4596 = vadd.f32 %v4559, %v4581
        %v4597 = vadd.f32 %v4560, %v4581
        %v4598 = vadd.f32 %v4561, %v4581
        %v4599 = vadd.f32 %v4562, %v4581
        %v4600 = vadd.f32 %v4563, %v4581
        %v4601 = vadd.f32 %v4564, %v4581
        %v4602 = vadd.f32 %v4565, %v4581
        %v4603 = vadd.f32 %v4566, %v4581
        %v4604 = vadd.f32 %v4567, %v4581
        %v4605 = vadd.f32 %v4568, %v4581
        %v4606 = vadd.f32 %v4569, %v4581
        %v4607 = vadd.f32 %v4570, %v4581
        %v4608 = vadd.f32 %v4571, %v4581
        %v4609 = vadd.f32 %v4572, %v4581
        %v4610 = vadd.f32 %v4573, %v4581
        %v4611 = vadd.f32 %v4574, %v4581
        %v4612 = vadd.f32 %v4575, %v4581
        %v4613 = vadd.f32 %v4576, %v4581
        %vm4614 = vsmask.f32 3328
        %vm4615 = vsmask.f32 7440
        %vm4616 = vmor %vm4614, %vm4615
        %v4618 = vshrl.u32 %v242, 16
        %v4620 = vrot.slane %v4618, 4
        %v4621 = vshll.u32 %v242, 16
        %v4623 = vrot.slane %v4621, 5
        %v4624 = vor.u32 %v4620, %v4623
        %v4625 = vrot.slane %v4624, 4
        %v4627 = vshll.u32 %v243, 16
        %v4629 = vrot.slane %v4627, 5
        %v4630 = vsel %vm4616, %v4625, %v4629
        %v4631 = vshrl.u32 %v243, 16
        %v4633 = vrot.slane %v4631, 4
        %v4634 = vor.u32 %v4633, %v4629
        %v4635 = vrot.slane %v4634, 4
        %v4637 = vshll.u32 %v244, 16
        %v4639 = vrot.slane %v4637, 5
        %v4640 = vsel %vm4616, %v4635, %v4639
        %v4642 = vshrl.u32 %v245, 16
        %v4644 = vrot.slane %v4642, 4
        %v4645 = vshll.u32 %v245, 16
        %v4647 = vrot.slane %v4645, 5
        %v4648 = vor.u32 %v4644, %v4647
        %v4649 = vrot.slane %v4648, 4
        %v4651 = vshll.u32 %v246, 16
        %v4653 = vrot.slane %v4651, 5
        %v4654 = vsel %vm4616, %v4649, %v4653
        %v4655 = vshrl.u32 %v246, 16
        %v4657 = vrot.slane %v4655, 4
        %v4658 = vor.u32 %v4657, %v4653
        %v4659 = vrot.slane %v4658, 4
        %v4661 = vshll.u32 %v247, 16
        %v4663 = vrot.slane %v4661, 5
        %v4664 = vsel %vm4616, %v4659, %v4663
        %v4666 = vshrl.u32 %v248, 16
        %v4668 = vrot.slane %v4666, 4
        %v4669 = vshll.u32 %v248, 16
        %v4671 = vrot.slane %v4669, 5
        %v4672 = vor.u32 %v4668, %v4671
        %v4673 = vrot.slane %v4672, 4
        %v4675 = vshll.u32 %v249, 16
        %v4677 = vrot.slane %v4675, 5
        %v4678 = vsel %vm4616, %v4673, %v4677
        %v4679 = vshrl.u32 %v249, 16
        %v4681 = vrot.slane %v4679, 4
        %v4682 = vor.u32 %v4681, %v4677
        %v4683 = vrot.slane %v4682, 4
        %v4685 = vshll.u32 %v250, 16
        %v4687 = vrot.slane %v4685, 5
        %v4688 = vsel %vm4616, %v4683, %v4687
        %v4690 = vshrl.u32 %v251, 16
        %v4692 = vrot.slane %v4690, 4
        %v4693 = vshll.u32 %v251, 16
        %v4695 = vrot.slane %v4693, 5
        %v4696 = vor.u32 %v4692, %v4695
        %v4697 = vrot.slane %v4696, 4
        %v4699 = vshll.u32 %v252, 16
        %v4701 = vrot.slane %v4699, 5
        %v4702 = vsel %vm4616, %v4697, %v4701
        %v4703 = vshrl.u32 %v252, 16
        %v4705 = vrot.slane %v4703, 4
        %v4706 = vor.u32 %v4705, %v4701
        %v4707 = vrot.slane %v4706, 4
        %v4709 = vshll.u32 %v253, 16
        %v4711 = vrot.slane %v4709, 5
        %v4712 = vsel %vm4616, %v4707, %v4711
        %v4714 = vshrl.u32 %v254, 16
        %v4716 = vrot.slane %v4714, 4
        %v4717 = vshll.u32 %v254, 16
        %v4719 = vrot.slane %v4717, 5
        %v4720 = vor.u32 %v4716, %v4719
        %v4721 = vrot.slane %v4720, 4
        %v4723 = vshll.u32 %v255, 16
        %v4725 = vrot.slane %v4723, 5
        %v4726 = vsel %vm4616, %v4721, %v4725
        %v4727 = vshrl.u32 %v255, 16
        %v4729 = vrot.slane %v4727, 4
        %v4730 = vor.u32 %v4729, %v4725
        %v4731 = vrot.slane %v4730, 4
        %v4733 = vshll.u32 %v256, 16
        %v4735 = vrot.slane %v4733, 5
        %v4736 = vsel %vm4616, %v4731, %v4735
        %v4738 = vshrl.u32 %v257, 16
        %v4740 = vrot.slane %v4738, 4
        %v4741 = vshll.u32 %v257, 16
        %v4743 = vrot.slane %v4741, 5
        %v4744 = vor.u32 %v4740, %v4743
        %v4745 = vrot.slane %v4744, 4
        %v4747 = vshll.u32 %v258, 16
        %v4749 = vrot.slane %v4747, 5
        %v4750 = vsel %vm4616, %v4745, %v4749
        %v4751 = vshrl.u32 %v258, 16
        %v4753 = vrot.slane %v4751, 4
        %v4754 = vor.u32 %v4753, %v4749
        %v4755 = vrot.slane %v4754, 4
        %v4757 = vshll.u32 %v259, 16
        %v4759 = vrot.slane %v4757, 5
        %v4760 = vsel %vm4616, %v4755, %v4759
        %v4762 = vshrl.u32 %v260, 16
        %v4764 = vrot.slane %v4762, 4
        %v4765 = vshll.u32 %v260, 16
        %v4767 = vrot.slane %v4765, 5
        %v4768 = vor.u32 %v4764, %v4767
        %v4769 = vrot.slane %v4768, 4
        %v4771 = vshll.u32 %v261, 16
        %v4773 = vrot.slane %v4771, 5
        %v4774 = vsel %vm4616, %v4769, %v4773
        %v4775 = vshrl.u32 %v261, 16
        %v4777 = vrot.slane %v4775, 4
        %v4778 = vor.u32 %v4777, %v4773
        %v4779 = vrot.slane %v4778, 4
        %v4781 = vshll.u32 %v262, 16
        %v4783 = vrot.slane %v4781, 5
        %v4784 = vsel %vm4616, %v4779, %v4783
        %v4786 = vshrl.u32 %v263, 16
        %v4788 = vrot.slane %v4786, 4
        %v4789 = vshll.u32 %v263, 16
        %v4791 = vrot.slane %v4789, 5
        %v4792 = vor.u32 %v4788, %v4791
        %v4793 = vrot.slane %v4792, 4
        %v4795 = vshll.u32 %v264, 16
        %v4797 = vrot.slane %v4795, 5
        %v4798 = vsel %vm4616, %v4793, %v4797
        %v4799 = vshrl.u32 %v264, 16
        %v4801 = vrot.slane %v4799, 4
        %v4802 = vor.u32 %v4801, %v4797
        %v4803 = vrot.slane %v4802, 4
        %v4805 = vshll.u32 %v265, 16
        %v4807 = vrot.slane %v4805, 5
        %v4808 = vsel %vm4616, %v4803, %v4807
        %v4810 = vshrl.u32 %v266, 16
        %v4812 = vrot.slane %v4810, 4
        %v4813 = vshll.u32 %v266, 16
        %v4815 = vrot.slane %v4813, 5
        %v4816 = vor.u32 %v4812, %v4815
        %v4817 = vrot.slane %v4816, 4
        %v4819 = vshll.u32 %v267, 16
        %v4821 = vrot.slane %v4819, 5
        %v4822 = vsel %vm4616, %v4817, %v4821
        %v4823 = vshrl.u32 %v267, 16
        %v4825 = vrot.slane %v4823, 4
        %v4826 = vor.u32 %v4825, %v4821
        %v4827 = vrot.slane %v4826, 4
        %v4829 = vshll.u32 %v268, 16
        %v4831 = vrot.slane %v4829, 5
        %v4832 = vsel %vm4616, %v4827, %v4831
        %v4834 = vshrl.u32 %v269, 16
        %v4836 = vrot.slane %v4834, 4
        %v4837 = vshll.u32 %v269, 16
        %v4839 = vrot.slane %v4837, 5
        %v4840 = vor.u32 %v4836, %v4839
        %v4841 = vrot.slane %v4840, 4
        %v4843 = vshll.u32 %v270, 16
        %v4845 = vrot.slane %v4843, 5
        %v4846 = vsel %vm4616, %v4841, %v4845
        %v4847 = vshrl.u32 %v270, 16
        %v4849 = vrot.slane %v4847, 4
        %v4850 = vor.u32 %v4849, %v4845
        %v4851 = vrot.slane %v4850, 4
        %v4853 = vshll.u32 %v271, 16
        %v4855 = vrot.slane %v4853, 5
        %v4856 = vsel %vm4616, %v4851, %v4855
        %v4858 = vshrl.u32 %v272, 16
        %v4860 = vrot.slane %v4858, 4
        %v4861 = vshll.u32 %v272, 16
        %v4863 = vrot.slane %v4861, 5
        %v4864 = vor.u32 %v4860, %v4863
        %v4865 = vrot.slane %v4864, 4
        %v4867 = vshll.u32 %v273, 16
        %v4869 = vrot.slane %v4867, 5
        %v4870 = vsel %vm4616, %v4865, %v4869
        %v4871 = vshrl.u32 %v273, 16
        %v4873 = vrot.slane %v4871, 4
        %v4874 = vor.u32 %v4873, %v4869
        %v4875 = vrot.slane %v4874, 4
        %v4877 = vshll.u32 %v274, 16
        %v4879 = vrot.slane %v4877, 5
        %v4880 = vsel %vm4616, %v4875, %v4879
        %v4882 = vshrl.u32 %v275, 16
        %v4884 = vrot.slane %v4882, 4
        %v4885 = vshll.u32 %v275, 16
        %v4887 = vrot.slane %v4885, 5
        %v4888 = vor.u32 %v4884, %v4887
        %v4889 = vrot.slane %v4888, 4
        %v4891 = vshll.u32 %v276, 16
        %v4893 = vrot.slane %v4891, 5
        %v4894 = vsel %vm4616, %v4889, %v4893
        %v4895 = vshrl.u32 %v276, 16
        %v4897 = vrot.slane %v4895, 4
        %v4898 = vor.u32 %v4897, %v4893
        %v4899 = vrot.slane %v4898, 4
        %v4901 = vshll.u32 %v277, 16
        %v4903 = vrot.slane %v4901, 5
        %v4904 = vsel %vm4616, %v4899, %v4903
        %v4906 = vshrl.u32 %v278, 16
        %v4908 = vrot.slane %v4906, 4
        %v4909 = vshll.u32 %v278, 16
        %v4911 = vrot.slane %v4909, 5
        %v4912 = vor.u32 %v4908, %v4911
        %v4913 = vrot.slane %v4912, 4
        %v4915 = vshll.u32 %v279, 16
        %v4917 = vrot.slane %v4915, 5
        %v4918 = vsel %vm4616, %v4913, %v4917
        %v4919 = vshrl.u32 %v279, 16
        %v4921 = vrot.slane %v4919, 4
        %v4922 = vor.u32 %v4921, %v4917
        %v4923 = vrot.slane %v4922, 4
        %v4925 = vshll.u32 %v280, 16
        %v4927 = vrot.slane %v4925, 5
        %v4928 = vsel %vm4616, %v4923, %v4927
        %v4930 = vshrl.u32 %v281, 16
        %v4932 = vrot.slane %v4930, 4
        %v4933 = vshll.u32 %v281, 16
        %v4935 = vrot.slane %v4933, 5
        %v4936 = vor.u32 %v4932, %v4935
        %v4937 = vrot.slane %v4936, 4
        %v4939 = vshll.u32 %v282, 16
        %v4941 = vrot.slane %v4939, 5
        %v4942 = vsel %vm4616, %v4937, %v4941
        %v4943 = vshrl.u32 %v282, 16
        %v4945 = vrot.slane %v4943, 4
        %v4946 = vor.u32 %v4945, %v4941
        %v4947 = vrot.slane %v4946, 4
        %v4949 = vshll.u32 %v283, 16
        %v4951 = vrot.slane %v4949, 5
        %v4952 = vsel %vm4616, %v4947, %v4951
        %v4954 = vshrl.u32 %v284, 16
        %v4956 = vrot.slane %v4954, 4
        %v4957 = vshll.u32 %v284, 16
        %v4959 = vrot.slane %v4957, 5
        %v4960 = vor.u32 %v4956, %v4959
        %v4961 = vrot.slane %v4960, 4
        %v4963 = vshll.u32 %v285, 16
        %v4965 = vrot.slane %v4963, 5
        %v4966 = vsel %vm4616, %v4961, %v4965
        %v4967 = vshrl.u32 %v285, 16
        %v4969 = vrot.slane %v4967, 4
        %v4970 = vor.u32 %v4969, %v4965
        %v4971 = vrot.slane %v4970, 4
        %v4973 = vshll.u32 %v286, 16
        %v4975 = vrot.slane %v4973, 5
        %v4976 = vsel %vm4616, %v4971, %v4975
        %v4978 = vshrl.u32 %v287, 16
        %v4980 = vrot.slane %v4978, 4
        %v4981 = vshll.u32 %v287, 16
        %v4983 = vrot.slane %v4981, 5
        %v4984 = vor.u32 %v4980, %v4983
        %v4985 = vrot.slane %v4984, 4
        %v4987 = vshll.u32 %v288, 16
        %v4989 = vrot.slane %v4987, 5
        %v4990 = vsel %vm4616, %v4985, %v4989
        %v4991 = vshrl.u32 %v288, 16
        %v4993 = vrot.slane %v4991, 4
        %v4994 = vor.u32 %v4993, %v4989
        %v4995 = vrot.slane %v4994, 4
        %v4997 = vshll.u32 %v289, 16
        %v4999 = vrot.slane %v4997, 5
        %v5000 = vsel %vm4616, %v4995, %v4999
        %v5001 = vld [vmem:[%s3] sm:$0xf]
        %v5002 = vld [vmem:[%s3 + $0x4] sm:$0xf]
        %v5003 = vld [vmem:[%s3 + $0x8] sm:$0xf]
        %v5004 = vld [vmem:[%s3 + $0xc] sm:$0xf]
        %v5005 = vld [vmem:[%s3 + $0x10] sm:$0xf]
        %v5006 = vld [vmem:[%s3 + $0x14] sm:$0xf]
        %v5007 = vld [vmem:[%s3 + $0x18] sm:$0xf]
        %v5008 = vld [vmem:[%s3 + $0x1c] sm:$0xf]
        %v5009 = vld [vmem:[%s3 + $0x20] sm:$0xf]
        %v5010 = vld [vmem:[%s3 + $0x24] sm:$0xf]
        %v5011 = vld [vmem:[%s3 + $0x28] sm:$0xf]
        %v5012 = vld [vmem:[%s3 + $0x2c] sm:$0xf]
        %v5013 = vld [vmem:[%s3 + $0x30] sm:$0xf]
        %v5014 = vld [vmem:[%s3 + $0x34] sm:$0xf]
        %v5015 = vld [vmem:[%s3 + $0x38] sm:$0xf]
        %v5016 = vld [vmem:[%s3 + $0x3c] sm:$0xf]
        %v5017 = vunpack.c.l.b16 %v4630
        %v5018 = vunpack.c.l.b16 %v4640
        %v5019 = vunpack.c.l.b16 %v4654
        %v5020 = vunpack.c.l.b16 %v4664
        %v5021 = vunpack.c.l.b16 %v4678
        %v5022 = vunpack.c.l.b16 %v4688
        %v5023 = vunpack.c.l.b16 %v4702
        %v5024 = vunpack.c.l.b16 %v4712
        %v5025 = vunpack.c.l.b16 %v4726
        %v5026 = vunpack.c.l.b16 %v4736
        %v5027 = vunpack.c.l.b16 %v4750
        %v5028 = vunpack.c.l.b16 %v4760
        %v5029 = vunpack.c.l.b16 %v4774
        %v5030 = vunpack.c.l.b16 %v4784
        %v5031 = vunpack.c.l.b16 %v4798
        %v5032 = vunpack.c.l.b16 %v4808
        %v5033 = vunpack.c.l.b16 %v4822
        %v5034 = vunpack.c.l.b16 %v4832
        %v5035 = vunpack.c.l.b16 %v4846
        %v5036 = vunpack.c.l.b16 %v4856
        %v5037 = vunpack.c.l.b16 %v4870
        %v5038 = vunpack.c.l.b16 %v4880
        %v5039 = vunpack.c.l.b16 %v4894
        %v5040 = vunpack.c.l.b16 %v4904
        %v5041 = vunpack.c.l.b16 %v4918
        %v5042 = vunpack.c.l.b16 %v4928
        %v5043 = vunpack.c.l.b16 %v4942
        %v5044 = vunpack.c.l.b16 %v4952
        %v5045 = vunpack.c.l.b16 %v4966
        %v5046 = vunpack.c.l.b16 %v4976
        %v5047 = vunpack.c.l.b16 %v4990
        %v5048 = vunpack.c.l.b16 %v5000
        %v5049 = vpack.c.b16 %v5018, %v5017
        %v5050 = vpack.c.b16 %v5020, %v5019
        %v5051 = vpack.c.b16 %v5022, %v5021
        %v5052 = vpack.c.b16 %v5024, %v5023
        %v5053 = vpack.c.b16 %v5026, %v5025
        %v5054 = vpack.c.b16 %v5028, %v5027
        %v5055 = vpack.c.b16 %v5030, %v5029
        %v5056 = vpack.c.b16 %v5032, %v5031
        %v5057 = vpack.c.b16 %v5034, %v5033
        %v5058 = vpack.c.b16 %v5036, %v5035
        %v5059 = vpack.c.b16 %v5038, %v5037
        %v5060 = vpack.c.b16 %v5040, %v5039
        %v5061 = vpack.c.b16 %v5042, %v5041
        %v5062 = vpack.c.b16 %v5044, %v5043
        %v5063 = vpack.c.b16 %v5046, %v5045
        %v5064 = vpack.c.b16 %v5048, %v5047
        %v5097 = vunpack.c.l.b16 %v5001
        %v5098 = vunpack.c.l.b16 %v5002
        %v5099 = vunpack.c.l.b16 %v5003
        %v5100 = vunpack.c.l.b16 %v5004
        %v5101 = vunpack.c.l.b16 %v5005
        %v5102 = vunpack.c.l.b16 %v5006
        %v5103 = vunpack.c.l.b16 %v5007
        %v5104 = vunpack.c.l.b16 %v5008
        %v5105 = vunpack.c.l.b16 %v5009
        %v5106 = vunpack.c.l.b16 %v5010
        %v5107 = vunpack.c.l.b16 %v5011
        %v5108 = vunpack.c.l.b16 %v5012
        %v5109 = vunpack.c.l.b16 %v5013
        %v5110 = vunpack.c.l.b16 %v5014
        %v5111 = vunpack.c.l.b16 %v5015
        %v5112 = vunpack.c.l.b16 %v5016
        %v5113 = vpack.c.b16 %v5098, %v5097
        %v5114 = vpack.c.b16 %v5100, %v5099
        %v5115 = vpack.c.b16 %v5102, %v5101
        %v5116 = vpack.c.b16 %v5104, %v5103
        %v5117 = vpack.c.b16 %v5106, %v5105
        %v5118 = vpack.c.b16 %v5108, %v5107
        %v5119 = vpack.c.b16 %v5110, %v5109
        %v5120 = vpack.c.b16 %v5112, %v5111
        %5129 = vmatprep.subr.bf16.mxu0 0
        %5130 = vmatpush1.bf16.msra.mxu0 %v5113
        %5131 = vmatprep.subr.bf16.mxu0 0
        %5132 = vmatpush1.bf16.msra.mxu0 %v5114
        %5133 = vmatprep.subr.bf16.mxu0 0
        %5134 = vmatpush1.bf16.msra.mxu0 %v5115
        %5135 = vmatprep.subr.bf16.mxu0 0
        %5136 = vmatpush1.bf16.msra.mxu0 %v5116
        %5137 = vmatprep.subr.bf16.mxu0 0
        %5138 = vmatpush1.bf16.msra.mxu0 %v5117
        %5139 = vmatprep.subr.bf16.mxu0 0
        %5140 = vmatpush1.bf16.msra.mxu0 %v5118
        %5141 = vmatprep.subr.bf16.mxu0 0
        %5142 = vmatpush1.bf16.msra.mxu0 %v5119
        %5143 = vmatprep.subr.bf16.mxu0 0
        %5144 = vmatpush1.bf16.msra.mxu0 %v5120
        %5145 = vmatprep.subr.bf16.mxu0 0
        %5146 = vmatpush1.bf16.msra.mxu0 0
        %5147 = vmatprep.subr.bf16.mxu0 0
        %5148 = vmatpush1.bf16.msra.mxu0 0
        %5149 = vmatprep.subr.bf16.mxu0 0
        %5150 = vmatpush1.bf16.msra.mxu0 0
        %5151 = vmatprep.subr.bf16.mxu0 0
        %5152 = vmatpush1.bf16.msra.mxu0 0
        %5153 = vmatprep.subr.bf16.mxu0 0
        %5154 = vmatpush1.bf16.msra.mxu0 0
        %5155 = vmatprep.subr.bf16.mxu0 0
        %5156 = vmatpush1.bf16.msra.mxu0 0
        %5157 = vmatprep.subr.bf16.mxu0 0
        %5158 = vmatpush1.bf16.msra.mxu0 0
        %5159 = vmatprep.subr.bf16.mxu0 0
        %5160 = vmatpush1.bf16.msra.mxu0 0
        %5161 = vmatprep.mubr.bf16.mxu0 0
        %5162 = vmatmul.mubr.bf16.gmra.mrb[0].mxu0 %v5049
        %v5163 = vpop.f32.mrb[0].mxu0
        %v5164 = vadd.f32 0.0, %v5163
        %v5165 = vpop.f32.mrb[0].mxu0
        %v5166 = vpop.f32.mrb[0].mxu0
        %v5167 = vadd.f32 0.0, %v5166
        %v5168 = vpop.f32.mrb[0].mxu0
        %5169 = vmatprep.mubr.bf16.mxu0 0
        %5170 = vmatmul.mubr.bf16.gmra.mrb[0].mxu0 %v5050
        %v5171 = vpop.f32.mrb[0].mxu0
        %v5172 = vadd.f32 0.0, %v5171
        %v5173 = vpop.f32.mrb[0].mxu0
        %v5174 = vpop.f32.mrb[0].mxu0
        %v5175 = vadd.f32 0.0, %v5174
        %v5176 = vpop.f32.mrb[0].mxu0
        %5177 = vmatprep.mubr.bf16.mxu0 0
        %5178 = vmatmul.mubr.bf16.gmra.mrb[0].mxu0 %v5051
        %v5179 = vpop.f32.mrb[0].mxu0
        %v5180 = vadd.f32 0.0, %v5179
        %v5181 = vpop.f32.mrb[0].mxu0
        %v5182 = vpop.f32.mrb[0].mxu0
        %v5183 = vadd.f32 0.0, %v5182
        %v5184 = vpop.f32.mrb[0].mxu0
        %5185 = vmatprep.mubr.bf16.mxu0 0
        %5186 = vmatmul.mubr.bf16.gmra.mrb[0].mxu0 %v5052
        %v5187 = vpop.f32.mrb[0].mxu0
        %v5188 = vadd.f32 0.0, %v5187
        %v5189 = vpop.f32.mrb[0].mxu0
        %v5190 = vpop.f32.mrb[0].mxu0
        %v5191 = vadd.f32 0.0, %v5190
        %v5192 = vpop.f32.mrb[0].mxu0
        %5193 = vmatprep.mubr.bf16.mxu0 0
        %5194 = vmatmul.mubr.bf16.gmra.mrb[0].mxu0 %v5053
        %v5195 = vpop.f32.mrb[0].mxu0
        %v5196 = vadd.f32 0.0, %v5195
        %v5197 = vpop.f32.mrb[0].mxu0
        %v5198 = vpop.f32.mrb[0].mxu0
        %v5199 = vadd.f32 0.0, %v5198
        %v5200 = vpop.f32.mrb[0].mxu0
        %5201 = vmatprep.mubr.bf16.mxu0 0
        %5202 = vmatmul.mubr.bf16.gmra.mrb[0].mxu0 %v5054
        %v5203 = vpop.f32.mrb[0].mxu0
        %v5204 = vadd.f32 0.0, %v5203
        %v5205 = vpop.f32.mrb[0].mxu0
        %v5206 = vpop.f32.mrb[0].mxu0
        %v5207 = vadd.f32 0.0, %v5206
        %v5208 = vpop.f32.mrb[0].mxu0
        %5209 = vmatprep.mubr.bf16.mxu0 0
        %5210 = vmatmul.mubr.bf16.gmra.mrb[0].mxu0 %v5055
        %v5211 = vpop.f32.mrb[0].mxu0
        %v5212 = vadd.f32 0.0, %v5211
        %v5213 = vpop.f32.mrb[0].mxu0
        %v5214 = vpop.f32.mrb[0].mxu0
        %v5215 = vadd.f32 0.0, %v5214
        %v5216 = vpop.f32.mrb[0].mxu0
        %5217 = vmatprep.mubr.bf16.mxu0 0
        %5218 = vmatmul.mubr.bf16.gmra.mrb[0].mxu0 %v5056
        %v5219 = vpop.f32.mrb[0].mxu0
        %v5220 = vadd.f32 0.0, %v5219
        %v5221 = vpop.f32.mrb[0].mxu0
        %v5222 = vpop.f32.mrb[0].mxu0
        %v5223 = vadd.f32 0.0, %v5222
        %v5224 = vpop.f32.mrb[0].mxu0
        %5225 = vmatprep.mubr.bf16.mxu0 0
        %5226 = vmatmul.mubr.bf16.gmra.mrb[0].mxu0 %v5057
        %v5227 = vpop.f32.mrb[0].mxu0
        %v5228 = vadd.f32 0.0, %v5227
        %v5229 = vpop.f32.mrb[0].mxu0
        %v5230 = vpop.f32.mrb[0].mxu0
        %v5231 = vadd.f32 0.0, %v5230
        %v5232 = vpop.f32.mrb[0].mxu0
        %5233 = vmatprep.mubr.bf16.mxu0 0
        %5234 = vmatmul.mubr.bf16.gmra.mrb[0].mxu0 %v5058
        %v5235 = vpop.f32.mrb[0].mxu0
        %v5236 = vadd.f32 0.0, %v5235
        %v5237 = vpop.f32.mrb[0].mxu0
        %v5238 = vpop.f32.mrb[0].mxu0
        %v5239 = vadd.f32 0.0, %v5238
        %v5240 = vpop.f32.mrb[0].mxu0
        %5241 = vmatprep.mubr.bf16.mxu0 0
        %5242 = vmatmul.mubr.bf16.gmra.mrb[0].mxu0 %v5059
        %v5243 = vpop.f32.mrb[0].mxu0
        %v5244 = vadd.f32 0.0, %v5243
        %v5245 = vpop.f32.mrb[0].mxu0
        %v5246 = vpop.f32.mrb[0].mxu0
        %v5247 = vadd.f32 0.0, %v5246
        %v5248 = vpop.f32.mrb[0].mxu0
        %5249 = vmatprep.mubr.bf16.mxu0 0
        %5250 = vmatmul.mubr.bf16.gmra.mrb[0].mxu0 %v5060
        %v5251 = vpop.f32.mrb[0].mxu0
        %v5252 = vadd.f32 0.0, %v5251
        %v5253 = vpop.f32.mrb[0].mxu0
        %v5254 = vpop.f32.mrb[0].mxu0
        %v5255 = vadd.f32 0.0, %v5254
        %v5256 = vpop.f32.mrb[0].mxu0
        %5257 = vmatprep.mubr.bf16.mxu0 0
        %5258 = vmatmul.mubr.bf16.gmra.mrb[0].mxu0 %v5061
        %v5259 = vpop.f32.mrb[0].mxu0
        %v5260 = vadd.f32 0.0, %v5259
        %v5261 = vpop.f32.mrb[0].mxu0
        %v5262 = vpop.f32.mrb[0].mxu0
        %v5263 = vadd.f32 0.0, %v5262
        %v5264 = vpop.f32.mrb[0].mxu0
        %5265 = vmatprep.mubr.bf16.mxu0 0
        %5266 = vmatmul.mubr.bf16.gmra.mrb[0].mxu0 %v5062
        %v5267 = vpop.f32.mrb[0].mxu0
        %v5268 = vadd.f32 0.0, %v5267
        %v5269 = vpop.f32.mrb[0].mxu0
        %v5270 = vpop.f32.mrb[0].mxu0
        %v5271 = vadd.f32 0.0, %v5270
        %v5272 = vpop.f32.mrb[0].mxu0
        %5273 = vmatprep.mubr.bf16.mxu0 0
        %5274 = vmatmul.mubr.bf16.gmra.mrb[0].mxu0 %v5063
        %v5275 = vpop.f32.mrb[0].mxu0
        %v5276 = vadd.f32 0.0, %v5275
        %v5277 = vpop.f32.mrb[0].mxu0
        %v5278 = vpop.f32.mrb[0].mxu0
        %v5279 = vadd.f32 0.0, %v5278
        %v5280 = vpop.f32.mrb[0].mxu0
        %5281 = vmatprep.mubr.bf16.mxu0 0
        %5282 = vmatmul.mubr.bf16.gmra.mrb[0].mxu0 %v5064
        %v5283 = vpop.f32.mrb[0].mxu0
        %v5284 = vadd.f32 0.0, %v5283
        %v5285 = vpop.f32.mrb[0].mxu0
        %v5286 = vpop.f32.mrb[0].mxu0
        %v5287 = vadd.f32 0.0, %v5286
        %v5288 = vpop.f32.mrb[0].mxu0
        %5289 = vdwg.mxu0
        %v5290 = vld [vmem:[%s4 + $0x4] sm:$0x1]
        %v5291 = vlaneseq
        %v5292 = vshrl.u32 %v5291, 7
        %v5293 = vsub.s32 0, %v5292
        %v5294 = vrot.slane %v5290, %v5293
        %v5295 = vmul.f32 %v5164, %v5294
        %v5296 = vmul.f32 %v5167, %v5294
        %v5297 = vmul.f32 %v5172, %v5294
        %v5298 = vmul.f32 %v5175, %v5294
        %v5299 = vmul.f32 %v5180, %v5294
        %v5300 = vmul.f32 %v5183, %v5294
        %v5301 = vmul.f32 %v5188, %v5294
        %v5302 = vmul.f32 %v5191, %v5294
        %v5303 = vmul.f32 %v5196, %v5294
        %v5304 = vmul.f32 %v5199, %v5294
        %v5305 = vmul.f32 %v5204, %v5294
        %v5306 = vmul.f32 %v5207, %v5294
        %v5307 = vmul.f32 %v5212, %v5294
        %v5308 = vmul.f32 %v5215, %v5294
        %v5309 = vmul.f32 %v5220, %v5294
        %v5310 = vmul.f32 %v5223, %v5294
        %v5311 = vmul.f32 %v5228, %v5294
        %v5312 = vmul.f32 %v5231, %v5294
        %v5313 = vmul.f32 %v5236, %v5294
        %v5314 = vmul.f32 %v5239, %v5294
        %v5315 = vmul.f32 %v5244, %v5294
        %v5316 = vmul.f32 %v5247, %v5294
        %v5317 = vmul.f32 %v5252, %v5294
        %v5318 = vmul.f32 %v5255, %v5294
        %v5319 = vmul.f32 %v5260, %v5294
        %v5320 = vmul.f32 %v5263, %v5294
        %v5321 = vmul.f32 %v5268, %v5294
        %v5322 = vmul.f32 %v5271, %v5294
        %v5323 = vmul.f32 %v5276, %v5294
        %v5324 = vmul.f32 %v5279, %v5294
        %v5325 = vmul.f32 %v5284, %v5294
        %v5326 = vmul.f32 %v5287, %v5294
        %v5327 = vld [vmem:[%s4 + $0x5] sm:$0x1]
        %v5328 = vlaneseq
        %v5329 = vshrl.u32 %v5328, 7
        %v5330 = vsub.s32 0, %v5329
        %v5331 = vrot.slane %v5327, %v5330
        %v5332 = vadd.f32 %v5295, %v5331
        %v5333 = vadd.f32 %v5296, %v5331
        %v5334 = vadd.f32 %v5297, %v5331
        %v5335 = vadd.f32 %v5298, %v5331
        %v5336 = vadd.f32 %v5299, %v5331
        %v5337 = vadd.f32 %v5300, %v5331
        %v5338 = vadd.f32 %v5301, %v5331
        %v5339 = vadd.f32 %v5302, %v5331
        %v5340 = vadd.f32 %v5303, %v5331
        %v5341 = vadd.f32 %v5304, %v5331
        %v5342 = vadd.f32 %v5305, %v5331
        %v5343 = vadd.f32 %v5306, %v5331
        %v5344 = vadd.f32 %v5307, %v5331
        %v5345 = vadd.f32 %v5308, %v5331
        %v5346 = vadd.f32 %v5309, %v5331
        %v5347 = vadd.f32 %v5310, %v5331
        %v5348 = vadd.f32 %v5311, %v5331
        %v5349 = vadd.f32 %v5312, %v5331
        %v5350 = vadd.f32 %v5313, %v5331
        %v5351 = vadd.f32 %v5314, %v5331
        %v5352 = vadd.f32 %v5315, %v5331
        %v5353 = vadd.f32 %v5316, %v5331
        %v5354 = vadd.f32 %v5317, %v5331
        %v5355 = vadd.f32 %v5318, %v5331
        %v5356 = vadd.f32 %v5319, %v5331
        %v5357 = vadd.f32 %v5320, %v5331
        %v5358 = vadd.f32 %v5321, %v5331
        %v5359 = vadd.f32 %v5322, %v5331
        %v5360 = vadd.f32 %v5323, %v5331
        %v5361 = vadd.f32 %v5324, %v5331
        %v5362 = vadd.f32 %v5325, %v5331
        %v5363 = vadd.f32 %v5326, %v5331
        %v5364 = vadd.f32 %v4582, %v5332
        %v5365 = vadd.f32 %v4583, %v5333
        %v5366 = vadd.f32 %v4584, %v5334
        %v5367 = vadd.f32 %v4585, %v5335
        %v5368 = vadd.f32 %v4586, %v5336
        %v5369 = vadd.f32 %v4587, %v5337
        %v5370 = vadd.f32 %v4588, %v5338
        %v5371 = vadd.f32 %v4589, %v5339
        %v5372 = vadd.f32 %v4590, %v5340
        %v5373 = vadd.f32 %v4591, %v5341
        %v5374 = vadd.f32 %v4592, %v5342
        %v5375 = vadd.f32 %v4593, %v5343
        %v5376 = vadd.f32 %v4594, %v5344
        %v5377 = vadd.f32 %v4595, %v5345
        %v5378 = vadd.f32 %v4596, %v5346
        %v5379 = vadd.f32 %v4597, %v5347
        %v5380 = vadd.f32 %v4598, %v5348
        %v5381 = vadd.f32 %v4599, %v5349
        %v5382 = vadd.f32 %v4600, %v5350
        %v5383 = vadd.f32 %v4601, %v5351
        %v5384 = vadd.f32 %v4602, %v5352
        %v5385 = vadd.f32 %v4603, %v5353
        %v5386 = vadd.f32 %v4604, %v5354
        %v5387 = vadd.f32 %v4605, %v5355
        %v5388 = vadd.f32 %v4606, %v5356
        %v5389 = vadd.f32 %v4607, %v5357
        %v5390 = vadd.f32 %v4608, %v5358
        %v5391 = vadd.f32 %v4609, %v5359
        %v5392 = vadd.f32 %v4610, %v5360
        %v5393 = vadd.f32 %v4611, %v5361
        %v5394 = vadd.f32 %v4612, %v5362
        %v5395 = vadd.f32 %v4613, %v5363
        %v5396 = vmax.f32 %v5364, 0.0
        %v5397 = vmax.f32 %v5365, 0.0
        %v5398 = vmax.f32 %v5366, 0.0
        %v5399 = vmax.f32 %v5367, 0.0
        %v5400 = vmax.f32 %v5368, 0.0
        %v5401 = vmax.f32 %v5369, 0.0
        %v5402 = vmax.f32 %v5370, 0.0
        %v5403 = vmax.f32 %v5371, 0.0
        %v5404 = vmax.f32 %v5372, 0.0
        %v5405 = vmax.f32 %v5373, 0.0
        %v5406 = vmax.f32 %v5374, 0.0
        %v5407 = vmax.f32 %v5375, 0.0
        %v5408 = vmax.f32 %v5376, 0.0
        %v5409 = vmax.f32 %v5377, 0.0
        %v5410 = vmax.f32 %v5378, 0.0
        %v5411 = vmax.f32 %v5379, 0.0
        %v5412 = vmax.f32 %v5380, 0.0
        %v5413 = vmax.f32 %v5381, 0.0
        %v5414 = vmax.f32 %v5382, 0.0
        %v5415 = vmax.f32 %v5383, 0.0
        %v5416 = vmax.f32 %v5384, 0.0
        %v5417 = vmax.f32 %v5385, 0.0
        %v5418 = vmax.f32 %v5386, 0.0
        %v5419 = vmax.f32 %v5387, 0.0
        %v5420 = vmax.f32 %v5388, 0.0
        %v5421 = vmax.f32 %v5389, 0.0
        %v5422 = vmax.f32 %v5390, 0.0
        %v5423 = vmax.f32 %v5391, 0.0
        %v5424 = vmax.f32 %v5392, 0.0
        %v5425 = vmax.f32 %v5393, 0.0
        %v5426 = vmax.f32 %v5394, 0.0
        %v5427 = vmax.f32 %v5395, 0.0
        %5428 = vst [vmem:[%s232] sm:$0xff] %v5396
        %5429 = vst [vmem:[%s232 + $0x8] sm:$0xff] %v5397
        %5430 = vst [vmem:[%s232 + $0x10] sm:$0xff] %v5398
        %5431 = vst [vmem:[%s232 + $0x18] sm:$0xff] %v5399
        %5432 = vst [vmem:[%s232 + $0x20] sm:$0xff] %v5400
        %5433 = vst [vmem:[%s232 + $0x28] sm:$0xff] %v5401
        %5434 = vst [vmem:[%s232 + $0x30] sm:$0xff] %v5402
        %5435 = vst [vmem:[%s232 + $0x38] sm:$0xff] %v5403
        %5436 = vst [vmem:[%s232 + $0x40] sm:$0xff] %v5404
        %5437 = vst [vmem:[%s232 + $0x48] sm:$0xff] %v5405
        %5438 = vst [vmem:[%s232 + $0x50] sm:$0xff] %v5406
        %5439 = vst [vmem:[%s232 + $0x58] sm:$0xff] %v5407
        %5440 = vst [vmem:[%s232 + $0x60] sm:$0xff] %v5408
        %5441 = vst [vmem:[%s232 + $0x68] sm:$0xff] %v5409
        %5442 = vst [vmem:[%s232 + $0x70] sm:$0xff] %v5410
        %5443 = vst [vmem:[%s232 + $0x78] sm:$0xff] %v5411
        %5444 = vst [vmem:[%s232 + $0x80] sm:$0xff] %v5412
        %5445 = vst [vmem:[%s232 + $0x88] sm:$0xff] %v5413
        %5446 = vst [vmem:[%s232 + $0x90] sm:$0xff] %v5414
        %5447 = vst [vmem:[%s232 + $0x98] sm:$0xff] %v5415
        %5448 = vst [vmem:[%s232 + $0xa0] sm:$0xff] %v5416
        %5449 = vst [vmem:[%s232 + $0xa8] sm:$0xff] %v5417
        %5450 = vst [vmem:[%s232 + $0xb0] sm:$0xff] %v5418
        %5451 = vst [vmem:[%s232 + $0xb8] sm:$0xff] %v5419
        %5452 = vst [vmem:[%s232 + $0xc0] sm:$0xff] %v5420
        %5453 = vst [vmem:[%s232 + $0xc8] sm:$0xff] %v5421
        %5454 = vst [vmem:[%s232 + $0xd0] sm:$0xff] %v5422
        %5455 = vst [vmem:[%s232 + $0xd8] sm:$0xff] %v5423
        %5456 = vst [vmem:[%s232 + $0xe0] sm:$0xff] %v5424
        %5457 = vst [vmem:[%s232 + $0xe8] sm:$0xff] %v5425
        %5458 = vst [vmem:[%s232 + $0xf0] sm:$0xff] %v5426
        %5459 = vst [vmem:[%s232 + $0xf8] sm:$0xff] %v5427
        %s5460 = sand.u32 %s138, 1
        %s5461 = scalar_lea.sflag [#allocation5], %s5460
        %s5462 = sand.u32 %s138, 1
        %s5463 = smul.addr %s5462, 256
        %s5464 = scalar_lea.vmem [#allocation6], %s5463
        // Predicated region
        $region45: #{tpu_custom_call.1} parent=39 // pred_check
          %p5465 = pneg %p148
        $region46: #{tpu_custom_call.1} parent=39 // pred_check_branch
          %5467 = sbr.rel (%p5465) target = $region48
        $region47: #{tpu_custom_call.1} parent=39 // pred_region
          %s5469 = ssub.s32 4096, 4096
          %5470 = vsyncadd %s5461, %s5469
          %s5471 = smul.addr %s20, 32
          %s5472 = smul.addr %s5471, 128
          %s5473 = scalar_lea.hbm %s5, %s5472
          %s5474 = sshll.u32 %s5464, 4
          %s5475 = int_to_ptr.vmem [resolvable:$true] %s5474
          %5480 = dma.vmem_to_hbm [thread:$0]  %s5475, 4096, %s5473, %s5461, 128, 128, 8
        $region48: #{tpu_custom_call.1} parent=39 // pred_fallthru
          _
      $region40: #{tpu_custom_call.1} parent=5 // pred_fallthru
        _
      %p5481 = scmp.le.s32.totalorder 2, %s15
      // Predicated region
      $region49: #{tpu_custom_call.1} parent=5 // pred_check
        %p5482 = pneg %p5481
      $region50: #{tpu_custom_call.1} parent=5 // pred_check_branch
        %5484 = sbr.rel (%p5482) target = $region52
      $region51: #{tpu_custom_call.1} parent=5 // pred_region
        %s5485 = ssub.s32 %s15, 2
        // Predicated region
        $region53: #{tpu_custom_call.1} parent=51 // pred_check
          %p5486 = pneg %p154
        $region54: #{tpu_custom_call.1} parent=51 // pred_check_branch
          %5488 = sbr.rel (%p5486) target = $region56
        $region55: #{tpu_custom_call.1} parent=51 // pred_region
          %s5489 = sand.u32 %s139, 1
          %s5490 = scalar_lea.sflag [#allocation5], %s5489
          %s5491 = sand.u32 %s139, 1
          %s5492 = smul.addr %s5491, 256
          %s5493 = scalar_lea.vmem [#allocation6], %s5492
          %5494 = dma.done %s5490, 4096
        $region56: #{tpu_custom_call.1} parent=51 // pred_fallthru
          _
      $region52: #{tpu_custom_call.1} parent=5 // pred_fallthru
        _
    $region6: #{tpu_custom_call.1} parent=1 // loop_footer
      %s19 = sadd.s32 1, %s15
    $region7: #{tpu_custom_call.1} parent=1 // loop_footer_branch
      %14 = sbr.rel target = $region3
    $region8: #{tpu_custom_call.1} parent=1 // loop_exit
      _
    %5495 = vsyncpa [#allocation4], 1
    %s5496 = scalar_lea.sflag [#allocation4], 1
    %5497 = vsyncpa %s5496, 1
    %5498 = vsyncpa [#allocation5], 1
    %s5499 = scalar_lea.sflag [#allocation5], 1
    %5500 = vsyncpa %s5499, 1

</llo_original>
